<compile_context>
chip_gen: v7x
topology: tpu7x:2x2x1
jax: 0.10.0
libtpu: 0.0.40
codegen_flags: <defaults>
</compile_context>

<pallas_src>
import functools

import numpy as np
import jax
import jax.numpy as jnp
from jax.experimental import pallas as pl
from jax.experimental.pallas import tpu as pltpu


def gather_model_kernel(nf_ref, ef_ref, src_oh_ref, dst_sc_ref,
                        wnode_ref, nbias_ref, we1_ref, we2_ref, ssum_ref,
                        out_ref, *, num_steps):
    f32 = jnp.float32
    N, D = nf_ref.shape                       # leading graph dim is squeezed by BlockSpec
    E, De = ef_ref.shape
    Eh = we1_ref.shape[1]

    nf = nf_ref[...]                          # (N, D) input node features (residual)

    # ---- packed parameters (static, 8-aligned sublane slices of the slabs) ----
    w0 = wnode_ref[0:D, :]                    # (D, D)  lin0 weight
    wm = wnode_ref[D:2 * D, :]                # (D, D)  message_layer weight, m-half
    wh = wnode_ref[2 * D:3 * D, :]            # (D, D)  message_layer weight, h-half
    b0 = nbias_ref[0:1, :]                    # (1, D)
    cbias = nbias_ref[8:9, :]                 # (1, D)  NNConv bias
    bmsg = nbias_ref[16:17, :]                # (1, D)
    we1 = we1_ref[0:De, :]                    # (De, Eh)
    be1 = we1_ref[De:De + 1, :]               # (1, Eh)
    we2 = we2_ref[0:Eh, :]                    # (Eh, D*D)  columns pre-permuted to o*D+d
    be2 = we2_ref[Eh:Eh + 1, :]               # (1, D*D)
    ssum = ssum_ref[...]                      # (D*D, D)   ssum[j, o] = 1 iff j // D == o

    # ---- lin0 + ReLU ----
    h = jnp.maximum(jnp.dot(nf, w0, preferred_element_type=f32) + b0, 0.0)

    # ---- edge network: Linear -> ReLU -> Linear (loop-invariant; e_feat never changes) ----
    eh_act = jnp.maximum(jnp.dot(ef_ref[...], we1, preferred_element_type=f32) + be1, 0.0)
    w_edge = jnp.dot(eh_act, we2, preferred_element_type=f32) + be2      # (E, D*D), o*D+d layout

    src_oh = src_oh_ref[...]                  # (E, N)  gather h[src] as a matmul
    dst_sc = dst_sc_ref[...]                  # (N, E)  scatter-add to dst as a matmul

    # ---- message passing (NNConv, aggregator='sum', residual=Identity since in==out) ----
    for _ in range(num_steps):
        # Off the critical MXU chain: h-half of the (un-fused) message_layer.
        hW = jnp.dot(h, wh, preferred_element_type=f32) + bmsg           # (N, D)

        h_src = jnp.dot(src_oh, h, preferred_element_type=f32)           # (E, D)   h[src]
        # Lane tile (== jnp.tile(h_src, (1, D))): h_rep[e, o*D + d] = h_src[e, d].
        # Pure lane concat (VPU/XLU slots) — replaces the old rexp MXU matmul.
        h_rep = jnp.concatenate([h_src] * D, axis=1)                     # (E, D*D)
        m_e = jnp.dot(h_rep * w_edge, ssum, preferred_element_type=f32)  # (E, D)   per-edge msg
        agg = jnp.dot(dst_sc, m_e, preferred_element_type=f32)           # (N, D)   scatter-add
        m = jnp.maximum(agg + h + cbias, 0.0)                            # relu(conv(g, h, e))
        h = jnp.dot(m, wm, preferred_element_type=f32) + hW              # message_layer

    out_ref[...] = h + nf                                                # + init residual


def gather_model_forward(n_feat, e_feat, src, dst, params, num_steps=6):
    """n_feat: (G, N, D), e_feat: (G, E, De), src/dst: (G, E) int32."""
    G, N, D = n_feat.shape
    _, E, De = e_feat.shape
    Eh = params["we1"].shape[1]
    DD = D * D

    # Graph connectivity -> dense one-hot matrices (glue, plain JAX).
    src_oh = jax.nn.one_hot(src, N, dtype=jnp.float32)                          # (G, E, N)
    dst_sc = jnp.swapaxes(jax.nn.one_hot(dst, N, dtype=jnp.float32), 1, 2)      # (G, N, E)

    # Consolidated parameter slabs (few DMAs; static 8-aligned slices in-kernel).
    wm = params["wmsg"][:D, :]
    wh = params["wmsg"][D:, :]
    wnode = jnp.concatenate([params["w0"], wm, wh], axis=0)                     # (3D, D)
    nbias = jnp.zeros((24, D), jnp.float32)
    nbias = (nbias.at[0:1, :].set(params["b0"])
                  .at[8:9, :].set(params["cbias"])
                  .at[16:17, :].set(params["bmsg"]))                            # tile-aligned biases
    # Permute edge-net output columns from d*D+o to o*D+d so the in-kernel replicate of
    # h_src is a lane tile instead of an MXU matmul.
    perm = (jnp.arange(DD) % D) * D + (jnp.arange(DD) // D)
    we1a = jnp.concatenate([params["we1"], params["be1"]], axis=0)              # (De+1, Eh)
    we2a = jnp.concatenate([params["we2"][:, perm], params["be2"][:, perm]],
                           axis=0)                                              # (Eh+1, D*D)
    # Structural sum matrix for the o*D+d layout: ssum[j, o] = 1 iff j // D == o.
    ssum = (jnp.arange(DD)[:, None] // D == jnp.arange(D)[None, :]).astype(jnp.float32)

    graph_inputs = [n_feat, e_feat, src_oh, dst_sc]                             # per-graph blocks
    param_inputs = [wnode, nbias, we1a, we2a, ssum]                             # resident constants

    def graph_spec(x):
        # Leading graph dim squeezed out of the kernel ref; one graph per grid step.
        return pl.BlockSpec((None,) + x.shape[1:],
                            lambda g, _nd=x.ndim: (g,) + (0,) * (_nd - 1))

    def const_spec(x):
        # Constant block index -> Pallas skips re-DMA across grid steps.
        return pl.BlockSpec(x.shape, lambda g, _nd=x.ndim: (0,) * _nd)

    # Advisory cost estimate for XLA scheduling around this (small) custom call.
    step_flops = 2 * (E * N * D + E * DD * D + N * E * D + 2 * N * D * D)
    pre_flops = 2 * (N * D * D + E * De * Eh + E * Eh * DD)
    flops = G * (pre_flops + num_steps * step_flops)
    bytes_accessed = (sum(int(np.prod(x.shape)) * 4 for x in graph_inputs + param_inputs)
                      + G * N * D * 4)

    kernel = functools.partial(gather_model_kernel, num_steps=num_steps)

    return pl.pallas_call(
        kernel,
        out_shape=jax.ShapeDtypeStruct((G, N, D), jnp.float32),
        grid=(G,),
        in_specs=[graph_spec(x) for x in graph_inputs]
                 + [const_spec(x) for x in param_inputs],
        out_specs=pl.BlockSpec((None, N, D), lambda g: (g, 0, 0)),
        compiler_params=pltpu.CompilerParams(dimension_semantics=("parallel",)),
        cost_estimate=pl.CostEstimate(flops=flops, transcendentals=0,
                                      bytes_accessed=bytes_accessed),
    )(*graph_inputs, *param_inputs)


def reference_forward(n_feat, e_feat, src, dst, params, num_steps=6):
    """Pure-JAX reference (mirrors the PyTorch/DGL semantics), batched over graphs."""
    def one_graph(nf, ef, s, d):
        N, D = nf.shape
        E = ef.shape[0]
        init = nf
        h = jax.nn.relu(nf @ params["w0"] + params["b0"])
        ehid = jax.nn.relu(ef @ params["we1"] + params["be1"])
        w_edge = (ehid @ params["we2"] + params["be2"]).reshape(E, D, D)
        for _ in range(num_steps):
            h_src = h[s]                                          # (E, D)
            m_e = jnp.einsum("ed,edo->eo", h_src, w_edge)         # (E, D)
            agg = jnp.zeros_like(h).at[d].add(m_e)                # (N, D)
            m = jax.nn.relu(agg + h + params["cbias"])
            h = jnp.concatenate([m, h], axis=1) @ params["wmsg"] + params["bmsg"]
        return h + init

    return jnp.stack([one_graph(n_feat[g], e_feat[g], src[g], dst[g])
                      for g in range(n_feat.shape[0])])


if __name__ == "__main__":
    # Small shapes consistent with the module (node_input_dim == node_hidden_dim),
    # batched over a few molecule-sized graphs.
    G = 4                     # graphs (parallel grid axis)
    N, E = 8, 16              # nodes, edges per graph
    D = 32                    # node_input_dim = node_hidden_dim
    De = 8                    # edge_input_dim
    Eh = 32                   # edge_hidden_dim
    NUM_STEPS = 6

    key = jax.random.PRNGKey(0)
    ks = jax.random.split(key, 16)
    scale = 0.1

    n_feat = jax.random.normal(ks[0], (G, N, D), jnp.float32)
    e_feat = jax.random.normal(ks[1], (G, E, De), jnp.float32)
    src = jax.random.randint(ks[2], (G, E), 0, N)
    dst = jax.random.randint(ks[3], (G, E), 0, N)

    params = {
        # lin0
        "w0": jax.random.normal(ks[4], (D, D), jnp.float32) * scale,
        "b0": jax.random.normal(ks[5], (1, D), jnp.float32) * scale,
        # edge network: Linear(De, Eh) -> ReLU -> Linear(Eh, D*D)
        "we1": jax.random.normal(ks[6], (De, Eh), jnp.float32) * scale,
        "be1": jax.random.normal(ks[7], (1, Eh), jnp.float32) * scale,
        "we2": jax.random.normal(ks[8], (Eh, D * D), jnp.float32) * scale,
        "be2": jax.random.normal(ks[9], (1, D * D), jnp.float32) * scale,
        # message_layer: Linear(2D, D) on cat([m, h])
        "wmsg": jax.random.normal(ks[10], (2 * D, D), jnp.float32) * scale,
        "bmsg": jax.random.normal(ks[12], (1, D), jnp.float32) * scale,
        # NNConv bias (DGL initializes it to zeros)
        "cbias": jnp.zeros((1, D), jnp.float32),
    }

    out = gather_model_forward(n_feat, e_feat, src, dst, params, num_steps=NUM_STEPS)
    out = jax.block_until_ready(out)

    ref = reference_forward(n_feat, e_feat, src, dst, params, num_steps=NUM_STEPS)
    if not np.allclose(np.asarray(out), np.asarray(ref), rtol=1e-4, atol=1e-4):
        raise AssertionError("Pallas kernel output does not match JAX reference")

    print("KERNEL_OK")
</pallas_src>

<mosaic_0001>
module attributes {stable_mosaic.version = 11 : i64} {
  func.func @gather_model_kernel(%arg0: i32, %arg1: memref<1x8x32xf32, #tpu.memory_space<vmem>>, %arg2: memref<1x16x8xf32, #tpu.memory_space<vmem>>, %arg3: memref<1x16x8xf32, #tpu.memory_space<vmem>>, %arg4: memref<1x8x16xf32, #tpu.memory_space<vmem>>, %arg5: memref<96x32xf32, #tpu.memory_space<vmem>>, %arg6: memref<24x32xf32, #tpu.memory_space<vmem>>, %arg7: memref<9x32xf32, #tpu.memory_space<vmem>>, %arg8: memref<33x1024xf32, #tpu.memory_space<vmem>>, %arg9: memref<1024x32xf32, #tpu.memory_space<vmem>>, %arg10: memref<1x8x32xf32, #tpu.memory_space<vmem>>) attributes {dimension_semantics = [#tpu.dimension_semantics<parallel>], iteration_bounds = array<i64: 4>, scalar_prefetch = 0 : i64, scratch_operands = 0 : i64, tpu.core_type = #tpu.core_type<tc>, window_params = [{transform_indices = @transform_0, window_bounds = array<i64: 1, 8, 32>}, {transform_indices = @transform_1, window_bounds = array<i64: 1, 16, 8>}, {transform_indices = @transform_2, window_bounds = array<i64: 1, 16, 8>}, {transform_indices = @transform_3, window_bounds = array<i64: 1, 8, 16>}, {pipeline_mode = #tpu.pipeline_mode<synchronous>, transform_indices = @transform_4, window_bounds = array<i64: 96, 32>}, {pipeline_mode = #tpu.pipeline_mode<synchronous>, transform_indices = @transform_5, window_bounds = array<i64: 24, 32>}, {pipeline_mode = #tpu.pipeline_mode<synchronous>, transform_indices = @transform_6, window_bounds = array<i64: 9, 32>}, {pipeline_mode = #tpu.pipeline_mode<synchronous>, transform_indices = @transform_7, window_bounds = array<i64: 33, 1024>}, {pipeline_mode = #tpu.pipeline_mode<synchronous>, transform_indices = @transform_8, window_bounds = array<i64: 1024, 32>}, {transform_indices = @transform_9, window_bounds = array<i64: 1, 8, 32>}]} {
    %c0 = arith.constant 0 : index
    %c0_0 = arith.constant 0 : index
    %c0_1 = arith.constant 0 : index
    %0 = vector.load %arg1[%c0, %c0_0, %c0_1] : memref<1x8x32xf32, #tpu.memory_space<vmem>>, vector<1x8x32xf32>
    %1 = vector.shape_cast %0 : vector<1x8x32xf32> to vector<8x32xf32>
    %c0_2 = arith.constant 0 : index
    %c0_3 = arith.constant 0 : index
    %2 = vector.load %arg5[%c0_2, %c0_3] : memref<96x32xf32, #tpu.memory_space<vmem>>, vector<32x32xf32>
    %c32 = arith.constant 32 : index
    %c0_4 = arith.constant 0 : index
    %3 = vector.load %arg5[%c32, %c0_4] : memref<96x32xf32, #tpu.memory_space<vmem>>, vector<32x32xf32>
    %c64 = arith.constant 64 : index
    %c0_5 = arith.constant 0 : index
    %4 = vector.load %arg5[%c64, %c0_5] : memref<96x32xf32, #tpu.memory_space<vmem>>, vector<32x32xf32>
    %c0_6 = arith.constant 0 : index
    %c0_7 = arith.constant 0 : index
    %5 = vector.load %arg6[%c0_6, %c0_7] : memref<24x32xf32, #tpu.memory_space<vmem>>, vector<1x32xf32>
    %c8 = arith.constant 8 : index
    %c0_8 = arith.constant 0 : index
    %6 = vector.load %arg6[%c8, %c0_8] : memref<24x32xf32, #tpu.memory_space<vmem>>, vector<1x32xf32>
    %c16 = arith.constant 16 : index
    %c0_9 = arith.constant 0 : index
    %7 = vector.load %arg6[%c16, %c0_9] : memref<24x32xf32, #tpu.memory_space<vmem>>, vector<1x32xf32>
    %c0_10 = arith.constant 0 : index
    %c0_11 = arith.constant 0 : index
    %8 = vector.load %arg7[%c0_10, %c0_11] : memref<9x32xf32, #tpu.memory_space<vmem>>, vector<8x32xf32>
    %c8_12 = arith.constant 8 : index
    %c0_13 = arith.constant 0 : index
    %9 = vector.load %arg7[%c8_12, %c0_13] : memref<9x32xf32, #tpu.memory_space<vmem>>, vector<1x32xf32>
    %c0_14 = arith.constant 0 : index
    %c0_15 = arith.constant 0 : index
    %10 = vector.load %arg8[%c0_14, %c0_15] : memref<33x1024xf32, #tpu.memory_space<vmem>>, vector<32x1024xf32>
    %c32_16 = arith.constant 32 : index
    %c0_17 = arith.constant 0 : index
    %11 = vector.load %arg8[%c32_16, %c0_17] : memref<33x1024xf32, #tpu.memory_space<vmem>>, vector<1x1024xf32>
    %c0_18 = arith.constant 0 : index
    %c0_19 = arith.constant 0 : index
    %12 = vector.load %arg9[%c0_18, %c0_19] : memref<1024x32xf32, #tpu.memory_space<vmem>>, vector<1024x32xf32>
    %cst = arith.constant dense<0.000000e+00> : vector<8x32xf32>
    %13 = tpu.matmul %1, %2, %cst {dimension_numbers = #tpu.dot_dimension_numbers<[1], [0], [0], [1], [0, 0, 1, 1], [], []>} : vector<8x32xf32>, vector<32x32xf32>, vector<8x32xf32> -> vector<8x32xf32>
    %14 = vector.broadcast %5 : vector<1x32xf32> to vector<8x32xf32>
    %15 = arith.addf %13, %14 : vector<8x32xf32>
    %cst_20 = arith.constant 0.000000e+00 : f32
    %16 = vector.broadcast %cst_20 : f32 to vector<8x32xf32>
    %17 = arith.maximumf %15, %16 : vector<8x32xf32>
    %c0_21 = arith.constant 0 : index
    %c0_22 = arith.constant 0 : index
    %c0_23 = arith.constant 0 : index
    %18 = vector.load %arg2[%c0_21, %c0_22, %c0_23] : memref<1x16x8xf32, #tpu.memory_space<vmem>>, vector<1x16x8xf32>
    %19 = vector.shape_cast %18 : vector<1x16x8xf32> to vector<16x8xf32>
    %cst_24 = arith.constant dense<0.000000e+00> : vector<16x32xf32>
    %20 = tpu.matmul %19, %8, %cst_24 {dimension_numbers = #tpu.dot_dimension_numbers<[1], [0], [0], [1], [0, 0, 1, 1], [], []>} : vector<16x8xf32>, vector<8x32xf32>, vector<16x32xf32> -> vector<16x32xf32>
    %21 = vector.broadcast %9 : vector<1x32xf32> to vector<16x32xf32>
    %22 = arith.addf %20, %21 : vector<16x32xf32>
    %cst_25 = arith.constant 0.000000e+00 : f32
    %23 = vector.broadcast %cst_25 : f32 to vector<16x32xf32>
    %24 = arith.maximumf %22, %23 : vector<16x32xf32>
    %cst_26 = arith.constant dense<0.000000e+00> : vector<16x1024xf32>
    %25 = tpu.matmul %24, %10, %cst_26 {dimension_numbers = #tpu.dot_dimension_numbers<[1], [0], [0], [1], [0, 0, 1, 1], [], []>} : vector<16x32xf32>, vector<32x1024xf32>, vector<16x1024xf32> -> vector<16x1024xf32>
    %26 = vector.broadcast %11 : vector<1x1024xf32> to vector<16x1024xf32>
    %27 = arith.addf %25, %26 : vector<16x1024xf32>
    %c0_27 = arith.constant 0 : index
    %c0_28 = arith.constant 0 : index
    %c0_29 = arith.constant 0 : index
    %28 = vector.load %arg3[%c0_27, %c0_28, %c0_29] : memref<1x16x8xf32, #tpu.memory_space<vmem>>, vector<1x16x8xf32>
    %29 = vector.shape_cast %28 : vector<1x16x8xf32> to vector<16x8xf32>
    %c0_30 = arith.constant 0 : index
    %c0_31 = arith.constant 0 : index
    %c0_32 = arith.constant 0 : index
    %30 = vector.load %arg4[%c0_30, %c0_31, %c0_32] : memref<1x8x16xf32, #tpu.memory_space<vmem>>, vector<1x8x16xf32>
    %31 = vector.shape_cast %30 : vector<1x8x16xf32> to vector<8x16xf32>
    %cst_33 = arith.constant dense<0.000000e+00> : vector<8x32xf32>
    %32 = tpu.matmul %17, %4, %cst_33 {dimension_numbers = #tpu.dot_dimension_numbers<[1], [0], [0], [1], [0, 0, 1, 1], [], []>} : vector<8x32xf32>, vector<32x32xf32>, vector<8x32xf32> -> vector<8x32xf32>
    %33 = vector.broadcast %7 : vector<1x32xf32> to vector<8x32xf32>
    %34 = arith.addf %32, %33 : vector<8x32xf32>
    %cst_34 = arith.constant dense<0.000000e+00> : vector<16x32xf32>
    %35 = tpu.matmul %29, %17, %cst_34 {dimension_numbers = #tpu.dot_dimension_numbers<[1], [0], [0], [1], [0, 0, 1, 1], [], []>} : vector<16x8xf32>, vector<8x32xf32>, vector<16x32xf32> -> vector<16x32xf32>
    %36 = tpu.concatenate %35, %35, %35, %35, %35, %35, %35, %35, %35, %35, %35, %35, %35, %35, %35, %35 in 1 : vector<16x32xf32>, vector<16x32xf32>, vector<16x32xf32>, vector<16x32xf32>, vector<16x32xf32>, vector<16x32xf32>, vector<16x32xf32>, vector<16x32xf32>, vector<16x32xf32>, vector<16x32xf32>, vector<16x32xf32>, vector<16x32xf32>, vector<16x32xf32>, vector<16x32xf32>, vector<16x32xf32>, vector<16x32xf32> -> vector<16x512xf32>
    %37 = tpu.concatenate %35, %35, %35, %35, %35, %35, %35, %35, %35, %35, %35, %35, %35, %35, %35, %35 in 1 : vector<16x32xf32>, vector<16x32xf32>, vector<16x32xf32>, vector<16x32xf32>, vector<16x32xf32>, vector<16x32xf32>, vector<16x32xf32>, vector<16x32xf32>, vector<16x32xf32>, vector<16x32xf32>, vector<16x32xf32>, vector<16x32xf32>, vector<16x32xf32>, vector<16x32xf32>, vector<16x32xf32>, vector<16x32xf32> -> vector<16x512xf32>
    %38 = tpu.concatenate %36, %37 in 1 : vector<16x512xf32>, vector<16x512xf32> -> vector<16x1024xf32>
    %39 = arith.mulf %38, %27 : vector<16x1024xf32>
    %cst_35 = arith.constant dense<0.000000e+00> : vector<16x32xf32>
    %40 = tpu.matmul %39, %12, %cst_35 {dimension_numbers = #tpu.dot_dimension_numbers<[1], [0], [0], [1], [0, 0, 1, 1], [], []>} : vector<16x1024xf32>, vector<1024x32xf32>, vector<16x32xf32> -> vector<16x32xf32>
    %cst_36 = arith.constant dense<0.000000e+00> : vector<8x32xf32>
    %41 = tpu.matmul %31, %40, %cst_36 {dimension_numbers = #tpu.dot_dimension_numbers<[1], [0], [0], [1], [0, 0, 1, 1], [], []>} : vector<8x16xf32>, vector<16x32xf32>, vector<8x32xf32> -> vector<8x32xf32>
    %42 = arith.addf %41, %17 : vector<8x32xf32>
    %43 = vector.broadcast %6 : vector<1x32xf32> to vector<8x32xf32>
    %44 = arith.addf %42, %43 : vector<8x32xf32>
    %cst_37 = arith.constant 0.000000e+00 : f32
    %45 = vector.broadcast %cst_37 : f32 to vector<8x32xf32>
    %46 = arith.maximumf %44, %45 : vector<8x32xf32>
    %cst_38 = arith.constant dense<0.000000e+00> : vector<8x32xf32>
    %47 = tpu.matmul %46, %3, %cst_38 {dimension_numbers = #tpu.dot_dimension_numbers<[1], [0], [0], [1], [0, 0, 1, 1], [], []>} : vector<8x32xf32>, vector<32x32xf32>, vector<8x32xf32> -> vector<8x32xf32>
    %48 = arith.addf %47, %34 : vector<8x32xf32>
    %cst_39 = arith.constant dense<0.000000e+00> : vector<8x32xf32>
    %49 = tpu.matmul %48, %4, %cst_39 {dimension_numbers = #tpu.dot_dimension_numbers<[1], [0], [0], [1], [0, 0, 1, 1], [], []>} : vector<8x32xf32>, vector<32x32xf32>, vector<8x32xf32> -> vector<8x32xf32>
    %50 = vector.broadcast %7 : vector<1x32xf32> to vector<8x32xf32>
    %51 = arith.addf %49, %50 : vector<8x32xf32>
    %cst_40 = arith.constant dense<0.000000e+00> : vector<16x32xf32>
    %52 = tpu.matmul %29, %48, %cst_40 {dimension_numbers = #tpu.dot_dimension_numbers<[1], [0], [0], [1], [0, 0, 1, 1], [], []>} : vector<16x8xf32>, vector<8x32xf32>, vector<16x32xf32> -> vector<16x32xf32>
    %53 = tpu.concatenate %52, %52, %52, %52, %52, %52, %52, %52, %52, %52, %52, %52, %52, %52, %52, %52 in 1 : vector<16x32xf32>, vector<16x32xf32>, vector<16x32xf32>, vector<16x32xf32>, vector<16x32xf32>, vector<16x32xf32>, vector<16x32xf32>, vector<16x32xf32>, vector<16x32xf32>, vector<16x32xf32>, vector<16x32xf32>, vector<16x32xf32>, vector<16x32xf32>, vector<16x32xf32>, vector<16x32xf32>, vector<16x32xf32> -> vector<16x512xf32>
    %54 = tpu.concatenate %52, %52, %52, %52, %52, %52, %52, %52, %52, %52, %52, %52, %52, %52, %52, %52 in 1 : vector<16x32xf32>, vector<16x32xf32>, vector<16x32xf32>, vector<16x32xf32>, vector<16x32xf32>, vector<16x32xf32>, vector<16x32xf32>, vector<16x32xf32>, vector<16x32xf32>, vector<16x32xf32>, vector<16x32xf32>, vector<16x32xf32>, vector<16x32xf32>, vector<16x32xf32>, vector<16x32xf32>, vector<16x32xf32> -> vector<16x512xf32>
    %55 = tpu.concatenate %53, %54 in 1 : vector<16x512xf32>, vector<16x512xf32> -> vector<16x1024xf32>
    %56 = arith.mulf %55, %27 : vector<16x1024xf32>
    %cst_41 = arith.constant dense<0.000000e+00> : vector<16x32xf32>
    %57 = tpu.matmul %56, %12, %cst_41 {dimension_numbers = #tpu.dot_dimension_numbers<[1], [0], [0], [1], [0, 0, 1, 1], [], []>} : vector<16x1024xf32>, vector<1024x32xf32>, vector<16x32xf32> -> vector<16x32xf32>
    %cst_42 = arith.constant dense<0.000000e+00> : vector<8x32xf32>
    %58 = tpu.matmul %31, %57, %cst_42 {dimension_numbers = #tpu.dot_dimension_numbers<[1], [0], [0], [1], [0, 0, 1, 1], [], []>} : vector<8x16xf32>, vector<16x32xf32>, vector<8x32xf32> -> vector<8x32xf32>
    %59 = arith.addf %58, %48 : vector<8x32xf32>
    %60 = vector.broadcast %6 : vector<1x32xf32> to vector<8x32xf32>
    %61 = arith.addf %59, %60 : vector<8x32xf32>
    %cst_43 = arith.constant 0.000000e+00 : f32
    %62 = vector.broadcast %cst_43 : f32 to vector<8x32xf32>
    %63 = arith.maximumf %61, %62 : vector<8x32xf32>
    %cst_44 = arith.constant dense<0.000000e+00> : vector<8x32xf32>
    %64 = tpu.matmul %63, %3, %cst_44 {dimension_numbers = #tpu.dot_dimension_numbers<[1], [0], [0], [1], [0, 0, 1, 1], [], []>} : vector<8x32xf32>, vector<32x32xf32>, vector<8x32xf32> -> vector<8x32xf32>
    %65 = arith.addf %64, %51 : vector<8x32xf32>
    %cst_45 = arith.constant dense<0.000000e+00> : vector<8x32xf32>
    %66 = tpu.matmul %65, %4, %cst_45 {dimension_numbers = #tpu.dot_dimension_numbers<[1], [0], [0], [1], [0, 0, 1, 1], [], []>} : vector<8x32xf32>, vector<32x32xf32>, vector<8x32xf32> -> vector<8x32xf32>
    %67 = vector.broadcast %7 : vector<1x32xf32> to vector<8x32xf32>
    %68 = arith.addf %66, %67 : vector<8x32xf32>
    %cst_46 = arith.constant dense<0.000000e+00> : vector<16x32xf32>
    %69 = tpu.matmul %29, %65, %cst_46 {dimension_numbers = #tpu.dot_dimension_numbers<[1], [0], [0], [1], [0, 0, 1, 1], [], []>} : vector<16x8xf32>, vector<8x32xf32>, vector<16x32xf32> -> vector<16x32xf32>
    %70 = tpu.concatenate %69, %69, %69, %69, %69, %69, %69, %69, %69, %69, %69, %69, %69, %69, %69, %69 in 1 : vector<16x32xf32>, vector<16x32xf32>, vector<16x32xf32>, vector<16x32xf32>, vector<16x32xf32>, vector<16x32xf32>, vector<16x32xf32>, vector<16x32xf32>, vector<16x32xf32>, vector<16x32xf32>, vector<16x32xf32>, vector<16x32xf32>, vector<16x32xf32>, vector<16x32xf32>, vector<16x32xf32>, vector<16x32xf32> -> vector<16x512xf32>
    %71 = tpu.concatenate %69, %69, %69, %69, %69, %69, %69, %69, %69, %69, %69, %69, %69, %69, %69, %69 in 1 : vector<16x32xf32>, vector<16x32xf32>, vector<16x32xf32>, vector<16x32xf32>, vector<16x32xf32>, vector<16x32xf32>, vector<16x32xf32>, vector<16x32xf32>, vector<16x32xf32>, vector<16x32xf32>, vector<16x32xf32>, vector<16x32xf32>, vector<16x32xf32>, vector<16x32xf32>, vector<16x32xf32>, vector<16x32xf32> -> vector<16x512xf32>
    %72 = tpu.concatenate %70, %71 in 1 : vector<16x512xf32>, vector<16x512xf32> -> vector<16x1024xf32>
    %73 = arith.mulf %72, %27 : vector<16x1024xf32>
    %cst_47 = arith.constant dense<0.000000e+00> : vector<16x32xf32>
    %74 = tpu.matmul %73, %12, %cst_47 {dimension_numbers = #tpu.dot_dimension_numbers<[1], [0], [0], [1], [0, 0, 1, 1], [], []>} : vector<16x1024xf32>, vector<1024x32xf32>, vector<16x32xf32> -> vector<16x32xf32>
    %cst_48 = arith.constant dense<0.000000e+00> : vector<8x32xf32>
    %75 = tpu.matmul %31, %74, %cst_48 {dimension_numbers = #tpu.dot_dimension_numbers<[1], [0], [0], [1], [0, 0, 1, 1], [], []>} : vector<8x16xf32>, vector<16x32xf32>, vector<8x32xf32> -> vector<8x32xf32>
    %76 = arith.addf %75, %65 : vector<8x32xf32>
    %77 = vector.broadcast %6 : vector<1x32xf32> to vector<8x32xf32>
    %78 = arith.addf %76, %77 : vector<8x32xf32>
    %cst_49 = arith.constant 0.000000e+00 : f32
    %79 = vector.broadcast %cst_49 : f32 to vector<8x32xf32>
    %80 = arith.maximumf %78, %79 : vector<8x32xf32>
    %cst_50 = arith.constant dense<0.000000e+00> : vector<8x32xf32>
    %81 = tpu.matmul %80, %3, %cst_50 {dimension_numbers = #tpu.dot_dimension_numbers<[1], [0], [0], [1], [0, 0, 1, 1], [], []>} : vector<8x32xf32>, vector<32x32xf32>, vector<8x32xf32> -> vector<8x32xf32>
    %82 = arith.addf %81, %68 : vector<8x32xf32>
    %cst_51 = arith.constant dense<0.000000e+00> : vector<8x32xf32>
    %83 = tpu.matmul %82, %4, %cst_51 {dimension_numbers = #tpu.dot_dimension_numbers<[1], [0], [0], [1], [0, 0, 1, 1], [], []>} : vector<8x32xf32>, vector<32x32xf32>, vector<8x32xf32> -> vector<8x32xf32>
    %84 = vector.broadcast %7 : vector<1x32xf32> to vector<8x32xf32>
    %85 = arith.addf %83, %84 : vector<8x32xf32>
    %cst_52 = arith.constant dense<0.000000e+00> : vector<16x32xf32>
    %86 = tpu.matmul %29, %82, %cst_52 {dimension_numbers = #tpu.dot_dimension_numbers<[1], [0], [0], [1], [0, 0, 1, 1], [], []>} : vector<16x8xf32>, vector<8x32xf32>, vector<16x32xf32> -> vector<16x32xf32>
    %87 = tpu.concatenate %86, %86, %86, %86, %86, %86, %86, %86, %86, %86, %86, %86, %86, %86, %86, %86 in 1 : vector<16x32xf32>, vector<16x32xf32>, vector<16x32xf32>, vector<16x32xf32>, vector<16x32xf32>, vector<16x32xf32>, vector<16x32xf32>, vector<16x32xf32>, vector<16x32xf32>, vector<16x32xf32>, vector<16x32xf32>, vector<16x32xf32>, vector<16x32xf32>, vector<16x32xf32>, vector<16x32xf32>, vector<16x32xf32> -> vector<16x512xf32>
    %88 = tpu.concatenate %86, %86, %86, %86, %86, %86, %86, %86, %86, %86, %86, %86, %86, %86, %86, %86 in 1 : vector<16x32xf32>, vector<16x32xf32>, vector<16x32xf32>, vector<16x32xf32>, vector<16x32xf32>, vector<16x32xf32>, vector<16x32xf32>, vector<16x32xf32>, vector<16x32xf32>, vector<16x32xf32>, vector<16x32xf32>, vector<16x32xf32>, vector<16x32xf32>, vector<16x32xf32>, vector<16x32xf32>, vector<16x32xf32> -> vector<16x512xf32>
    %89 = tpu.concatenate %87, %88 in 1 : vector<16x512xf32>, vector<16x512xf32> -> vector<16x1024xf32>
    %90 = arith.mulf %89, %27 : vector<16x1024xf32>
    %cst_53 = arith.constant dense<0.000000e+00> : vector<16x32xf32>
    %91 = tpu.matmul %90, %12, %cst_53 {dimension_numbers = #tpu.dot_dimension_numbers<[1], [0], [0], [1], [0, 0, 1, 1], [], []>} : vector<16x1024xf32>, vector<1024x32xf32>, vector<16x32xf32> -> vector<16x32xf32>
    %cst_54 = arith.constant dense<0.000000e+00> : vector<8x32xf32>
    %92 = tpu.matmul %31, %91, %cst_54 {dimension_numbers = #tpu.dot_dimension_numbers<[1], [0], [0], [1], [0, 0, 1, 1], [], []>} : vector<8x16xf32>, vector<16x32xf32>, vector<8x32xf32> -> vector<8x32xf32>
    %93 = arith.addf %92, %82 : vector<8x32xf32>
    %94 = vector.broadcast %6 : vector<1x32xf32> to vector<8x32xf32>
    %95 = arith.addf %93, %94 : vector<8x32xf32>
    %cst_55 = arith.constant 0.000000e+00 : f32
    %96 = vector.broadcast %cst_55 : f32 to vector<8x32xf32>
    %97 = arith.maximumf %95, %96 : vector<8x32xf32>
    %cst_56 = arith.constant dense<0.000000e+00> : vector<8x32xf32>
    %98 = tpu.matmul %97, %3, %cst_56 {dimension_numbers = #tpu.dot_dimension_numbers<[1], [0], [0], [1], [0, 0, 1, 1], [], []>} : vector<8x32xf32>, vector<32x32xf32>, vector<8x32xf32> -> vector<8x32xf32>
    %99 = arith.addf %98, %85 : vector<8x32xf32>
    %cst_57 = arith.constant dense<0.000000e+00> : vector<8x32xf32>
    %100 = tpu.matmul %99, %4, %cst_57 {dimension_numbers = #tpu.dot_dimension_numbers<[1], [0], [0], [1], [0, 0, 1, 1], [], []>} : vector<8x32xf32>, vector<32x32xf32>, vector<8x32xf32> -> vector<8x32xf32>
    %101 = vector.broadcast %7 : vector<1x32xf32> to vector<8x32xf32>
    %102 = arith.addf %100, %101 : vector<8x32xf32>
    %cst_58 = arith.constant dense<0.000000e+00> : vector<16x32xf32>
    %103 = tpu.matmul %29, %99, %cst_58 {dimension_numbers = #tpu.dot_dimension_numbers<[1], [0], [0], [1], [0, 0, 1, 1], [], []>} : vector<16x8xf32>, vector<8x32xf32>, vector<16x32xf32> -> vector<16x32xf32>
    %104 = tpu.concatenate %103, %103, %103, %103, %103, %103, %103, %103, %103, %103, %103, %103, %103, %103, %103, %103 in 1 : vector<16x32xf32>, vector<16x32xf32>, vector<16x32xf32>, vector<16x32xf32>, vector<16x32xf32>, vector<16x32xf32>, vector<16x32xf32>, vector<16x32xf32>, vector<16x32xf32>, vector<16x32xf32>, vector<16x32xf32>, vector<16x32xf32>, vector<16x32xf32>, vector<16x32xf32>, vector<16x32xf32>, vector<16x32xf32> -> vector<16x512xf32>
    %105 = tpu.concatenate %103, %103, %103, %103, %103, %103, %103, %103, %103, %103, %103, %103, %103, %103, %103, %103 in 1 : vector<16x32xf32>, vector<16x32xf32>, vector<16x32xf32>, vector<16x32xf32>, vector<16x32xf32>, vector<16x32xf32>, vector<16x32xf32>, vector<16x32xf32>, vector<16x32xf32>, vector<16x32xf32>, vector<16x32xf32>, vector<16x32xf32>, vector<16x32xf32>, vector<16x32xf32>, vector<16x32xf32>, vector<16x32xf32> -> vector<16x512xf32>
    %106 = tpu.concatenate %104, %105 in 1 : vector<16x512xf32>, vector<16x512xf32> -> vector<16x1024xf32>
    %107 = arith.mulf %106, %27 : vector<16x1024xf32>
    %cst_59 = arith.constant dense<0.000000e+00> : vector<16x32xf32>
    %108 = tpu.matmul %107, %12, %cst_59 {dimension_numbers = #tpu.dot_dimension_numbers<[1], [0], [0], [1], [0, 0, 1, 1], [], []>} : vector<16x1024xf32>, vector<1024x32xf32>, vector<16x32xf32> -> vector<16x32xf32>
    %cst_60 = arith.constant dense<0.000000e+00> : vector<8x32xf32>
    %109 = tpu.matmul %31, %108, %cst_60 {dimension_numbers = #tpu.dot_dimension_numbers<[1], [0], [0], [1], [0, 0, 1, 1], [], []>} : vector<8x16xf32>, vector<16x32xf32>, vector<8x32xf32> -> vector<8x32xf32>
    %110 = arith.addf %109, %99 : vector<8x32xf32>
    %111 = vector.broadcast %6 : vector<1x32xf32> to vector<8x32xf32>
    %112 = arith.addf %110, %111 : vector<8x32xf32>
    %cst_61 = arith.constant 0.000000e+00 : f32
    %113 = vector.broadcast %cst_61 : f32 to vector<8x32xf32>
    %114 = arith.maximumf %112, %113 : vector<8x32xf32>
    %cst_62 = arith.constant dense<0.000000e+00> : vector<8x32xf32>
    %115 = tpu.matmul %114, %3, %cst_62 {dimension_numbers = #tpu.dot_dimension_numbers<[1], [0], [0], [1], [0, 0, 1, 1], [], []>} : vector<8x32xf32>, vector<32x32xf32>, vector<8x32xf32> -> vector<8x32xf32>
    %116 = arith.addf %115, %102 : vector<8x32xf32>
    %cst_63 = arith.constant dense<0.000000e+00> : vector<8x32xf32>
    %117 = tpu.matmul %116, %4, %cst_63 {dimension_numbers = #tpu.dot_dimension_numbers<[1], [0], [0], [1], [0, 0, 1, 1], [], []>} : vector<8x32xf32>, vector<32x32xf32>, vector<8x32xf32> -> vector<8x32xf32>
    %118 = vector.broadcast %7 : vector<1x32xf32> to vector<8x32xf32>
    %119 = arith.addf %117, %118 : vector<8x32xf32>
    %cst_64 = arith.constant dense<0.000000e+00> : vector<16x32xf32>
    %120 = tpu.matmul %29, %116, %cst_64 {dimension_numbers = #tpu.dot_dimension_numbers<[1], [0], [0], [1], [0, 0, 1, 1], [], []>} : vector<16x8xf32>, vector<8x32xf32>, vector<16x32xf32> -> vector<16x32xf32>
    %121 = tpu.concatenate %120, %120, %120, %120, %120, %120, %120, %120, %120, %120, %120, %120, %120, %120, %120, %120 in 1 : vector<16x32xf32>, vector<16x32xf32>, vector<16x32xf32>, vector<16x32xf32>, vector<16x32xf32>, vector<16x32xf32>, vector<16x32xf32>, vector<16x32xf32>, vector<16x32xf32>, vector<16x32xf32>, vector<16x32xf32>, vector<16x32xf32>, vector<16x32xf32>, vector<16x32xf32>, vector<16x32xf32>, vector<16x32xf32> -> vector<16x512xf32>
    %122 = tpu.concatenate %120, %120, %120, %120, %120, %120, %120, %120, %120, %120, %120, %120, %120, %120, %120, %120 in 1 : vector<16x32xf32>, vector<16x32xf32>, vector<16x32xf32>, vector<16x32xf32>, vector<16x32xf32>, vector<16x32xf32>, vector<16x32xf32>, vector<16x32xf32>, vector<16x32xf32>, vector<16x32xf32>, vector<16x32xf32>, vector<16x32xf32>, vector<16x32xf32>, vector<16x32xf32>, vector<16x32xf32>, vector<16x32xf32> -> vector<16x512xf32>
    %123 = tpu.concatenate %121, %122 in 1 : vector<16x512xf32>, vector<16x512xf32> -> vector<16x1024xf32>
    %124 = arith.mulf %123, %27 : vector<16x1024xf32>
    %cst_65 = arith.constant dense<0.000000e+00> : vector<16x32xf32>
    %125 = tpu.matmul %124, %12, %cst_65 {dimension_numbers = #tpu.dot_dimension_numbers<[1], [0], [0], [1], [0, 0, 1, 1], [], []>} : vector<16x1024xf32>, vector<1024x32xf32>, vector<16x32xf32> -> vector<16x32xf32>
    %cst_66 = arith.constant dense<0.000000e+00> : vector<8x32xf32>
    %126 = tpu.matmul %31, %125, %cst_66 {dimension_numbers = #tpu.dot_dimension_numbers<[1], [0], [0], [1], [0, 0, 1, 1], [], []>} : vector<8x16xf32>, vector<16x32xf32>, vector<8x32xf32> -> vector<8x32xf32>
    %127 = arith.addf %126, %116 : vector<8x32xf32>
    %128 = vector.broadcast %6 : vector<1x32xf32> to vector<8x32xf32>
    %129 = arith.addf %127, %128 : vector<8x32xf32>
    %cst_67 = arith.constant 0.000000e+00 : f32
    %130 = vector.broadcast %cst_67 : f32 to vector<8x32xf32>
    %131 = arith.maximumf %129, %130 : vector<8x32xf32>
    %cst_68 = arith.constant dense<0.000000e+00> : vector<8x32xf32>
    %132 = tpu.matmul %131, %3, %cst_68 {dimension_numbers = #tpu.dot_dimension_numbers<[1], [0], [0], [1], [0, 0, 1, 1], [], []>} : vector<8x32xf32>, vector<32x32xf32>, vector<8x32xf32> -> vector<8x32xf32>
    %133 = arith.addf %132, %119 : vector<8x32xf32>
    %134 = arith.addf %133, %1 : vector<8x32xf32>
    %c0_69 = arith.constant 0 : index
    %c0_70 = arith.constant 0 : index
    %c0_71 = arith.constant 0 : index
    %135 = vector.load %arg10[%c0_69, %c0_70, %c0_71] : memref<1x8x32xf32, #tpu.memory_space<vmem>>, vector<1x8x32xf32>
    %136 = vector.shape_cast %135 : vector<1x8x32xf32> to vector<8x32xf32>
    %137 = vector.shape_cast %134 : vector<8x32xf32> to vector<1x8x32xf32>
    tpu.vector_store %arg10[%c0_69, %c0_70, %c0_71], %137 {strides = array<i32>} : memref<1x8x32xf32, #tpu.memory_space<vmem>>, vector<1x8x32xf32>,
    return
  }
  func.func @transform_0(%arg0: i32) -> (i32, i32, i32) {
    %c0_i32 = arith.constant 0 : i32
    %c0_i32_0 = arith.constant 0 : i32
    %c0_i32_1 = arith.constant 0 : i32
    return %arg0, %c0_i32, %c0_i32_0 : i32, i32, i32
  }
  func.func @transform_1(%arg0: i32) -> (i32, i32, i32) {
    %c0_i32 = arith.constant 0 : i32
    %c0_i32_0 = arith.constant 0 : i32
    %c0_i32_1 = arith.constant 0 : i32
    return %arg0, %c0_i32, %c0_i32_0 : i32, i32, i32
  }
  func.func @transform_2(%arg0: i32) -> (i32, i32, i32) {
    %c0_i32 = arith.constant 0 : i32
    %c0_i32_0 = arith.constant 0 : i32
    %c0_i32_1 = arith.constant 0 : i32
    return %arg0, %c0_i32, %c0_i32_0 : i32, i32, i32
  }
  func.func @transform_3(%arg0: i32) -> (i32, i32, i32) {
    %c0_i32 = arith.constant 0 : i32
    %c0_i32_0 = arith.constant 0 : i32
    %c0_i32_1 = arith.constant 0 : i32
    return %arg0, %c0_i32, %c0_i32_0 : i32, i32, i32
  }
  func.func @transform_4(%arg0: i32) -> (i32, i32) {
    %c0_i32 = arith.constant 0 : i32
    %c0_i32_0 = arith.constant 0 : i32
    %c0_i32_1 = arith.constant 0 : i32
    return %c0_i32, %c0_i32_0 : i32, i32
  }
  func.func @transform_5(%arg0: i32) -> (i32, i32) {
    %c0_i32 = arith.constant 0 : i32
    %c0_i32_0 = arith.constant 0 : i32
    %c0_i32_1 = arith.constant 0 : i32
    return %c0_i32, %c0_i32_0 : i32, i32
  }
  func.func @transform_6(%arg0: i32) -> (i32, i32) {
    %c0_i32 = arith.constant 0 : i32
    %c0_i32_0 = arith.constant 0 : i32
    %c0_i32_1 = arith.constant 0 : i32
    return %c0_i32, %c0_i32_0 : i32, i32
  }
  func.func @transform_7(%arg0: i32) -> (i32, i32) {
    %c0_i32 = arith.constant 0 : i32
    %c0_i32_0 = arith.constant 0 : i32
    %c0_i32_1 = arith.constant 0 : i32
    return %c0_i32, %c0_i32_0 : i32, i32
  }
  func.func @transform_8(%arg0: i32) -> (i32, i32) {
    %c0_i32 = arith.constant 0 : i32
    %c0_i32_0 = arith.constant 0 : i32
    %c0_i32_1 = arith.constant 0 : i32
    return %c0_i32, %c0_i32_0 : i32, i32
  }
  func.func @transform_9(%arg0: i32) -> (i32, i32, i32) {
    %c0_i32 = arith.constant 0 : i32
    %c0_i32_0 = arith.constant 0 : i32
    %c0_i32_1 = arith.constant 0 : i32
    return %arg0, %c0_i32, %c0_i32_0 : i32, i32, i32
  }
}

</mosaic_0001>

<llo_original>
// kernel: tpu_custom_call.1
$region0: #{tpu_custom_call.1}
  #allocation0 [shape = 'u32[]', space=smem, size = 0x4, offset = 0x4, fixed_abs, tag = 'smem constant byte address 0x4 - core index']
  #allocation1 [shape = 'u32[144,128]{1,0:T(1,128)}', space=vmem, size = 0x12000, scoped, tag = 'internal scratch']
  %s0 = inlined_call_operand.vmem [shape: f32[4,8,32], index: 0, kind: input, shape index: {}]
  %s1 = inlined_call_operand.vmem [shape: f32[4,16,8], index: 1, kind: input, shape index: {}]
  %s2 = inlined_call_operand.vmem [shape: f32[4,16,8], index: 2, kind: input, shape index: {}]
  %s3 = inlined_call_operand.vmem [shape: f32[4,8,16], index: 3, kind: input, shape index: {}]
  %s4 = inlined_call_operand.vmem [shape: f32[96,32], index: 4, kind: input, shape index: {}]
  %s5 = inlined_call_operand.vmem [shape: f32[24,32], index: 5, kind: input, shape index: {}]
  %s6 = inlined_call_operand.vmem [shape: f32[9,32], index: 6, kind: input, shape index: {}]
  %s7 = inlined_call_operand.vmem [shape: f32[33,1024], index: 7, kind: input, shape index: {}]
  %s8 = inlined_call_operand.vmem [shape: f32[1024,32], index: 8, kind: input, shape index: {}]
  %s9 = inlined_call_operand.hbm [shape: f32[4,8,32], index: 9, kind: output, shape index: {}]
  %s10 = sld [smem:[#allocation0]]
  $region69: #{tpu_custom_call.1} parent=0
    _
  %s12 = ssub.s32 1, %s10
  %s13 = scalar_select 0, %s12, %s10
  $region1: #{tpu_custom_call.1} parent=0
    #allocation2 [shape = 'u8[8192]{0}', space=vmem, size = 0x2000, scoped, tag = 'output window, operand 0']
    #allocation3 [shape = 's32[2]{0}', space=sflag, size = 0x8, scoped, tag = 'scoped memory for tpu_custom_call.1']
    %14 = vsyncpa [#allocation3], 0
    %s15 = scalar_lea.sflag [#allocation3], 1
    %16 = vsyncpa %s15, 0
    loop: start=0, step=1, limit=6
    $region2: #{tpu_custom_call.1} parent=1 // loop_pre_header
      _
    $region3: #{tpu_custom_call.1} parent=1 // loop_header
      %s18 = sphi 0, %s22
      %p19 = scmp.ge.s32.totalorder %s18, 6
      %s28 = sphi 0, %s30
      %s31 = sphi 0, %s28
      %s32 = sphi 0, %s31
      %s48 = sphi 0, %s32
      %s54 = sphi 0, %s56
      %s57 = sphi 0, %s54
      %s58 = sphi 0, %s57
      %s74 = sphi 0, %s58
      %s80 = sphi 0, %s82
      %s83 = sphi 0, %s80
      %s84 = sphi 0, %s83
      %s100 = sphi 0, %s84
      %s106 = sphi 0, %s108
      %s109 = sphi 0, %s106
      %s110 = sphi 0, %s109
      %s126 = sphi 0, %s110
      %s130 = sphi 0, %s130
      %s132 = sphi 0, %s130
      %s133 = sphi 0, %s132
      %s147 = sphi 0, %s133
      %s151 = sphi 0, %s151
      %s153 = sphi 0, %s151
      %s154 = sphi 0, %s153
      %s168 = sphi 0, %s154
      %s172 = sphi 0, %s172
      %s174 = sphi 0, %s172
      %s175 = sphi 0, %s174
      %s189 = sphi 0, %s175
      %s193 = sphi 0, %s193
      %s195 = sphi 0, %s193
      %s196 = sphi 0, %s195
      %s210 = sphi 0, %s196
      %s214 = sphi 0, %s214
      %s216 = sphi 0, %s214
      %s217 = sphi 0, %s216
      %s231 = sphi 0, %s217
      %s237 = sphi 0, %s239
      %s240 = sphi 0, %s237
      %s241 = sphi 0, %s240
      %s257 = sphi 0, %s241
    $region4: #{tpu_custom_call.1} parent=1 // loop_header_branch
      %21 = sbr.rel (%p19) target = $region8
    $region5: #{tpu_custom_call.1} parent=1 // loop_body
      %s23 = ssub.s32 %s18, 1
      %s24 = ssub.s32 %s18, 2
      %s25 = sadd.s32 %s18, 1
      %s26 = ssub.s32 %s18, %s25
      %p27 = scmp.eq.s32.totalorder %s26, 0
      %s29 = sadd.s32 %s28, 1
      %s30 = scalar_select %p27, %s28, %s29
      %p33 = pneg %p27
      %p34 = scmp.eq.s32.totalorder %s18, 3
      %p35 = por %p33, %p34
      %p36 = scmp.ne.s32.totalorder %s28, %s31
      %p37 = scmp.eq.s32.totalorder %s18, 0
      %p38 = por %p36, %p37
      %p39 = scmp.ne.s32.totalorder %s28, %s31
      %p40 = scmp.eq.s32.totalorder %s23, 3
      %p41 = por %p39, %p40
      %p42 = scmp.ne.s32.totalorder %s31, %s32
      %p43 = scmp.eq.s32.totalorder %s23, 0
      %p44 = por %p42, %p43
      %p45 = scmp.ne.s32.totalorder %s31, %s32
      %p46 = scmp.eq.s32.totalorder %s24, 3
      %p47 = por %p45, %p46
      %p49 = scmp.ne.s32.totalorder %s32, %s48
      %p50 = scmp.eq.s32.totalorder %s24, 0
      %p51 = por %p49, %p50
      %s52 = ssub.s32 %s18, %s25
      %p53 = scmp.eq.s32.totalorder %s52, 0
      %s55 = sadd.s32 %s54, 1
      %s56 = scalar_select %p53, %s54, %s55
      %p59 = pneg %p53
      %p60 = scmp.eq.s32.totalorder %s18, 3
      %p61 = por %p59, %p60
      %p62 = scmp.ne.s32.totalorder %s54, %s57
      %p63 = scmp.eq.s32.totalorder %s18, 0
      %p64 = por %p62, %p63
      %p65 = scmp.ne.s32.totalorder %s54, %s57
      %p66 = scmp.eq.s32.totalorder %s23, 3
      %p67 = por %p65, %p66
      %p68 = scmp.ne.s32.totalorder %s57, %s58
      %p69 = scmp.eq.s32.totalorder %s23, 0
      %p70 = por %p68, %p69
      %p71 = scmp.ne.s32.totalorder %s57, %s58
      %p72 = scmp.eq.s32.totalorder %s24, 3
      %p73 = por %p71, %p72
      %p75 = scmp.ne.s32.totalorder %s58, %s74
      %p76 = scmp.eq.s32.totalorder %s24, 0
      %p77 = por %p75, %p76
      %s78 = ssub.s32 %s18, %s25
      %p79 = scmp.eq.s32.totalorder %s78, 0
      %s81 = sadd.s32 %s80, 1
      %s82 = scalar_select %p79, %s80, %s81
      %p85 = pneg %p79
      %p86 = scmp.eq.s32.totalorder %s18, 3
      %p87 = por %p85, %p86
      %p88 = scmp.ne.s32.totalorder %s80, %s83
      %p89 = scmp.eq.s32.totalorder %s18, 0
      %p90 = por %p88, %p89
      %p91 = scmp.ne.s32.totalorder %s80, %s83
      %p92 = scmp.eq.s32.totalorder %s23, 3
      %p93 = por %p91, %p92
      %p94 = scmp.ne.s32.totalorder %s83, %s84
      %p95 = scmp.eq.s32.totalorder %s23, 0
      %p96 = por %p94, %p95
      %p97 = scmp.ne.s32.totalorder %s83, %s84
      %p98 = scmp.eq.s32.totalorder %s24, 3
      %p99 = por %p97, %p98
      %p101 = scmp.ne.s32.totalorder %s84, %s100
      %p102 = scmp.eq.s32.totalorder %s24, 0
      %p103 = por %p101, %p102
      %s104 = ssub.s32 %s18, %s25
      %p105 = scmp.eq.s32.totalorder %s104, 0
      %s107 = sadd.s32 %s106, 1
      %s108 = scalar_select %p105, %s106, %s107
      %p111 = pneg %p105
      %p112 = scmp.eq.s32.totalorder %s18, 3
      %p113 = por %p111, %p112
      %p114 = scmp.ne.s32.totalorder %s106, %s109
      %p115 = scmp.eq.s32.totalorder %s18, 0
      %p116 = por %p114, %p115
      %p117 = scmp.ne.s32.totalorder %s106, %s109
      %p118 = scmp.eq.s32.totalorder %s23, 3
      %p119 = por %p117, %p118
      %p120 = scmp.ne.s32.totalorder %s109, %s110
      %p121 = scmp.eq.s32.totalorder %s23, 0
      %p122 = por %p120, %p121
      %p123 = scmp.ne.s32.totalorder %s109, %s110
      %p124 = scmp.eq.s32.totalorder %s24, 3
      %p125 = por %p123, %p124
      %p127 = scmp.ne.s32.totalorder %s110, %s126
      %p128 = scmp.eq.s32.totalorder %s24, 0
      %p129 = por %p127, %p128
      %s131 = sadd.s32 %s130, 1
      %p134 = scmp.eq.s32.totalorder %s18, 3
      %p135 = scmp.ne.s32.totalorder %s130, %s132
      %p136 = scmp.eq.s32.totalorder %s18, 0
      %p137 = por %p135, %p136
      %p138 = scmp.ne.s32.totalorder %s130, %s132
      %p139 = scmp.eq.s32.totalorder %s23, 3
      %p140 = por %p138, %p139
      %p141 = scmp.ne.s32.totalorder %s132, %s133
      %p142 = scmp.eq.s32.totalorder %s23, 0
      %p143 = por %p141, %p142
      %p144 = scmp.ne.s32.totalorder %s132, %s133
      %p145 = scmp.eq.s32.totalorder %s24, 3
      %p146 = por %p144, %p145
      %p148 = scmp.ne.s32.totalorder %s133, %s147
      %p149 = scmp.eq.s32.totalorder %s24, 0
      %p150 = por %p148, %p149
      %s152 = sadd.s32 %s151, 1
      %p155 = scmp.eq.s32.totalorder %s18, 3
      %p156 = scmp.ne.s32.totalorder %s151, %s153
      %p157 = scmp.eq.s32.totalorder %s18, 0
      %p158 = por %p156, %p157
      %p159 = scmp.ne.s32.totalorder %s151, %s153
      %p160 = scmp.eq.s32.totalorder %s23, 3
      %p161 = por %p159, %p160
      %p162 = scmp.ne.s32.totalorder %s153, %s154
      %p163 = scmp.eq.s32.totalorder %s23, 0
      %p164 = por %p162, %p163
      %p165 = scmp.ne.s32.totalorder %s153, %s154
      %p166 = scmp.eq.s32.totalorder %s24, 3
      %p167 = por %p165, %p166
      %p169 = scmp.ne.s32.totalorder %s154, %s168
      %p170 = scmp.eq.s32.totalorder %s24, 0
      %p171 = por %p169, %p170
      %s173 = sadd.s32 %s172, 1
      %p176 = scmp.eq.s32.totalorder %s18, 3
      %p177 = scmp.ne.s32.totalorder %s172, %s174
      %p178 = scmp.eq.s32.totalorder %s18, 0
      %p179 = por %p177, %p178
      %p180 = scmp.ne.s32.totalorder %s172, %s174
      %p181 = scmp.eq.s32.totalorder %s23, 3
      %p182 = por %p180, %p181
      %p183 = scmp.ne.s32.totalorder %s174, %s175
      %p184 = scmp.eq.s32.totalorder %s23, 0
      %p185 = por %p183, %p184
      %p186 = scmp.ne.s32.totalorder %s174, %s175
      %p187 = scmp.eq.s32.totalorder %s24, 3
      %p188 = por %p186, %p187
      %p190 = scmp.ne.s32.totalorder %s175, %s189
      %p191 = scmp.eq.s32.totalorder %s24, 0
      %p192 = por %p190, %p191
      %s194 = sadd.s32 %s193, 1
      %p197 = scmp.eq.s32.totalorder %s18, 3
      %p198 = scmp.ne.s32.totalorder %s193, %s195
      %p199 = scmp.eq.s32.totalorder %s18, 0
      %p200 = por %p198, %p199
      %p201 = scmp.ne.s32.totalorder %s193, %s195
      %p202 = scmp.eq.s32.totalorder %s23, 3
      %p203 = por %p201, %p202
      %p204 = scmp.ne.s32.totalorder %s195, %s196
      %p205 = scmp.eq.s32.totalorder %s23, 0
      %p206 = por %p204, %p205
      %p207 = scmp.ne.s32.totalorder %s195, %s196
      %p208 = scmp.eq.s32.totalorder %s24, 3
      %p209 = por %p207, %p208
      %p211 = scmp.ne.s32.totalorder %s196, %s210
      %p212 = scmp.eq.s32.totalorder %s24, 0
      %p213 = por %p211, %p212
      %s215 = sadd.s32 %s214, 1
      %p218 = scmp.eq.s32.totalorder %s18, 3
      %p219 = scmp.ne.s32.totalorder %s214, %s216
      %p220 = scmp.eq.s32.totalorder %s18, 0
      %p221 = por %p219, %p220
      %p222 = scmp.ne.s32.totalorder %s214, %s216
      %p223 = scmp.eq.s32.totalorder %s23, 3
      %p224 = por %p222, %p223
      %p225 = scmp.ne.s32.totalorder %s216, %s217
      %p226 = scmp.eq.s32.totalorder %s23, 0
      %p227 = por %p225, %p226
      %p228 = scmp.ne.s32.totalorder %s216, %s217
      %p229 = scmp.eq.s32.totalorder %s24, 3
      %p230 = por %p228, %p229
      %p232 = scmp.ne.s32.totalorder %s217, %s231
      %p233 = scmp.eq.s32.totalorder %s24, 0
      %p234 = por %p232, %p233
      %s235 = ssub.s32 %s18, %s25
      %p236 = scmp.eq.s32.totalorder %s235, 0
      %s238 = sadd.s32 %s237, 1
      %s239 = scalar_select %p236, %s237, %s238
      %p242 = pneg %p236
      %p243 = scmp.eq.s32.totalorder %s18, 3
      %p244 = por %p242, %p243
      %p245 = scmp.ne.s32.totalorder %s237, %s240
      %p246 = scmp.eq.s32.totalorder %s18, 0
      %p247 = por %p245, %p246
      %p248 = scmp.ne.s32.totalorder %s237, %s240
      %p249 = scmp.eq.s32.totalorder %s23, 3
      %p250 = por %p248, %p249
      %p251 = scmp.ne.s32.totalorder %s240, %s241
      %p252 = scmp.eq.s32.totalorder %s23, 0
      %p253 = por %p251, %p252
      %p254 = scmp.ne.s32.totalorder %s240, %s241
      %p255 = scmp.eq.s32.totalorder %s24, 3
      %p256 = por %p254, %p255
      %p258 = scmp.ne.s32.totalorder %s241, %s257
      %p259 = scmp.eq.s32.totalorder %s24, 0
      %p260 = por %p258, %p259
      %p261 = scmp.le.s32.totalorder 1, %s18
      %p262 = scmp.lt.s32.totalorder %s18, 5
      %p263 = pnand %p261, %p262
      %p264 = pneg %p263
      // Predicated region
      $region9: #{tpu_custom_call.1} parent=5 // pred_check
        _
      $region10: #{tpu_custom_call.1} parent=5 // pred_check_branch
        %266 = sbr.rel (%p263) target = $region12
      $region11: #{tpu_custom_call.1} parent=5 // pred_region
        %s267 = ssub.s32 %s18, 1
        // Predicated region
        $region13: #{tpu_custom_call.1} parent=11 // pred_check
          %p268 = pneg %p143
        $region14: #{tpu_custom_call.1} parent=11 // pred_check_branch
          %270 = sbr.rel (%p268) target = $region16
        $region15: #{tpu_custom_call.1} parent=11 // pred_region
          _
        $region16: #{tpu_custom_call.1} parent=11 // pred_fallthru
          _
        // Predicated region
        $region17: #{tpu_custom_call.1} parent=11 // pred_check
          %p271 = pneg %p164
        $region18: #{tpu_custom_call.1} parent=11 // pred_check_branch
          %273 = sbr.rel (%p271) target = $region20
        $region19: #{tpu_custom_call.1} parent=11 // pred_region
          _
        $region20: #{tpu_custom_call.1} parent=11 // pred_fallthru
          _
        // Predicated region
        $region21: #{tpu_custom_call.1} parent=11 // pred_check
          %p274 = pneg %p185
        $region22: #{tpu_custom_call.1} parent=11 // pred_check_branch
          %276 = sbr.rel (%p274) target = $region24
        $region23: #{tpu_custom_call.1} parent=11 // pred_region
          _
        $region24: #{tpu_custom_call.1} parent=11 // pred_fallthru
          _
        // Predicated region
        $region25: #{tpu_custom_call.1} parent=11 // pred_check
          %p277 = pneg %p206
        $region26: #{tpu_custom_call.1} parent=11 // pred_check_branch
          %279 = sbr.rel (%p277) target = $region28
        $region27: #{tpu_custom_call.1} parent=11 // pred_region
          _
        $region28: #{tpu_custom_call.1} parent=11 // pred_fallthru
          _
        // Predicated region
        $region29: #{tpu_custom_call.1} parent=11 // pred_check
          %p280 = pneg %p227
        $region30: #{tpu_custom_call.1} parent=11 // pred_check_branch
          %282 = sbr.rel (%p280) target = $region32
        $region31: #{tpu_custom_call.1} parent=11 // pred_region
          _
        $region32: #{tpu_custom_call.1} parent=11 // pred_fallthru
          _
      $region12: #{tpu_custom_call.1} parent=5 // pred_fallthru
        _
      %p283 = scmp.lt.s32.totalorder %s18, 4
      // Predicated region
      $region33: #{tpu_custom_call.1} parent=5 // pred_check
        %p284 = pneg %p283
      $region34: #{tpu_custom_call.1} parent=5 // pred_check_branch
        %286 = sbr.rel (%p284) target = $region36
      $region35: #{tpu_custom_call.1} parent=5 // pred_region
        // Predicated region
        $region37: #{tpu_custom_call.1} parent=35 // pred_check
          %p287 = pneg %p38
        $region38: #{tpu_custom_call.1} parent=35 // pred_check_branch
          %289 = sbr.rel (%p287) target = $region40
        $region39: #{tpu_custom_call.1} parent=35 // pred_region
          %p290 = scmp.lt.s32.totalorder %s18, 3
          %s291 = scalar_select %p290, %s18, 3
          %s292 = smul.addr %s291, 8
          %s293 = scalar_lea.vmem %s0, %s292
        $region40: #{tpu_custom_call.1} parent=35 // pred_fallthru
          _
        // Predicated region
        $region41: #{tpu_custom_call.1} parent=35 // pred_check
          %p294 = pneg %p64
        $region42: #{tpu_custom_call.1} parent=35 // pred_check_branch
          %296 = sbr.rel (%p294) target = $region44
        $region43: #{tpu_custom_call.1} parent=35 // pred_region
          %p297 = scmp.lt.s32.totalorder %s18, 3
          %s298 = scalar_select %p297, %s18, 3
          %s299 = smul.addr %s298, 2
          %s300 = smul.addr %s299, 8
          %s301 = scalar_lea.vmem %s1, %s300
        $region44: #{tpu_custom_call.1} parent=35 // pred_fallthru
          _
        // Predicated region
        $region45: #{tpu_custom_call.1} parent=35 // pred_check
          %p302 = pneg %p90
        $region46: #{tpu_custom_call.1} parent=35 // pred_check_branch
          %304 = sbr.rel (%p302) target = $region48
        $region47: #{tpu_custom_call.1} parent=35 // pred_region
          %p305 = scmp.lt.s32.totalorder %s18, 3
          %s306 = scalar_select %p305, %s18, 3
          %s307 = smul.addr %s306, 2
          %s308 = smul.addr %s307, 8
          %s309 = scalar_lea.vmem %s2, %s308
        $region48: #{tpu_custom_call.1} parent=35 // pred_fallthru
          _
        // Predicated region
        $region49: #{tpu_custom_call.1} parent=35 // pred_check
          %p310 = pneg %p116
        $region50: #{tpu_custom_call.1} parent=35 // pred_check_branch
          %312 = sbr.rel (%p310) target = $region52
        $region51: #{tpu_custom_call.1} parent=35 // pred_region
          %p313 = scmp.lt.s32.totalorder %s18, 3
          %s314 = scalar_select %p313, %s18, 3
          %s315 = smul.addr %s314, 8
          %s316 = scalar_lea.vmem %s3, %s315
        $region52: #{tpu_custom_call.1} parent=35 // pred_fallthru
          _
      $region36: #{tpu_custom_call.1} parent=5 // pred_fallthru
        _
      %p317 = scmp.le.s32.totalorder 1, %s18
      %p318 = scmp.lt.s32.totalorder %s18, 5
      %p319 = pnand %p317, %p318
      %p320 = pneg %p319
      // Predicated region
      $region53: #{tpu_custom_call.1} parent=5 // pred_check
        _
      $region54: #{tpu_custom_call.1} parent=5 // pred_check_branch
        %322 = sbr.rel (%p319) target = $region56
      $region55: #{tpu_custom_call.1} parent=5 // pred_region
        %s323 = ssub.s32 %s18, 1
        %p324 = scmp.lt.s32.totalorder %s23, 3
        %s325 = scalar_select %p324, %s23, 3
        %s326 = smul.addr %s325, 8
        %s327 = scalar_lea.vmem %s0, %s326
        %p328 = pneg %p44
        %p329 = pneg %p41
        %p330 = scmp.lt.s32.totalorder %s23, 3
        %s331 = scalar_select %p330, %s23, 3
        %s332 = smul.addr %s331, 2
        %s333 = smul.addr %s332, 8
        %s334 = scalar_lea.vmem %s1, %s333
        %p335 = pneg %p70
        %p336 = pneg %p67
        %p337 = scmp.lt.s32.totalorder %s23, 3
        %s338 = scalar_select %p337, %s23, 3
        %s339 = smul.addr %s338, 2
        %s340 = smul.addr %s339, 8
        %s341 = scalar_lea.vmem %s2, %s340
        %p342 = pneg %p96
        %p343 = pneg %p93
        %p344 = scmp.lt.s32.totalorder %s23, 3
        %s345 = scalar_select %p344, %s23, 3
        %s346 = smul.addr %s345, 8
        %s347 = scalar_lea.vmem %s3, %s346
        %p348 = pneg %p122
        %p349 = pneg %p119
        %p350 = pneg %p143
        %p351 = pneg %p140
        %p352 = pneg %p164
        %p353 = pneg %p161
        %p354 = pneg %p185
        %p355 = pneg %p182
        %p356 = pneg %p206
        %p357 = pneg %p203
        %p358 = pneg %p227
        %p359 = pneg %p224
        %p360 = pneg %p253
        %p361 = pneg %p250
        %s362 = sand.u32 %s240, 1
        %s363 = scalar_lea.sflag [#allocation3], %s362
        %s364 = sand.u32 %s240, 1
        %s365 = smul.addr %s364, 8
        %s366 = scalar_lea.vmem [#allocation2], %s365
        %p367 = scmp.lt.s32.totalorder %s23, 3
        %s368 = scalar_select %p367, %s23, 3
        %s369 = smul.addr %s368, 8
        %s370 = scalar_lea.vmem %s0, %s369
        %p371 = scmp.lt.s32.totalorder %s23, 3
        %s372 = scalar_select %p371, %s23, 3
        %s373 = smul.addr %s372, 2
        %s374 = smul.addr %s373, 8
        %s375 = scalar_lea.vmem %s1, %s374
        %p376 = scmp.lt.s32.totalorder %s23, 3
        %s377 = scalar_select %p376, %s23, 3
        %s378 = smul.addr %s377, 2
        %s379 = smul.addr %s378, 8
        %s380 = scalar_lea.vmem %s2, %s379
        %p381 = scmp.lt.s32.totalorder %s23, 3
        %s382 = scalar_select %p381, %s23, 3
        %s383 = smul.addr %s382, 8
        %s384 = scalar_lea.vmem %s3, %s383
        %v385 = vld [vmem:[%s370] sm:$0xff]
        %v386 = vld [vmem:[%s4] sm:$0xff]
        %v387 = vld [vmem:[%s4 + $0x8] sm:$0xff]
        %v388 = vld [vmem:[%s4 + $0x10] sm:$0xff]
        %v389 = vld [vmem:[%s4 + $0x18] sm:$0xff]
        %v390 = vld [vmem:[%s4 + $0x20] sm:$0xff]
        %v391 = vld [vmem:[%s4 + $0x28] sm:$0xff]
        %v392 = vld [vmem:[%s4 + $0x30] sm:$0xff]
        %v393 = vld [vmem:[%s4 + $0x38] sm:$0xff]
        %v394 = vld [vmem:[%s4 + $0x40] sm:$0xff]
        %v395 = vld [vmem:[%s4 + $0x48] sm:$0xff]
        %v396 = vld [vmem:[%s4 + $0x50] sm:$0xff]
        %v397 = vld [vmem:[%s4 + $0x58] sm:$0xff]
        %v398 = vld [vmem:[%s5] sm:$0x1]
        %v399 = vld [vmem:[%s5 + $0x8] sm:$0x1]
        %v400 = vld [vmem:[%s5 + $0x10] sm:$0x1]
        %v401 = vld [vmem:[%s6] sm:$0xff]
        %v402 = vld [vmem:[%s6 + $0x8] sm:$0x1]
        %v403 = vld [vmem:[%s7] sm:$0xff]
        %v404 = vld [vmem:[%s7 + $0x8] sm:$0xff]
        %v405 = vld [vmem:[%s7 + $0x10] sm:$0xff]
        %v406 = vld [vmem:[%s7 + $0x18] sm:$0xff]
        %v407 = vld [vmem:[%s7 + $0x20] sm:$0xff]
        %v408 = vld [vmem:[%s7 + $0x28] sm:$0xff]
        %v409 = vld [vmem:[%s7 + $0x30] sm:$0xff]
        %v410 = vld [vmem:[%s7 + $0x38] sm:$0xff]
        %v411 = vld [vmem:[%s7 + $0x40] sm:$0xff]
        %v412 = vld [vmem:[%s7 + $0x48] sm:$0xff]
        %v413 = vld [vmem:[%s7 + $0x50] sm:$0xff]
        %v414 = vld [vmem:[%s7 + $0x58] sm:$0xff]
        %v415 = vld [vmem:[%s7 + $0x60] sm:$0xff]
        %v416 = vld [vmem:[%s7 + $0x68] sm:$0xff]
        %v417 = vld [vmem:[%s7 + $0x70] sm:$0xff]
        %v418 = vld [vmem:[%s7 + $0x78] sm:$0xff]
        %v419 = vld [vmem:[%s7 + $0x80] sm:$0xff]
        %v420 = vld [vmem:[%s7 + $0x88] sm:$0xff]
        %v421 = vld [vmem:[%s7 + $0x90] sm:$0xff]
        %v422 = vld [vmem:[%s7 + $0x98] sm:$0xff]
        %v423 = vld [vmem:[%s7 + $0xa0] sm:$0xff]
        %v424 = vld [vmem:[%s7 + $0xa8] sm:$0xff]
        %v425 = vld [vmem:[%s7 + $0xb0] sm:$0xff]
        %v426 = vld [vmem:[%s7 + $0xb8] sm:$0xff]
        %v427 = vld [vmem:[%s7 + $0xc0] sm:$0xff]
        %v428 = vld [vmem:[%s7 + $0xc8] sm:$0xff]
        %v429 = vld [vmem:[%s7 + $0xd0] sm:$0xff]
        %v430 = vld [vmem:[%s7 + $0xd8] sm:$0xff]
        %v431 = vld [vmem:[%s7 + $0xe0] sm:$0xff]
        %v432 = vld [vmem:[%s7 + $0xe8] sm:$0xff]
        %v433 = vld [vmem:[%s7 + $0xf0] sm:$0xff]
        %v434 = vld [vmem:[%s7 + $0xf8] sm:$0xff]
        %s435 = scalar_lea.vmem %s7, 256
        %v436 = vld [vmem:[%s435] ss:$8 sm:$0xf]
        %v437 = vld [vmem:[%s435] ss:$8 sm:$0xf0]
        %v438 = vor.u32 %v436, %v437
        %v439 = vld [vmem:[%s8] sm:$0xff]
        %v440 = vld [vmem:[%s8 + $0x8] sm:$0xff]
        %v441 = vld [vmem:[%s8 + $0x10] sm:$0xff]
        %v442 = vld [vmem:[%s8 + $0x18] sm:$0xff]
        %v443 = vld [vmem:[%s8 + $0x20] sm:$0xff]
        %v444 = vld [vmem:[%s8 + $0x28] sm:$0xff]
        %v445 = vld [vmem:[%s8 + $0x30] sm:$0xff]
        %v446 = vld [vmem:[%s8 + $0x38] sm:$0xff]
        %v447 = vld [vmem:[%s8 + $0x40] sm:$0xff]
        %v448 = vld [vmem:[%s8 + $0x48] sm:$0xff]
        %v449 = vld [vmem:[%s8 + $0x50] sm:$0xff]
        %v450 = vld [vmem:[%s8 + $0x58] sm:$0xff]
        %v451 = vld [vmem:[%s8 + $0x60] sm:$0xff]
        %v452 = vld [vmem:[%s8 + $0x68] sm:$0xff]
        %v453 = vld [vmem:[%s8 + $0x70] sm:$0xff]
        %v454 = vld [vmem:[%s8 + $0x78] sm:$0xff]
        %v455 = vld [vmem:[%s8 + $0x80] sm:$0xff]
        %v456 = vld [vmem:[%s8 + $0x88] sm:$0xff]
        %v457 = vld [vmem:[%s8 + $0x90] sm:$0xff]
        %v458 = vld [vmem:[%s8 + $0x98] sm:$0xff]
        %v459 = vld [vmem:[%s8 + $0xa0] sm:$0xff]
        %v460 = vld [vmem:[%s8 + $0xa8] sm:$0xff]
        %v461 = vld [vmem:[%s8 + $0xb0] sm:$0xff]
        %v462 = vld [vmem:[%s8 + $0xb8] sm:$0xff]
        %v463 = vld [vmem:[%s8 + $0xc0] sm:$0xff]
        %v464 = vld [vmem:[%s8 + $0xc8] sm:$0xff]
        %v465 = vld [vmem:[%s8 + $0xd0] sm:$0xff]
        %v466 = vld [vmem:[%s8 + $0xd8] sm:$0xff]
        %v467 = vld [vmem:[%s8 + $0xe0] sm:$0xff]
        %v468 = vld [vmem:[%s8 + $0xe8] sm:$0xff]
        %v469 = vld [vmem:[%s8 + $0xf0] sm:$0xff]
        %v470 = vld [vmem:[%s8 + $0xf8] sm:$0xff]
        %v471 = vld [vmem:[%s8 + $0x100] sm:$0xff]
        %v472 = vld [vmem:[%s8 + $0x108] sm:$0xff]
        %v473 = vld [vmem:[%s8 + $0x110] sm:$0xff]
        %v474 = vld [vmem:[%s8 + $0x118] sm:$0xff]
        %v475 = vld [vmem:[%s8 + $0x120] sm:$0xff]
        %v476 = vld [vmem:[%s8 + $0x128] sm:$0xff]
        %v477 = vld [vmem:[%s8 + $0x130] sm:$0xff]
        %v478 = vld [vmem:[%s8 + $0x138] sm:$0xff]
        %v479 = vld [vmem:[%s8 + $0x140] sm:$0xff]
        %v480 = vld [vmem:[%s8 + $0x148] sm:$0xff]
        %v481 = vld [vmem:[%s8 + $0x150] sm:$0xff]
        %v482 = vld [vmem:[%s8 + $0x158] sm:$0xff]
        %v483 = vld [vmem:[%s8 + $0x160] sm:$0xff]
        %v484 = vld [vmem:[%s8 + $0x168] sm:$0xff]
        %v485 = vld [vmem:[%s8 + $0x170] sm:$0xff]
        %v486 = vld [vmem:[%s8 + $0x178] sm:$0xff]
        %v487 = vld [vmem:[%s8 + $0x180] sm:$0xff]
        %v488 = vld [vmem:[%s8 + $0x188] sm:$0xff]
        %v489 = vld [vmem:[%s8 + $0x190] sm:$0xff]
        %v490 = vld [vmem:[%s8 + $0x198] sm:$0xff]
        %v491 = vld [vmem:[%s8 + $0x1a0] sm:$0xff]
        %v492 = vld [vmem:[%s8 + $0x1a8] sm:$0xff]
        %v493 = vld [vmem:[%s8 + $0x1b0] sm:$0xff]
        %v494 = vld [vmem:[%s8 + $0x1b8] sm:$0xff]
        %v495 = vld [vmem:[%s8 + $0x1c0] sm:$0xff]
        %v496 = vld [vmem:[%s8 + $0x1c8] sm:$0xff]
        %v497 = vld [vmem:[%s8 + $0x1d0] sm:$0xff]
        %v498 = vld [vmem:[%s8 + $0x1d8] sm:$0xff]
        %v499 = vld [vmem:[%s8 + $0x1e0] sm:$0xff]
        %v500 = vld [vmem:[%s8 + $0x1e8] sm:$0xff]
        %v501 = vld [vmem:[%s8 + $0x1f0] sm:$0xff]
        %v502 = vld [vmem:[%s8 + $0x1f8] sm:$0xff]
        %v503 = vld [vmem:[%s8 + $0x200] sm:$0xff]
        %v504 = vld [vmem:[%s8 + $0x208] sm:$0xff]
        %v505 = vld [vmem:[%s8 + $0x210] sm:$0xff]
        %v506 = vld [vmem:[%s8 + $0x218] sm:$0xff]
        %v507 = vld [vmem:[%s8 + $0x220] sm:$0xff]
        %v508 = vld [vmem:[%s8 + $0x228] sm:$0xff]
        %v509 = vld [vmem:[%s8 + $0x230] sm:$0xff]
        %v510 = vld [vmem:[%s8 + $0x238] sm:$0xff]
        %v511 = vld [vmem:[%s8 + $0x240] sm:$0xff]
        %v512 = vld [vmem:[%s8 + $0x248] sm:$0xff]
        %v513 = vld [vmem:[%s8 + $0x250] sm:$0xff]
        %v514 = vld [vmem:[%s8 + $0x258] sm:$0xff]
        %v515 = vld [vmem:[%s8 + $0x260] sm:$0xff]
        %v516 = vld [vmem:[%s8 + $0x268] sm:$0xff]
        %v517 = vld [vmem:[%s8 + $0x270] sm:$0xff]
        %v518 = vld [vmem:[%s8 + $0x278] sm:$0xff]
        %v519 = vld [vmem:[%s8 + $0x280] sm:$0xff]
        %v520 = vld [vmem:[%s8 + $0x288] sm:$0xff]
        %v521 = vld [vmem:[%s8 + $0x290] sm:$0xff]
        %v522 = vld [vmem:[%s8 + $0x298] sm:$0xff]
        %v523 = vld [vmem:[%s8 + $0x2a0] sm:$0xff]
        %v524 = vld [vmem:[%s8 + $0x2a8] sm:$0xff]
        %v525 = vld [vmem:[%s8 + $0x2b0] sm:$0xff]
        %v526 = vld [vmem:[%s8 + $0x2b8] sm:$0xff]
        %v527 = vld [vmem:[%s8 + $0x2c0] sm:$0xff]
        %v528 = vld [vmem:[%s8 + $0x2c8] sm:$0xff]
        %v529 = vld [vmem:[%s8 + $0x2d0] sm:$0xff]
        %v530 = vld [vmem:[%s8 + $0x2d8] sm:$0xff]
        %v531 = vld [vmem:[%s8 + $0x2e0] sm:$0xff]
        %v532 = vld [vmem:[%s8 + $0x2e8] sm:$0xff]
        %v533 = vld [vmem:[%s8 + $0x2f0] sm:$0xff]
        %v534 = vld [vmem:[%s8 + $0x2f8] sm:$0xff]
        %v535 = vld [vmem:[%s8 + $0x300] sm:$0xff]
        %v536 = vld [vmem:[%s8 + $0x308] sm:$0xff]
        %v537 = vld [vmem:[%s8 + $0x310] sm:$0xff]
        %v538 = vld [vmem:[%s8 + $0x318] sm:$0xff]
        %v539 = vld [vmem:[%s8 + $0x320] sm:$0xff]
        %v540 = vld [vmem:[%s8 + $0x328] sm:$0xff]
        %v541 = vld [vmem:[%s8 + $0x330] sm:$0xff]
        %v542 = vld [vmem:[%s8 + $0x338] sm:$0xff]
        %v543 = vld [vmem:[%s8 + $0x340] sm:$0xff]
        %v544 = vld [vmem:[%s8 + $0x348] sm:$0xff]
        %v545 = vld [vmem:[%s8 + $0x350] sm:$0xff]
        %v546 = vld [vmem:[%s8 + $0x358] sm:$0xff]
        %v547 = vld [vmem:[%s8 + $0x360] sm:$0xff]
        %v548 = vld [vmem:[%s8 + $0x368] sm:$0xff]
        %v549 = vld [vmem:[%s8 + $0x370] sm:$0xff]
        %v550 = vld [vmem:[%s8 + $0x378] sm:$0xff]
        %v551 = vld [vmem:[%s8 + $0x380] sm:$0xff]
        %v552 = vld [vmem:[%s8 + $0x388] sm:$0xff]
        %v553 = vld [vmem:[%s8 + $0x390] sm:$0xff]
        %v554 = vld [vmem:[%s8 + $0x398] sm:$0xff]
        %v555 = vld [vmem:[%s8 + $0x3a0] sm:$0xff]
        %v556 = vld [vmem:[%s8 + $0x3a8] sm:$0xff]
        %v557 = vld [vmem:[%s8 + $0x3b0] sm:$0xff]
        %v558 = vld [vmem:[%s8 + $0x3b8] sm:$0xff]
        %v559 = vld [vmem:[%s8 + $0x3c0] sm:$0xff]
        %v560 = vld [vmem:[%s8 + $0x3c8] sm:$0xff]
        %v561 = vld [vmem:[%s8 + $0x3d0] sm:$0xff]
        %v562 = vld [vmem:[%s8 + $0x3d8] sm:$0xff]
        %v563 = vld [vmem:[%s8 + $0x3e0] sm:$0xff]
        %v564 = vld [vmem:[%s8 + $0x3e8] sm:$0xff]
        %v565 = vld [vmem:[%s8 + $0x3f0] sm:$0xff]
        %v566 = vld [vmem:[%s8 + $0x3f8] sm:$0xff]
        %v567 = vlaneseq
        %v568 = vshrl.u32 %v567, 7
        %v569 = vsub.s32 0, %v568
        %v570 = vrot.slane %v398, %v569
        %vm571 = vcmask 261120
        %v573 = vsel %vm571, %v385, 0
        %575 = vmatprep.subr.mxu0 0.0
        %576 = vmatpush1.msra.mxu0 %v386
        %577 = vmatprep.subr.mxu0 0.0
        %578 = vmatpush1.msra.mxu0 %v387
        %579 = vmatprep.subr.mxu0 0.0
        %580 = vmatpush1.msra.mxu0 %v388
        %581 = vmatprep.subr.mxu0 0.0
        %582 = vmatpush1.msra.mxu0 %v389
        %583 = vmatprep.subr.mxu0 0.0
        %584 = vmatpush1.msra.mxu0 0.0
        %585 = vmatprep.subr.mxu0 0.0
        %586 = vmatpush1.msra.mxu0 0.0
        %587 = vmatprep.subr.mxu0 0.0
        %588 = vmatpush1.msra.mxu0 0.0
        %589 = vmatprep.subr.mxu0 0.0
        %590 = vmatpush1.msra.mxu0 0.0
        %591 = vmatprep.subr.mxu0 0.0
        %592 = vmatpush1.msra.mxu0 0.0
        %593 = vmatprep.subr.mxu0 0.0
        %594 = vmatpush1.msra.mxu0 0.0
        %595 = vmatprep.subr.mxu0 0.0
        %596 = vmatpush1.msra.mxu0 0.0
        %597 = vmatprep.subr.mxu0 0.0
        %598 = vmatpush1.msra.mxu0 0.0
        %599 = vmatprep.subr.mxu0 0.0
        %600 = vmatpush1.msra.mxu0 0.0
        %601 = vmatprep.subr.mxu0 0.0
        %602 = vmatpush1.msra.mxu0 0.0
        %603 = vmatprep.subr.mxu0 0.0
        %604 = vmatpush1.msra.mxu0 0.0
        %605 = vmatprep.subr.mxu0 0.0
        %606 = vmatpush1.msra.mxu0 0.0
        %607 = vmatprep.subr.mxu0 0.0
        %608 = vmatpush1.msra.mxu0 0.0
        %609 = vmatprep.subr.mxu0 0.0
        %610 = vmatpush1.msra.mxu0 0.0
        %611 = vmatprep.subr.mxu0 0.0
        %612 = vmatpush1.msra.mxu0 0.0
        %613 = vmatprep.subr.mxu0 0.0
        %614 = vmatpush1.msra.mxu0 0.0
        %615 = vmatprep.subr.mxu0 0.0
        %616 = vmatpush1.msra.mxu0 0.0
        %617 = vmatprep.subr.mxu0 0.0
        %618 = vmatpush1.msra.mxu0 0.0
        %619 = vmatprep.subr.mxu0 0.0
        %620 = vmatpush1.msra.mxu0 0.0
        %621 = vmatprep.subr.mxu0 0.0
        %622 = vmatpush1.msra.mxu0 0.0
        %623 = vmatprep.subr.mxu0 0.0
        %624 = vmatpush1.msra.mxu0 0.0
        %625 = vmatprep.subr.mxu0 0.0
        %626 = vmatpush1.msra.mxu0 0.0
        %627 = vmatprep.subr.mxu0 0.0
        %628 = vmatpush1.msra.mxu0 0.0
        %629 = vmatprep.subr.mxu0 0.0
        %630 = vmatpush1.msra.mxu0 0.0
        %631 = vmatprep.subr.mxu0 0.0
        %632 = vmatpush1.msra.mxu0 0.0
        %633 = vmatprep.subr.mxu0 0.0
        %634 = vmatpush1.msra.mxu0 0.0
        %635 = vmatprep.subr.mxu0 0.0
        %636 = vmatpush1.msra.mxu0 0.0
        %637 = vmatprep.subr.mxu0 0.0
        %638 = vmatpush1.msra.mxu0 0.0
        %639 = vmatprep.mubr.f32.mxu0 0.0
        %640 = vmatmul.mubr.f32.gmra.mrb[0].mxu0 %v573
        %v641 = vpop.f32.mrb[0].mxu0
        %v642 = vadd.f32 %v570, %v641
        %v643 = vpop.f32.mrb[0].mxu0
        %644 = vdwg.mxu0
        %v645 = vmax.f32 %v642, 0.0
        %v646 = vld [vmem:[%s375] sm:$0xff]
        %v647 = vld [vmem:[%s375 + $0x8] sm:$0xff]
        %v648 = vlaneseq
        %v649 = vshrl.u32 %v648, 7
        %v650 = vsub.s32 0, %v649
        %v651 = vrot.slane %v402, %v650
        %vm652 = vcmask 64512
        %v654 = vsel %vm652, %v646, 0
        %v657 = vsel %vm652, %v647, 0
        %659 = vmatprep.subr.mxu0 0.0
        %660 = vmatpush1.msra.mxu0 %v401
        %661 = vmatprep.subr.mxu0 0.0
        %662 = vmatpush1.msra.mxu0 0.0
        %663 = vmatprep.subr.mxu0 0.0
        %664 = vmatpush1.msra.mxu0 0.0
        %665 = vmatprep.subr.mxu0 0.0
        %666 = vmatpush1.msra.mxu0 0.0
        %667 = vmatprep.subr.mxu0 0.0
        %668 = vmatpush1.msra.mxu0 0.0
        %669 = vmatprep.subr.mxu0 0.0
        %670 = vmatpush1.msra.mxu0 0.0
        %671 = vmatprep.subr.mxu0 0.0
        %672 = vmatpush1.msra.mxu0 0.0
        %673 = vmatprep.subr.mxu0 0.0
        %674 = vmatpush1.msra.mxu0 0.0
        %675 = vmatprep.subr.mxu0 0.0
        %676 = vmatpush1.msra.mxu0 0.0
        %677 = vmatprep.subr.mxu0 0.0
        %678 = vmatpush1.msra.mxu0 0.0
        %679 = vmatprep.subr.mxu0 0.0
        %680 = vmatpush1.msra.mxu0 0.0
        %681 = vmatprep.subr.mxu0 0.0
        %682 = vmatpush1.msra.mxu0 0.0
        %683 = vmatprep.subr.mxu0 0.0
        %684 = vmatpush1.msra.mxu0 0.0
        %685 = vmatprep.subr.mxu0 0.0
        %686 = vmatpush1.msra.mxu0 0.0
        %687 = vmatprep.subr.mxu0 0.0
        %688 = vmatpush1.msra.mxu0 0.0
        %689 = vmatprep.subr.mxu0 0.0
        %690 = vmatpush1.msra.mxu0 0.0
        %691 = vmatprep.subr.mxu0 0.0
        %692 = vmatpush1.msra.mxu0 0.0
        %693 = vmatprep.subr.mxu0 0.0
        %694 = vmatpush1.msra.mxu0 0.0
        %695 = vmatprep.subr.mxu0 0.0
        %696 = vmatpush1.msra.mxu0 0.0
        %697 = vmatprep.subr.mxu0 0.0
        %698 = vmatpush1.msra.mxu0 0.0
        %699 = vmatprep.subr.mxu0 0.0
        %700 = vmatpush1.msra.mxu0 0.0
        %701 = vmatprep.subr.mxu0 0.0
        %702 = vmatpush1.msra.mxu0 0.0
        %703 = vmatprep.subr.mxu0 0.0
        %704 = vmatpush1.msra.mxu0 0.0
        %705 = vmatprep.subr.mxu0 0.0
        %706 = vmatpush1.msra.mxu0 0.0
        %707 = vmatprep.subr.mxu0 0.0
        %708 = vmatpush1.msra.mxu0 0.0
        %709 = vmatprep.subr.mxu0 0.0
        %710 = vmatpush1.msra.mxu0 0.0
        %711 = vmatprep.subr.mxu0 0.0
        %712 = vmatpush1.msra.mxu0 0.0
        %713 = vmatprep.subr.mxu0 0.0
        %714 = vmatpush1.msra.mxu0 0.0
        %715 = vmatprep.subr.mxu0 0.0
        %716 = vmatpush1.msra.mxu0 0.0
        %717 = vmatprep.subr.mxu0 0.0
        %718 = vmatpush1.msra.mxu0 0.0
        %719 = vmatprep.subr.mxu0 0.0
        %720 = vmatpush1.msra.mxu0 0.0
        %721 = vmatprep.subr.mxu0 0.0
        %722 = vmatpush1.msra.mxu0 0.0
        %723 = vmatprep.mubr.f32.mxu0 0.0
        %724 = vmatmul.mubr.f32.gmra.mrb[0].mxu0 %v654
        %v725 = vpop.f32.mrb[0].mxu0
        %v726 = vadd.f32 %v651, %v725
        %v727 = vpop.f32.mrb[0].mxu0
        %728 = vmatprep.mubr.f32.mxu0 0.0
        %729 = vmatmul.mubr.f32.gmra.mrb[0].mxu0 %v657
        %v730 = vpop.f32.mrb[0].mxu0
        %v731 = vadd.f32 %v651, %v730
        %v732 = vpop.f32.mrb[0].mxu0
        %733 = vdwg.mxu0
        %v734 = vmax.f32 %v726, 0.0
        %v735 = vmax.f32 %v731, 0.0
        %v737 = vlaneseq
        %v738 = vshrl.u32 %v737, 7
        %v739 = vsub.s32 0, %v738
        %v740 = vrot.slane %v438, %v739
        %v741 = vlaneseq
        %v742 = vshrl.u32 %v741, 7
        %v743 = vsub.s32 1, %v742
        %v744 = vrot.slane %v438, %v743
        %v745 = vlaneseq
        %v746 = vshrl.u32 %v745, 7
        %v747 = vsub.s32 2, %v746
        %v748 = vrot.slane %v438, %v747
        %v749 = vlaneseq
        %v750 = vshrl.u32 %v749, 7
        %v751 = vsub.s32 3, %v750
        %v752 = vrot.slane %v438, %v751
        %v753 = vlaneseq
        %v754 = vshrl.u32 %v753, 7
        %v755 = vsub.s32 4, %v754
        %v756 = vrot.slane %v438, %v755
        %v757 = vlaneseq
        %v758 = vshrl.u32 %v757, 7
        %v759 = vsub.s32 5, %v758
        %v760 = vrot.slane %v438, %v759
        %v761 = vlaneseq
        %v762 = vshrl.u32 %v761, 7
        %v763 = vsub.s32 6, %v762
        %v764 = vrot.slane %v438, %v763
        %v765 = vlaneseq
        %v766 = vshrl.u32 %v765, 7
        %v767 = vsub.s32 7, %v766
        %v768 = vrot.slane %v438, %v767
        %v778 = vsel %vm571, %v734, 0
        %v781 = vsel %vm571, %v735, 0
        %783 = vmatprep.subr.mxu0 %v404
        %784 = vmatpush1.msra.mxu0 %v403
        %785 = vmatprep.subr.mxu0 %v412
        %786 = vmatpush1.msra.mxu0 %v411
        %787 = vmatprep.subr.mxu0 %v420
        %788 = vmatpush1.msra.mxu0 %v419
        %789 = vmatprep.subr.mxu0 %v428
        %790 = vmatpush1.msra.mxu0 %v427
        %791 = vmatprep.subr.mxu0 0.0
        %792 = vmatpush1.msra.mxu0 0.0
        %793 = vmatprep.subr.mxu0 0.0
        %794 = vmatpush1.msra.mxu0 0.0
        %795 = vmatprep.subr.mxu0 0.0
        %796 = vmatpush1.msra.mxu0 0.0
        %797 = vmatprep.subr.mxu0 0.0
        %798 = vmatpush1.msra.mxu0 0.0
        %799 = vmatprep.subr.mxu0 0.0
        %800 = vmatpush1.msra.mxu0 0.0
        %801 = vmatprep.subr.mxu0 0.0
        %802 = vmatpush1.msra.mxu0 0.0
        %803 = vmatprep.subr.mxu0 0.0
        %804 = vmatpush1.msra.mxu0 0.0
        %805 = vmatprep.subr.mxu0 0.0
        %806 = vmatpush1.msra.mxu0 0.0
        %807 = vmatprep.subr.mxu0 0.0
        %808 = vmatpush1.msra.mxu0 0.0
        %809 = vmatprep.subr.mxu0 0.0
        %810 = vmatpush1.msra.mxu0 0.0
        %811 = vmatprep.subr.mxu0 0.0
        %812 = vmatpush1.msra.mxu0 0.0
        %813 = vmatprep.subr.mxu0 0.0
        %814 = vmatpush1.msra.mxu0 0.0
        %815 = vmatprep.subr.mxu0 0.0
        %816 = vmatpush1.msra.mxu0 0.0
        %817 = vmatprep.subr.mxu0 0.0
        %818 = vmatpush1.msra.mxu0 0.0
        %819 = vmatprep.subr.mxu0 0.0
        %820 = vmatpush1.msra.mxu0 0.0
        %821 = vmatprep.subr.mxu0 0.0
        %822 = vmatpush1.msra.mxu0 0.0
        %823 = vmatprep.subr.mxu0 0.0
        %824 = vmatpush1.msra.mxu0 0.0
        %825 = vmatprep.subr.mxu0 0.0
        %826 = vmatpush1.msra.mxu0 0.0
        %827 = vmatprep.subr.mxu0 0.0
        %828 = vmatpush1.msra.mxu0 0.0
        %829 = vmatprep.subr.mxu0 0.0
        %830 = vmatpush1.msra.mxu0 0.0
        %831 = vmatprep.subr.mxu0 0.0
        %832 = vmatpush1.msra.mxu0 0.0
        %833 = vmatprep.subr.mxu0 0.0
        %834 = vmatpush1.msra.mxu0 0.0
        %835 = vmatprep.subr.mxu0 0.0
        %836 = vmatpush1.msra.mxu0 0.0
        %837 = vmatprep.subr.mxu0 0.0
        %838 = vmatpush1.msra.mxu0 0.0
        %839 = vmatprep.subr.mxu0 0.0
        %840 = vmatpush1.msra.mxu0 0.0
        %841 = vmatprep.subr.mxu0 0.0
        %842 = vmatpush1.msra.mxu0 0.0
        %843 = vmatprep.subr.mxu0 0.0
        %844 = vmatpush1.msra.mxu0 0.0
        %845 = vmatprep.subr.mxu0 0.0
        %846 = vmatpush1.msra.mxu0 0.0
        %847 = vmatprep.mubr.f32.mxu0 0.0
        %848 = vmatmul.mubr.f32.gmra.mrb[0].mxu0 %v778
        %v849 = vpop.f32.mrb[0].mxu0
        %v850 = vadd.f32 %v740, %v849
        %v851 = vpop.f32.mrb[0].mxu0
        %v852 = vadd.f32 %v744, %v851
        %853 = vmatprep.mubr.f32.mxu0 0.0
        %854 = vmatmul.mubr.f32.gmra.mrb[0].mxu0 %v781
        %v855 = vpop.f32.mrb[0].mxu0
        %v856 = vadd.f32 %v740, %v855
        %v857 = vpop.f32.mrb[0].mxu0
        %v858 = vadd.f32 %v744, %v857
        %859 = vdwg.mxu0
        %860 = vmatprep.subr.mxu0 %v406
        %861 = vmatpush1.msra.mxu0 %v405
        %862 = vmatprep.subr.mxu0 %v414
        %863 = vmatpush1.msra.mxu0 %v413
        %864 = vmatprep.subr.mxu0 %v422
        %865 = vmatpush1.msra.mxu0 %v421
        %866 = vmatprep.subr.mxu0 %v430
        %867 = vmatpush1.msra.mxu0 %v429
        %868 = vmatprep.subr.mxu0 0.0
        %869 = vmatpush1.msra.mxu0 0.0
        %870 = vmatprep.subr.mxu0 0.0
        %871 = vmatpush1.msra.mxu0 0.0
        %872 = vmatprep.subr.mxu0 0.0
        %873 = vmatpush1.msra.mxu0 0.0
        %874 = vmatprep.subr.mxu0 0.0
        %875 = vmatpush1.msra.mxu0 0.0
        %876 = vmatprep.subr.mxu0 0.0
        %877 = vmatpush1.msra.mxu0 0.0
        %878 = vmatprep.subr.mxu0 0.0
        %879 = vmatpush1.msra.mxu0 0.0
        %880 = vmatprep.subr.mxu0 0.0
        %881 = vmatpush1.msra.mxu0 0.0
        %882 = vmatprep.subr.mxu0 0.0
        %883 = vmatpush1.msra.mxu0 0.0
        %884 = vmatprep.subr.mxu0 0.0
        %885 = vmatpush1.msra.mxu0 0.0
        %886 = vmatprep.subr.mxu0 0.0
        %887 = vmatpush1.msra.mxu0 0.0
        %888 = vmatprep.subr.mxu0 0.0
        %889 = vmatpush1.msra.mxu0 0.0
        %890 = vmatprep.subr.mxu0 0.0
        %891 = vmatpush1.msra.mxu0 0.0
        %892 = vmatprep.subr.mxu0 0.0
        %893 = vmatpush1.msra.mxu0 0.0
        %894 = vmatprep.subr.mxu0 0.0
        %895 = vmatpush1.msra.mxu0 0.0
        %896 = vmatprep.subr.mxu0 0.0
        %897 = vmatpush1.msra.mxu0 0.0
        %898 = vmatprep.subr.mxu0 0.0
        %899 = vmatpush1.msra.mxu0 0.0
        %900 = vmatprep.subr.mxu0 0.0
        %901 = vmatpush1.msra.mxu0 0.0
        %902 = vmatprep.subr.mxu0 0.0
        %903 = vmatpush1.msra.mxu0 0.0
        %904 = vmatprep.subr.mxu0 0.0
        %905 = vmatpush1.msra.mxu0 0.0
        %906 = vmatprep.subr.mxu0 0.0
        %907 = vmatpush1.msra.mxu0 0.0
        %908 = vmatprep.subr.mxu0 0.0
        %909 = vmatpush1.msra.mxu0 0.0
        %910 = vmatprep.subr.mxu0 0.0
        %911 = vmatpush1.msra.mxu0 0.0
        %912 = vmatprep.subr.mxu0 0.0
        %913 = vmatpush1.msra.mxu0 0.0
        %914 = vmatprep.subr.mxu0 0.0
        %915 = vmatpush1.msra.mxu0 0.0
        %916 = vmatprep.subr.mxu0 0.0
        %917 = vmatpush1.msra.mxu0 0.0
        %918 = vmatprep.subr.mxu0 0.0
        %919 = vmatpush1.msra.mxu0 0.0
        %920 = vmatprep.subr.mxu0 0.0
        %921 = vmatpush1.msra.mxu0 0.0
        %922 = vmatprep.subr.mxu0 0.0
        %923 = vmatpush1.msra.mxu0 0.0
        %924 = vmatprep.mubr.f32.mxu0 0.0
        %925 = vmatmul.mubr.f32.gmra.mrb[0].mxu0 %v778
        %v926 = vpop.f32.mrb[0].mxu0
        %v927 = vadd.f32 %v748, %v926
        %v928 = vpop.f32.mrb[0].mxu0
        %v929 = vadd.f32 %v752, %v928
        %930 = vmatprep.mubr.f32.mxu0 0.0
        %931 = vmatmul.mubr.f32.gmra.mrb[0].mxu0 %v781
        %v932 = vpop.f32.mrb[0].mxu0
        %v933 = vadd.f32 %v748, %v932
        %v934 = vpop.f32.mrb[0].mxu0
        %v935 = vadd.f32 %v752, %v934
        %936 = vdwg.mxu0
        %937 = vmatprep.subr.mxu0 %v408
        %938 = vmatpush1.msra.mxu0 %v407
        %939 = vmatprep.subr.mxu0 %v416
        %940 = vmatpush1.msra.mxu0 %v415
        %941 = vmatprep.subr.mxu0 %v424
        %942 = vmatpush1.msra.mxu0 %v423
        %943 = vmatprep.subr.mxu0 %v432
        %944 = vmatpush1.msra.mxu0 %v431
        %945 = vmatprep.subr.mxu0 0.0
        %946 = vmatpush1.msra.mxu0 0.0
        %947 = vmatprep.subr.mxu0 0.0
        %948 = vmatpush1.msra.mxu0 0.0
        %949 = vmatprep.subr.mxu0 0.0
        %950 = vmatpush1.msra.mxu0 0.0
        %951 = vmatprep.subr.mxu0 0.0
        %952 = vmatpush1.msra.mxu0 0.0
        %953 = vmatprep.subr.mxu0 0.0
        %954 = vmatpush1.msra.mxu0 0.0
        %955 = vmatprep.subr.mxu0 0.0
        %956 = vmatpush1.msra.mxu0 0.0
        %957 = vmatprep.subr.mxu0 0.0
        %958 = vmatpush1.msra.mxu0 0.0
        %959 = vmatprep.subr.mxu0 0.0
        %960 = vmatpush1.msra.mxu0 0.0
        %961 = vmatprep.subr.mxu0 0.0
        %962 = vmatpush1.msra.mxu0 0.0
        %963 = vmatprep.subr.mxu0 0.0
        %964 = vmatpush1.msra.mxu0 0.0
        %965 = vmatprep.subr.mxu0 0.0
        %966 = vmatpush1.msra.mxu0 0.0
        %967 = vmatprep.subr.mxu0 0.0
        %968 = vmatpush1.msra.mxu0 0.0
        %969 = vmatprep.subr.mxu0 0.0
        %970 = vmatpush1.msra.mxu0 0.0
        %971 = vmatprep.subr.mxu0 0.0
        %972 = vmatpush1.msra.mxu0 0.0
        %973 = vmatprep.subr.mxu0 0.0
        %974 = vmatpush1.msra.mxu0 0.0
        %975 = vmatprep.subr.mxu0 0.0
        %976 = vmatpush1.msra.mxu0 0.0
        %977 = vmatprep.subr.mxu0 0.0
        %978 = vmatpush1.msra.mxu0 0.0
        %979 = vmatprep.subr.mxu0 0.0
        %980 = vmatpush1.msra.mxu0 0.0
        %981 = vmatprep.subr.mxu0 0.0
        %982 = vmatpush1.msra.mxu0 0.0
        %983 = vmatprep.subr.mxu0 0.0
        %984 = vmatpush1.msra.mxu0 0.0
        %985 = vmatprep.subr.mxu0 0.0
        %986 = vmatpush1.msra.mxu0 0.0
        %987 = vmatprep.subr.mxu0 0.0
        %988 = vmatpush1.msra.mxu0 0.0
        %989 = vmatprep.subr.mxu0 0.0
        %990 = vmatpush1.msra.mxu0 0.0
        %991 = vmatprep.subr.mxu0 0.0
        %992 = vmatpush1.msra.mxu0 0.0
        %993 = vmatprep.subr.mxu0 0.0
        %994 = vmatpush1.msra.mxu0 0.0
        %995 = vmatprep.subr.mxu0 0.0
        %996 = vmatpush1.msra.mxu0 0.0
        %997 = vmatprep.subr.mxu0 0.0
        %998 = vmatpush1.msra.mxu0 0.0
        %999 = vmatprep.subr.mxu0 0.0
        %1000 = vmatpush1.msra.mxu0 0.0
        %1001 = vmatprep.mubr.f32.mxu0 0.0
        %1002 = vmatmul.mubr.f32.gmra.mrb[0].mxu0 %v778
        %v1003 = vpop.f32.mrb[0].mxu0
        %v1004 = vadd.f32 %v756, %v1003
        %v1005 = vpop.f32.mrb[0].mxu0
        %v1006 = vadd.f32 %v760, %v1005
        %1007 = vmatprep.mubr.f32.mxu0 0.0
        %1008 = vmatmul.mubr.f32.gmra.mrb[0].mxu0 %v781
        %v1009 = vpop.f32.mrb[0].mxu0
        %v1010 = vadd.f32 %v756, %v1009
        %v1011 = vpop.f32.mrb[0].mxu0
        %v1012 = vadd.f32 %v760, %v1011
        %1013 = vdwg.mxu0
        %1014 = vmatprep.subr.mxu0 %v410
        %1015 = vmatpush1.msra.mxu0 %v409
        %1016 = vmatprep.subr.mxu0 %v418
        %1017 = vmatpush1.msra.mxu0 %v417
        %1018 = vmatprep.subr.mxu0 %v426
        %1019 = vmatpush1.msra.mxu0 %v425
        %1020 = vmatprep.subr.mxu0 %v434
        %1021 = vmatpush1.msra.mxu0 %v433
        %1022 = vmatprep.subr.mxu0 0.0
        %1023 = vmatpush1.msra.mxu0 0.0
        %1024 = vmatprep.subr.mxu0 0.0
        %1025 = vmatpush1.msra.mxu0 0.0
        %1026 = vmatprep.subr.mxu0 0.0
        %1027 = vmatpush1.msra.mxu0 0.0
        %1028 = vmatprep.subr.mxu0 0.0
        %1029 = vmatpush1.msra.mxu0 0.0
        %1030 = vmatprep.subr.mxu0 0.0
        %1031 = vmatpush1.msra.mxu0 0.0
        %1032 = vmatprep.subr.mxu0 0.0
        %1033 = vmatpush1.msra.mxu0 0.0
        %1034 = vmatprep.subr.mxu0 0.0
        %1035 = vmatpush1.msra.mxu0 0.0
        %1036 = vmatprep.subr.mxu0 0.0
        %1037 = vmatpush1.msra.mxu0 0.0
        %1038 = vmatprep.subr.mxu0 0.0
        %1039 = vmatpush1.msra.mxu0 0.0
        %1040 = vmatprep.subr.mxu0 0.0
        %1041 = vmatpush1.msra.mxu0 0.0
        %1042 = vmatprep.subr.mxu0 0.0
        %1043 = vmatpush1.msra.mxu0 0.0
        %1044 = vmatprep.subr.mxu0 0.0
        %1045 = vmatpush1.msra.mxu0 0.0
        %1046 = vmatprep.subr.mxu0 0.0
        %1047 = vmatpush1.msra.mxu0 0.0
        %1048 = vmatprep.subr.mxu0 0.0
        %1049 = vmatpush1.msra.mxu0 0.0
        %1050 = vmatprep.subr.mxu0 0.0
        %1051 = vmatpush1.msra.mxu0 0.0
        %1052 = vmatprep.subr.mxu0 0.0
        %1053 = vmatpush1.msra.mxu0 0.0
        %1054 = vmatprep.subr.mxu0 0.0
        %1055 = vmatpush1.msra.mxu0 0.0
        %1056 = vmatprep.subr.mxu0 0.0
        %1057 = vmatpush1.msra.mxu0 0.0
        %1058 = vmatprep.subr.mxu0 0.0
        %1059 = vmatpush1.msra.mxu0 0.0
        %1060 = vmatprep.subr.mxu0 0.0
        %1061 = vmatpush1.msra.mxu0 0.0
        %1062 = vmatprep.subr.mxu0 0.0
        %1063 = vmatpush1.msra.mxu0 0.0
        %1064 = vmatprep.subr.mxu0 0.0
        %1065 = vmatpush1.msra.mxu0 0.0
        %1066 = vmatprep.subr.mxu0 0.0
        %1067 = vmatpush1.msra.mxu0 0.0
        %1068 = vmatprep.subr.mxu0 0.0
        %1069 = vmatpush1.msra.mxu0 0.0
        %1070 = vmatprep.subr.mxu0 0.0
        %1071 = vmatpush1.msra.mxu0 0.0
        %1072 = vmatprep.subr.mxu0 0.0
        %1073 = vmatpush1.msra.mxu0 0.0
        %1074 = vmatprep.subr.mxu0 0.0
        %1075 = vmatpush1.msra.mxu0 0.0
        %1076 = vmatprep.subr.mxu0 0.0
        %1077 = vmatpush1.msra.mxu0 0.0
        %1078 = vmatprep.mubr.f32.mxu0 0.0
        %1079 = vmatmul.mubr.f32.gmra.mrb[0].mxu0 %v778
        %v1080 = vpop.f32.mrb[0].mxu0
        %v1081 = vadd.f32 %v764, %v1080
        %v1082 = vpop.f32.mrb[0].mxu0
        %v1083 = vadd.f32 %v768, %v1082
        %1084 = vmatprep.mubr.f32.mxu0 0.0
        %1085 = vmatmul.mubr.f32.gmra.mrb[0].mxu0 %v781
        %v1086 = vpop.f32.mrb[0].mxu0
        %v1087 = vadd.f32 %v764, %v1086
        %v1088 = vpop.f32.mrb[0].mxu0
        %v1089 = vadd.f32 %v768, %v1088
        %1090 = vdwg.mxu0
        %v1091 = vld [vmem:[%s380] sm:$0xff]
        %v1092 = vld [vmem:[%s380 + $0x8] sm:$0xff]
        %v1093 = vld [vmem:[%s384] sm:$0xff]
        %v1094 = vlaneseq
        %v1095 = vshrl.u32 %v1094, 7
        %v1096 = vsub.s32 0, %v1095
        %v1097 = vrot.slane %v400, %v1096
        %v1099 = vsel %vm571, %v645, 0
        %1101 = vmatprep.subr.mxu0 0.0
        %1102 = vmatpush1.msra.mxu0 %v394
        %1103 = vmatprep.subr.mxu0 0.0
        %1104 = vmatpush1.msra.mxu0 %v395
        %1105 = vmatprep.subr.mxu0 0.0
        %1106 = vmatpush1.msra.mxu0 %v396
        %1107 = vmatprep.subr.mxu0 0.0
        %1108 = vmatpush1.msra.mxu0 %v397
        %1109 = vmatprep.subr.mxu0 0.0
        %1110 = vmatpush1.msra.mxu0 0.0
        %1111 = vmatprep.subr.mxu0 0.0
        %1112 = vmatpush1.msra.mxu0 0.0
        %1113 = vmatprep.subr.mxu0 0.0
        %1114 = vmatpush1.msra.mxu0 0.0
        %1115 = vmatprep.subr.mxu0 0.0
        %1116 = vmatpush1.msra.mxu0 0.0
        %1117 = vmatprep.subr.mxu0 0.0
        %1118 = vmatpush1.msra.mxu0 0.0
        %1119 = vmatprep.subr.mxu0 0.0
        %1120 = vmatpush1.msra.mxu0 0.0
        %1121 = vmatprep.subr.mxu0 0.0
        %1122 = vmatpush1.msra.mxu0 0.0
        %1123 = vmatprep.subr.mxu0 0.0
        %1124 = vmatpush1.msra.mxu0 0.0
        %1125 = vmatprep.subr.mxu0 0.0
        %1126 = vmatpush1.msra.mxu0 0.0
        %1127 = vmatprep.subr.mxu0 0.0
        %1128 = vmatpush1.msra.mxu0 0.0
        %1129 = vmatprep.subr.mxu0 0.0
        %1130 = vmatpush1.msra.mxu0 0.0
        %1131 = vmatprep.subr.mxu0 0.0
        %1132 = vmatpush1.msra.mxu0 0.0
        %1133 = vmatprep.subr.mxu0 0.0
        %1134 = vmatpush1.msra.mxu0 0.0
        %1135 = vmatprep.subr.mxu0 0.0
        %1136 = vmatpush1.msra.mxu0 0.0
        %1137 = vmatprep.subr.mxu0 0.0
        %1138 = vmatpush1.msra.mxu0 0.0
        %1139 = vmatprep.subr.mxu0 0.0
        %1140 = vmatpush1.msra.mxu0 0.0
        %1141 = vmatprep.subr.mxu0 0.0
        %1142 = vmatpush1.msra.mxu0 0.0
        %1143 = vmatprep.subr.mxu0 0.0
        %1144 = vmatpush1.msra.mxu0 0.0
        %1145 = vmatprep.subr.mxu0 0.0
        %1146 = vmatpush1.msra.mxu0 0.0
        %1147 = vmatprep.subr.mxu0 0.0
        %1148 = vmatpush1.msra.mxu0 0.0
        %1149 = vmatprep.subr.mxu0 0.0
        %1150 = vmatpush1.msra.mxu0 0.0
        %1151 = vmatprep.subr.mxu0 0.0
        %1152 = vmatpush1.msra.mxu0 0.0
        %1153 = vmatprep.subr.mxu0 0.0
        %1154 = vmatpush1.msra.mxu0 0.0
        %1155 = vmatprep.subr.mxu0 0.0
        %1156 = vmatpush1.msra.mxu0 0.0
        %1157 = vmatprep.subr.mxu0 0.0
        %1158 = vmatpush1.msra.mxu0 0.0
        %1159 = vmatprep.subr.mxu0 0.0
        %1160 = vmatpush1.msra.mxu0 0.0
        %1161 = vmatprep.subr.mxu0 0.0
        %1162 = vmatpush1.msra.mxu0 0.0
        %1163 = vmatprep.subr.mxu0 0.0
        %1164 = vmatpush1.msra.mxu0 0.0
        %1165 = vmatprep.mubr.f32.mxu0 0.0
        %1166 = vmatmul.mubr.f32.gmra.mrb[0].mxu0 %v1099
        %v1167 = vpop.f32.mrb[0].mxu0
        %v1168 = vadd.f32 %v1097, %v1167
        %v1169 = vpop.f32.mrb[0].mxu0
        %1170 = vdwg.mxu0
        %v1172 = vsel %vm652, %v1091, 0
        %v1175 = vsel %vm652, %v1092, 0
        %1177 = vmatprep.subr.mxu0 0.0
        %1178 = vmatpush1.msra.mxu0 %v645
        %1179 = vmatprep.subr.mxu0 0.0
        %1180 = vmatpush1.msra.mxu0 0.0
        %1181 = vmatprep.subr.mxu0 0.0
        %1182 = vmatpush1.msra.mxu0 0.0
        %1183 = vmatprep.subr.mxu0 0.0
        %1184 = vmatpush1.msra.mxu0 0.0
        %1185 = vmatprep.subr.mxu0 0.0
        %1186 = vmatpush1.msra.mxu0 0.0
        %1187 = vmatprep.subr.mxu0 0.0
        %1188 = vmatpush1.msra.mxu0 0.0
        %1189 = vmatprep.subr.mxu0 0.0
        %1190 = vmatpush1.msra.mxu0 0.0
        %1191 = vmatprep.subr.mxu0 0.0
        %1192 = vmatpush1.msra.mxu0 0.0
        %1193 = vmatprep.subr.mxu0 0.0
        %1194 = vmatpush1.msra.mxu0 0.0
        %1195 = vmatprep.subr.mxu0 0.0
        %1196 = vmatpush1.msra.mxu0 0.0
        %1197 = vmatprep.subr.mxu0 0.0
        %1198 = vmatpush1.msra.mxu0 0.0
        %1199 = vmatprep.subr.mxu0 0.0
        %1200 = vmatpush1.msra.mxu0 0.0
        %1201 = vmatprep.subr.mxu0 0.0
        %1202 = vmatpush1.msra.mxu0 0.0
        %1203 = vmatprep.subr.mxu0 0.0
        %1204 = vmatpush1.msra.mxu0 0.0
        %1205 = vmatprep.subr.mxu0 0.0
        %1206 = vmatpush1.msra.mxu0 0.0
        %1207 = vmatprep.subr.mxu0 0.0
        %1208 = vmatpush1.msra.mxu0 0.0
        %1209 = vmatprep.subr.mxu0 0.0
        %1210 = vmatpush1.msra.mxu0 0.0
        %1211 = vmatprep.subr.mxu0 0.0
        %1212 = vmatpush1.msra.mxu0 0.0
        %1213 = vmatprep.subr.mxu0 0.0
        %1214 = vmatpush1.msra.mxu0 0.0
        %1215 = vmatprep.subr.mxu0 0.0
        %1216 = vmatpush1.msra.mxu0 0.0
        %1217 = vmatprep.subr.mxu0 0.0
        %1218 = vmatpush1.msra.mxu0 0.0
        %1219 = vmatprep.subr.mxu0 0.0
        %1220 = vmatpush1.msra.mxu0 0.0
        %1221 = vmatprep.subr.mxu0 0.0
        %1222 = vmatpush1.msra.mxu0 0.0
        %1223 = vmatprep.subr.mxu0 0.0
        %1224 = vmatpush1.msra.mxu0 0.0
        %1225 = vmatprep.subr.mxu0 0.0
        %1226 = vmatpush1.msra.mxu0 0.0
        %1227 = vmatprep.subr.mxu0 0.0
        %1228 = vmatpush1.msra.mxu0 0.0
        %1229 = vmatprep.subr.mxu0 0.0
        %1230 = vmatpush1.msra.mxu0 0.0
        %1231 = vmatprep.subr.mxu0 0.0
        %1232 = vmatpush1.msra.mxu0 0.0
        %1233 = vmatprep.subr.mxu0 0.0
        %1234 = vmatpush1.msra.mxu0 0.0
        %1235 = vmatprep.subr.mxu0 0.0
        %1236 = vmatpush1.msra.mxu0 0.0
        %1237 = vmatprep.subr.mxu0 0.0
        %1238 = vmatpush1.msra.mxu0 0.0
        %1239 = vmatprep.subr.mxu0 0.0
        %1240 = vmatpush1.msra.mxu0 0.0
        %1241 = vmatprep.mubr.f32.mxu0 0.0
        %1242 = vmatmul.mubr.f32.gmra.mrb[0].mxu0 %v1172
        %v1243 = vpop.f32.mrb[0].mxu0
        %v1244 = vadd.f32 0.0, %v1243
        %v1245 = vpop.f32.mrb[0].mxu0
        %1246 = vmatprep.mubr.f32.mxu0 0.0
        %1247 = vmatmul.mubr.f32.gmra.mrb[0].mxu0 %v1175
        %v1248 = vpop.f32.mrb[0].mxu0
        %v1249 = vadd.f32 0.0, %v1248
        %v1250 = vpop.f32.mrb[0].mxu0
        %1251 = vdwg.mxu0
        %1254 = vrot.lane.b32.xlu0 %v1244, 32
        %v1255 = vpop.permute.xlu0 %1254
        %1256 = vrot.lane.b32.xlu0 %v1249, 32
        %v1257 = vpop.permute.xlu0 %1256
        %1260 = vrot.lane.b32.xlu0 %v1244, 64
        %v1261 = vpop.permute.xlu0 %1260
        %1262 = vrot.lane.b32.xlu0 %v1249, 64
        %v1263 = vpop.permute.xlu0 %1262
        %1266 = vrot.lane.b32.xlu0 %v1244, 96
        %v1267 = vpop.permute.xlu0 %1266
        %1268 = vrot.lane.b32.xlu0 %v1249, 96
        %v1269 = vpop.permute.xlu0 %1268
        %v1272 = vsel %vm571, %v1244, %v1255
        %v1273 = vsel %vm571, %v1249, %v1257
        %vm1274 = vcmask 523264
        %v1275 = vsel %vm1274, %v1272, %v1261
        %v1276 = vsel %vm1274, %v1273, %v1263
        %vm1277 = vcmask 785408
        %v1278 = vsel %vm1277, %v1275, %v1267
        %v1279 = vsel %vm1277, %v1276, %v1269
        %v1280 = vmul.f32 %v1278, %v850
        %v1281 = vmul.f32 %v1278, %v852
        %v1282 = vmul.f32 %v1278, %v927
        %v1283 = vmul.f32 %v1278, %v929
        %v1284 = vmul.f32 %v1278, %v1004
        %v1285 = vmul.f32 %v1278, %v1006
        %v1286 = vmul.f32 %v1278, %v1081
        %v1287 = vmul.f32 %v1278, %v1083
        %v1288 = vmul.f32 %v1279, %v856
        %v1289 = vmul.f32 %v1279, %v858
        %v1290 = vmul.f32 %v1279, %v933
        %v1291 = vmul.f32 %v1279, %v935
        %v1292 = vmul.f32 %v1279, %v1010
        %v1293 = vmul.f32 %v1279, %v1012
        %v1294 = vmul.f32 %v1279, %v1087
        %v1295 = vmul.f32 %v1279, %v1089
        %1296 = vmatprep.subr.mxu0 0.0
        %1297 = vmatpush1.msra.mxu0 %v439
        %1298 = vmatprep.subr.mxu0 0.0
        %1299 = vmatpush1.msra.mxu0 %v440
        %1300 = vmatprep.subr.mxu0 0.0
        %1301 = vmatpush1.msra.mxu0 %v441
        %1302 = vmatprep.subr.mxu0 0.0
        %1303 = vmatpush1.msra.mxu0 %v442
        %1304 = vmatprep.subr.mxu0 0.0
        %1305 = vmatpush1.msra.mxu0 %v443
        %1306 = vmatprep.subr.mxu0 0.0
        %1307 = vmatpush1.msra.mxu0 %v444
        %1308 = vmatprep.subr.mxu0 0.0
        %1309 = vmatpush1.msra.mxu0 %v445
        %1310 = vmatprep.subr.mxu0 0.0
        %1311 = vmatpush1.msra.mxu0 %v446
        %1312 = vmatprep.subr.mxu0 0.0
        %1313 = vmatpush1.msra.mxu0 %v447
        %1314 = vmatprep.subr.mxu0 0.0
        %1315 = vmatpush1.msra.mxu0 %v448
        %1316 = vmatprep.subr.mxu0 0.0
        %1317 = vmatpush1.msra.mxu0 %v449
        %1318 = vmatprep.subr.mxu0 0.0
        %1319 = vmatpush1.msra.mxu0 %v450
        %1320 = vmatprep.subr.mxu0 0.0
        %1321 = vmatpush1.msra.mxu0 %v451
        %1322 = vmatprep.subr.mxu0 0.0
        %1323 = vmatpush1.msra.mxu0 %v452
        %1324 = vmatprep.subr.mxu0 0.0
        %1325 = vmatpush1.msra.mxu0 %v453
        %1326 = vmatprep.subr.mxu0 0.0
        %1327 = vmatpush1.msra.mxu0 %v454
        %1328 = vmatprep.subr.mxu0 0.0
        %1329 = vmatpush1.msra.mxu0 %v455
        %1330 = vmatprep.subr.mxu0 0.0
        %1331 = vmatpush1.msra.mxu0 %v456
        %1332 = vmatprep.subr.mxu0 0.0
        %1333 = vmatpush1.msra.mxu0 %v457
        %1334 = vmatprep.subr.mxu0 0.0
        %1335 = vmatpush1.msra.mxu0 %v458
        %1336 = vmatprep.subr.mxu0 0.0
        %1337 = vmatpush1.msra.mxu0 %v459
        %1338 = vmatprep.subr.mxu0 0.0
        %1339 = vmatpush1.msra.mxu0 %v460
        %1340 = vmatprep.subr.mxu0 0.0
        %1341 = vmatpush1.msra.mxu0 %v461
        %1342 = vmatprep.subr.mxu0 0.0
        %1343 = vmatpush1.msra.mxu0 %v462
        %1344 = vmatprep.subr.mxu0 0.0
        %1345 = vmatpush1.msra.mxu0 %v463
        %1346 = vmatprep.subr.mxu0 0.0
        %1347 = vmatpush1.msra.mxu0 %v464
        %1348 = vmatprep.subr.mxu0 0.0
        %1349 = vmatpush1.msra.mxu0 %v465
        %1350 = vmatprep.subr.mxu0 0.0
        %1351 = vmatpush1.msra.mxu0 %v466
        %1352 = vmatprep.subr.mxu0 0.0
        %1353 = vmatpush1.msra.mxu0 %v467
        %1354 = vmatprep.subr.mxu0 0.0
        %1355 = vmatpush1.msra.mxu0 %v468
        %1356 = vmatprep.subr.mxu0 0.0
        %1357 = vmatpush1.msra.mxu0 %v469
        %1358 = vmatprep.subr.mxu0 0.0
        %1359 = vmatpush1.msra.mxu0 %v470
        %1360 = vmatprep.mubr.f32.mxu0 %v1281
        %1361 = vmatmul.mubr.f32.gmra.mrb[0].mxu0 %v1280
        %v1362 = vpop.f32.mrb[0].mxu0
        %v1363 = vadd.f32 0.0, %v1362
        %v1364 = vpop.f32.mrb[0].mxu0
        %1365 = vmatprep.mubr.f32.mxu0 %v1289
        %1366 = vmatmul.mubr.f32.gmra.mrb[0].mxu0 %v1288
        %v1367 = vpop.f32.mrb[0].mxu0
        %v1368 = vadd.f32 0.0, %v1367
        %v1369 = vpop.f32.mrb[0].mxu0
        %1370 = vdwg.mxu0
        %1371 = vmatprep.subr.mxu0 0.0
        %1372 = vmatpush1.msra.mxu0 %v471
        %1373 = vmatprep.subr.mxu0 0.0
        %1374 = vmatpush1.msra.mxu0 %v472
        %1375 = vmatprep.subr.mxu0 0.0
        %1376 = vmatpush1.msra.mxu0 %v473
        %1377 = vmatprep.subr.mxu0 0.0
        %1378 = vmatpush1.msra.mxu0 %v474
        %1379 = vmatprep.subr.mxu0 0.0
        %1380 = vmatpush1.msra.mxu0 %v475
        %1381 = vmatprep.subr.mxu0 0.0
        %1382 = vmatpush1.msra.mxu0 %v476
        %1383 = vmatprep.subr.mxu0 0.0
        %1384 = vmatpush1.msra.mxu0 %v477
        %1385 = vmatprep.subr.mxu0 0.0
        %1386 = vmatpush1.msra.mxu0 %v478
        %1387 = vmatprep.subr.mxu0 0.0
        %1388 = vmatpush1.msra.mxu0 %v479
        %1389 = vmatprep.subr.mxu0 0.0
        %1390 = vmatpush1.msra.mxu0 %v480
        %1391 = vmatprep.subr.mxu0 0.0
        %1392 = vmatpush1.msra.mxu0 %v481
        %1393 = vmatprep.subr.mxu0 0.0
        %1394 = vmatpush1.msra.mxu0 %v482
        %1395 = vmatprep.subr.mxu0 0.0
        %1396 = vmatpush1.msra.mxu0 %v483
        %1397 = vmatprep.subr.mxu0 0.0
        %1398 = vmatpush1.msra.mxu0 %v484
        %1399 = vmatprep.subr.mxu0 0.0
        %1400 = vmatpush1.msra.mxu0 %v485
        %1401 = vmatprep.subr.mxu0 0.0
        %1402 = vmatpush1.msra.mxu0 %v486
        %1403 = vmatprep.subr.mxu0 0.0
        %1404 = vmatpush1.msra.mxu0 %v487
        %1405 = vmatprep.subr.mxu0 0.0
        %1406 = vmatpush1.msra.mxu0 %v488
        %1407 = vmatprep.subr.mxu0 0.0
        %1408 = vmatpush1.msra.mxu0 %v489
        %1409 = vmatprep.subr.mxu0 0.0
        %1410 = vmatpush1.msra.mxu0 %v490
        %1411 = vmatprep.subr.mxu0 0.0
        %1412 = vmatpush1.msra.mxu0 %v491
        %1413 = vmatprep.subr.mxu0 0.0
        %1414 = vmatpush1.msra.mxu0 %v492
        %1415 = vmatprep.subr.mxu0 0.0
        %1416 = vmatpush1.msra.mxu0 %v493
        %1417 = vmatprep.subr.mxu0 0.0
        %1418 = vmatpush1.msra.mxu0 %v494
        %1419 = vmatprep.subr.mxu0 0.0
        %1420 = vmatpush1.msra.mxu0 %v495
        %1421 = vmatprep.subr.mxu0 0.0
        %1422 = vmatpush1.msra.mxu0 %v496
        %1423 = vmatprep.subr.mxu0 0.0
        %1424 = vmatpush1.msra.mxu0 %v497
        %1425 = vmatprep.subr.mxu0 0.0
        %1426 = vmatpush1.msra.mxu0 %v498
        %1427 = vmatprep.subr.mxu0 0.0
        %1428 = vmatpush1.msra.mxu0 %v499
        %1429 = vmatprep.subr.mxu0 0.0
        %1430 = vmatpush1.msra.mxu0 %v500
        %1431 = vmatprep.subr.mxu0 0.0
        %1432 = vmatpush1.msra.mxu0 %v501
        %1433 = vmatprep.subr.mxu0 0.0
        %1434 = vmatpush1.msra.mxu0 %v502
        %1435 = vmatprep.mubr.f32.mxu0 %v1283
        %1436 = vmatmul.mubr.f32.gmra.mrb[0].mxu0 %v1282
        %v1437 = vpop.f32.mrb[0].mxu0
        %v1438 = vadd.f32 %v1363, %v1437
        %v1439 = vpop.f32.mrb[0].mxu0
        %1440 = vmatprep.mubr.f32.mxu0 %v1291
        %1441 = vmatmul.mubr.f32.gmra.mrb[0].mxu0 %v1290
        %v1442 = vpop.f32.mrb[0].mxu0
        %v1443 = vadd.f32 %v1368, %v1442
        %v1444 = vpop.f32.mrb[0].mxu0
        %1445 = vdwg.mxu0
        %1446 = vmatprep.subr.mxu0 0.0
        %1447 = vmatpush1.msra.mxu0 %v503
        %1448 = vmatprep.subr.mxu0 0.0
        %1449 = vmatpush1.msra.mxu0 %v504
        %1450 = vmatprep.subr.mxu0 0.0
        %1451 = vmatpush1.msra.mxu0 %v505
        %1452 = vmatprep.subr.mxu0 0.0
        %1453 = vmatpush1.msra.mxu0 %v506
        %1454 = vmatprep.subr.mxu0 0.0
        %1455 = vmatpush1.msra.mxu0 %v507
        %1456 = vmatprep.subr.mxu0 0.0
        %1457 = vmatpush1.msra.mxu0 %v508
        %1458 = vmatprep.subr.mxu0 0.0
        %1459 = vmatpush1.msra.mxu0 %v509
        %1460 = vmatprep.subr.mxu0 0.0
        %1461 = vmatpush1.msra.mxu0 %v510
        %1462 = vmatprep.subr.mxu0 0.0
        %1463 = vmatpush1.msra.mxu0 %v511
        %1464 = vmatprep.subr.mxu0 0.0
        %1465 = vmatpush1.msra.mxu0 %v512
        %1466 = vmatprep.subr.mxu0 0.0
        %1467 = vmatpush1.msra.mxu0 %v513
        %1468 = vmatprep.subr.mxu0 0.0
        %1469 = vmatpush1.msra.mxu0 %v514
        %1470 = vmatprep.subr.mxu0 0.0
        %1471 = vmatpush1.msra.mxu0 %v515
        %1472 = vmatprep.subr.mxu0 0.0
        %1473 = vmatpush1.msra.mxu0 %v516
        %1474 = vmatprep.subr.mxu0 0.0
        %1475 = vmatpush1.msra.mxu0 %v517
        %1476 = vmatprep.subr.mxu0 0.0
        %1477 = vmatpush1.msra.mxu0 %v518
        %1478 = vmatprep.subr.mxu0 0.0
        %1479 = vmatpush1.msra.mxu0 %v519
        %1480 = vmatprep.subr.mxu0 0.0
        %1481 = vmatpush1.msra.mxu0 %v520
        %1482 = vmatprep.subr.mxu0 0.0
        %1483 = vmatpush1.msra.mxu0 %v521
        %1484 = vmatprep.subr.mxu0 0.0
        %1485 = vmatpush1.msra.mxu0 %v522
        %1486 = vmatprep.subr.mxu0 0.0
        %1487 = vmatpush1.msra.mxu0 %v523
        %1488 = vmatprep.subr.mxu0 0.0
        %1489 = vmatpush1.msra.mxu0 %v524
        %1490 = vmatprep.subr.mxu0 0.0
        %1491 = vmatpush1.msra.mxu0 %v525
        %1492 = vmatprep.subr.mxu0 0.0
        %1493 = vmatpush1.msra.mxu0 %v526
        %1494 = vmatprep.subr.mxu0 0.0
        %1495 = vmatpush1.msra.mxu0 %v527
        %1496 = vmatprep.subr.mxu0 0.0
        %1497 = vmatpush1.msra.mxu0 %v528
        %1498 = vmatprep.subr.mxu0 0.0
        %1499 = vmatpush1.msra.mxu0 %v529
        %1500 = vmatprep.subr.mxu0 0.0
        %1501 = vmatpush1.msra.mxu0 %v530
        %1502 = vmatprep.subr.mxu0 0.0
        %1503 = vmatpush1.msra.mxu0 %v531
        %1504 = vmatprep.subr.mxu0 0.0
        %1505 = vmatpush1.msra.mxu0 %v532
        %1506 = vmatprep.subr.mxu0 0.0
        %1507 = vmatpush1.msra.mxu0 %v533
        %1508 = vmatprep.subr.mxu0 0.0
        %1509 = vmatpush1.msra.mxu0 %v534
        %1510 = vmatprep.mubr.f32.mxu0 %v1285
        %1511 = vmatmul.mubr.f32.gmra.mrb[0].mxu0 %v1284
        %v1512 = vpop.f32.mrb[0].mxu0
        %v1513 = vadd.f32 %v1438, %v1512
        %v1514 = vpop.f32.mrb[0].mxu0
        %1515 = vmatprep.mubr.f32.mxu0 %v1293
        %1516 = vmatmul.mubr.f32.gmra.mrb[0].mxu0 %v1292
        %v1517 = vpop.f32.mrb[0].mxu0
        %v1518 = vadd.f32 %v1443, %v1517
        %v1519 = vpop.f32.mrb[0].mxu0
        %1520 = vdwg.mxu0
        %1521 = vmatprep.subr.mxu0 0.0
        %1522 = vmatpush1.msra.mxu0 %v535
        %1523 = vmatprep.subr.mxu0 0.0
        %1524 = vmatpush1.msra.mxu0 %v536
        %1525 = vmatprep.subr.mxu0 0.0
        %1526 = vmatpush1.msra.mxu0 %v537
        %1527 = vmatprep.subr.mxu0 0.0
        %1528 = vmatpush1.msra.mxu0 %v538
        %1529 = vmatprep.subr.mxu0 0.0
        %1530 = vmatpush1.msra.mxu0 %v539
        %1531 = vmatprep.subr.mxu0 0.0
        %1532 = vmatpush1.msra.mxu0 %v540
        %1533 = vmatprep.subr.mxu0 0.0
        %1534 = vmatpush1.msra.mxu0 %v541
        %1535 = vmatprep.subr.mxu0 0.0
        %1536 = vmatpush1.msra.mxu0 %v542
        %1537 = vmatprep.subr.mxu0 0.0
        %1538 = vmatpush1.msra.mxu0 %v543
        %1539 = vmatprep.subr.mxu0 0.0
        %1540 = vmatpush1.msra.mxu0 %v544
        %1541 = vmatprep.subr.mxu0 0.0
        %1542 = vmatpush1.msra.mxu0 %v545
        %1543 = vmatprep.subr.mxu0 0.0
        %1544 = vmatpush1.msra.mxu0 %v546
        %1545 = vmatprep.subr.mxu0 0.0
        %1546 = vmatpush1.msra.mxu0 %v547
        %1547 = vmatprep.subr.mxu0 0.0
        %1548 = vmatpush1.msra.mxu0 %v548
        %1549 = vmatprep.subr.mxu0 0.0
        %1550 = vmatpush1.msra.mxu0 %v549
        %1551 = vmatprep.subr.mxu0 0.0
        %1552 = vmatpush1.msra.mxu0 %v550
        %1553 = vmatprep.subr.mxu0 0.0
        %1554 = vmatpush1.msra.mxu0 %v551
        %1555 = vmatprep.subr.mxu0 0.0
        %1556 = vmatpush1.msra.mxu0 %v552
        %1557 = vmatprep.subr.mxu0 0.0
        %1558 = vmatpush1.msra.mxu0 %v553
        %1559 = vmatprep.subr.mxu0 0.0
        %1560 = vmatpush1.msra.mxu0 %v554
        %1561 = vmatprep.subr.mxu0 0.0
        %1562 = vmatpush1.msra.mxu0 %v555
        %1563 = vmatprep.subr.mxu0 0.0
        %1564 = vmatpush1.msra.mxu0 %v556
        %1565 = vmatprep.subr.mxu0 0.0
        %1566 = vmatpush1.msra.mxu0 %v557
        %1567 = vmatprep.subr.mxu0 0.0
        %1568 = vmatpush1.msra.mxu0 %v558
        %1569 = vmatprep.subr.mxu0 0.0
        %1570 = vmatpush1.msra.mxu0 %v559
        %1571 = vmatprep.subr.mxu0 0.0
        %1572 = vmatpush1.msra.mxu0 %v560
        %1573 = vmatprep.subr.mxu0 0.0
        %1574 = vmatpush1.msra.mxu0 %v561
        %1575 = vmatprep.subr.mxu0 0.0
        %1576 = vmatpush1.msra.mxu0 %v562
        %1577 = vmatprep.subr.mxu0 0.0
        %1578 = vmatpush1.msra.mxu0 %v563
        %1579 = vmatprep.subr.mxu0 0.0
        %1580 = vmatpush1.msra.mxu0 %v564
        %1581 = vmatprep.subr.mxu0 0.0
        %1582 = vmatpush1.msra.mxu0 %v565
        %1583 = vmatprep.subr.mxu0 0.0
        %1584 = vmatpush1.msra.mxu0 %v566
        %1585 = vmatprep.mubr.f32.mxu0 %v1287
        %1586 = vmatmul.mubr.f32.gmra.mrb[0].mxu0 %v1286
        %v1587 = vpop.f32.mrb[0].mxu0
        %v1588 = vadd.f32 %v1513, %v1587
        %v1589 = vpop.f32.mrb[0].mxu0
        %1590 = vmatprep.mubr.f32.mxu0 %v1295
        %1591 = vmatmul.mubr.f32.gmra.mrb[0].mxu0 %v1294
        %v1592 = vpop.f32.mrb[0].mxu0
        %v1593 = vadd.f32 %v1518, %v1592
        %v1594 = vpop.f32.mrb[0].mxu0
        %1595 = vdwg.mxu0
        %vm1596 = vcmask 130048
        %v1598 = vsel %vm1596, %v1093, 0
        %1600 = vmatprep.subr.mxu0 0.0
        %1601 = vmatpush1.msra.mxu0 %v1588
        %1602 = vmatprep.subr.mxu0 0.0
        %1603 = vmatpush1.msra.mxu0 %v1593
        %1604 = vmatprep.subr.mxu0 0.0
        %1605 = vmatpush1.msra.mxu0 0.0
        %1606 = vmatprep.subr.mxu0 0.0
        %1607 = vmatpush1.msra.mxu0 0.0
        %1608 = vmatprep.subr.mxu0 0.0
        %1609 = vmatpush1.msra.mxu0 0.0
        %1610 = vmatprep.subr.mxu0 0.0
        %1611 = vmatpush1.msra.mxu0 0.0
        %1612 = vmatprep.subr.mxu0 0.0
        %1613 = vmatpush1.msra.mxu0 0.0
        %1614 = vmatprep.subr.mxu0 0.0
        %1615 = vmatpush1.msra.mxu0 0.0
        %1616 = vmatprep.subr.mxu0 0.0
        %1617 = vmatpush1.msra.mxu0 0.0
        %1618 = vmatprep.subr.mxu0 0.0
        %1619 = vmatpush1.msra.mxu0 0.0
        %1620 = vmatprep.subr.mxu0 0.0
        %1621 = vmatpush1.msra.mxu0 0.0
        %1622 = vmatprep.subr.mxu0 0.0
        %1623 = vmatpush1.msra.mxu0 0.0
        %1624 = vmatprep.subr.mxu0 0.0
        %1625 = vmatpush1.msra.mxu0 0.0
        %1626 = vmatprep.subr.mxu0 0.0
        %1627 = vmatpush1.msra.mxu0 0.0
        %1628 = vmatprep.subr.mxu0 0.0
        %1629 = vmatpush1.msra.mxu0 0.0
        %1630 = vmatprep.subr.mxu0 0.0
        %1631 = vmatpush1.msra.mxu0 0.0
        %1632 = vmatprep.subr.mxu0 0.0
        %1633 = vmatpush1.msra.mxu0 0.0
        %1634 = vmatprep.subr.mxu0 0.0
        %1635 = vmatpush1.msra.mxu0 0.0
        %1636 = vmatprep.subr.mxu0 0.0
        %1637 = vmatpush1.msra.mxu0 0.0
        %1638 = vmatprep.subr.mxu0 0.0
        %1639 = vmatpush1.msra.mxu0 0.0
        %1640 = vmatprep.subr.mxu0 0.0
        %1641 = vmatpush1.msra.mxu0 0.0
        %1642 = vmatprep.subr.mxu0 0.0
        %1643 = vmatpush1.msra.mxu0 0.0
        %1644 = vmatprep.subr.mxu0 0.0
        %1645 = vmatpush1.msra.mxu0 0.0
        %1646 = vmatprep.subr.mxu0 0.0
        %1647 = vmatpush1.msra.mxu0 0.0
        %1648 = vmatprep.subr.mxu0 0.0
        %1649 = vmatpush1.msra.mxu0 0.0
        %1650 = vmatprep.subr.mxu0 0.0
        %1651 = vmatpush1.msra.mxu0 0.0
        %1652 = vmatprep.subr.mxu0 0.0
        %1653 = vmatpush1.msra.mxu0 0.0
        %1654 = vmatprep.subr.mxu0 0.0
        %1655 = vmatpush1.msra.mxu0 0.0
        %1656 = vmatprep.subr.mxu0 0.0
        %1657 = vmatpush1.msra.mxu0 0.0
        %1658 = vmatprep.subr.mxu0 0.0
        %1659 = vmatpush1.msra.mxu0 0.0
        %1660 = vmatprep.subr.mxu0 0.0
        %1661 = vmatpush1.msra.mxu0 0.0
        %1662 = vmatprep.subr.mxu0 0.0
        %1663 = vmatpush1.msra.mxu0 0.0
        %1664 = vmatprep.mubr.f32.mxu0 0.0
        %1665 = vmatmul.mubr.f32.gmra.mrb[0].mxu0 %v1598
        %v1666 = vpop.f32.mrb[0].mxu0
        %v1667 = vadd.f32 %v645, %v1666
        %v1668 = vpop.f32.mrb[0].mxu0
        %1669 = vdwg.mxu0
        %v1670 = vlaneseq
        %v1671 = vshrl.u32 %v1670, 7
        %v1672 = vsub.s32 0, %v1671
        %v1673 = vrot.slane %v399, %v1672
        %v1674 = vadd.f32 %v1667, %v1673
        %v1675 = vmax.f32 %v1674, 0.0
        %v1677 = vsel %vm571, %v1675, 0
        %1679 = vmatprep.subr.mxu0 0.0
        %1680 = vmatpush1.msra.mxu0 %v390
        %1681 = vmatprep.subr.mxu0 0.0
        %1682 = vmatpush1.msra.mxu0 %v391
        %1683 = vmatprep.subr.mxu0 0.0
        %1684 = vmatpush1.msra.mxu0 %v392
        %1685 = vmatprep.subr.mxu0 0.0
        %1686 = vmatpush1.msra.mxu0 %v393
        %1687 = vmatprep.subr.mxu0 0.0
        %1688 = vmatpush1.msra.mxu0 0.0
        %1689 = vmatprep.subr.mxu0 0.0
        %1690 = vmatpush1.msra.mxu0 0.0
        %1691 = vmatprep.subr.mxu0 0.0
        %1692 = vmatpush1.msra.mxu0 0.0
        %1693 = vmatprep.subr.mxu0 0.0
        %1694 = vmatpush1.msra.mxu0 0.0
        %1695 = vmatprep.subr.mxu0 0.0
        %1696 = vmatpush1.msra.mxu0 0.0
        %1697 = vmatprep.subr.mxu0 0.0
        %1698 = vmatpush1.msra.mxu0 0.0
        %1699 = vmatprep.subr.mxu0 0.0
        %1700 = vmatpush1.msra.mxu0 0.0
        %1701 = vmatprep.subr.mxu0 0.0
        %1702 = vmatpush1.msra.mxu0 0.0
        %1703 = vmatprep.subr.mxu0 0.0
        %1704 = vmatpush1.msra.mxu0 0.0
        %1705 = vmatprep.subr.mxu0 0.0
        %1706 = vmatpush1.msra.mxu0 0.0
        %1707 = vmatprep.subr.mxu0 0.0
        %1708 = vmatpush1.msra.mxu0 0.0
        %1709 = vmatprep.subr.mxu0 0.0
        %1710 = vmatpush1.msra.mxu0 0.0
        %1711 = vmatprep.subr.mxu0 0.0
        %1712 = vmatpush1.msra.mxu0 0.0
        %1713 = vmatprep.subr.mxu0 0.0
        %1714 = vmatpush1.msra.mxu0 0.0
        %1715 = vmatprep.subr.mxu0 0.0
        %1716 = vmatpush1.msra.mxu0 0.0
        %1717 = vmatprep.subr.mxu0 0.0
        %1718 = vmatpush1.msra.mxu0 0.0
        %1719 = vmatprep.subr.mxu0 0.0
        %1720 = vmatpush1.msra.mxu0 0.0
        %1721 = vmatprep.subr.mxu0 0.0
        %1722 = vmatpush1.msra.mxu0 0.0
        %1723 = vmatprep.subr.mxu0 0.0
        %1724 = vmatpush1.msra.mxu0 0.0
        %1725 = vmatprep.subr.mxu0 0.0
        %1726 = vmatpush1.msra.mxu0 0.0
        %1727 = vmatprep.subr.mxu0 0.0
        %1728 = vmatpush1.msra.mxu0 0.0
        %1729 = vmatprep.subr.mxu0 0.0
        %1730 = vmatpush1.msra.mxu0 0.0
        %1731 = vmatprep.subr.mxu0 0.0
        %1732 = vmatpush1.msra.mxu0 0.0
        %1733 = vmatprep.subr.mxu0 0.0
        %1734 = vmatpush1.msra.mxu0 0.0
        %1735 = vmatprep.subr.mxu0 0.0
        %1736 = vmatpush1.msra.mxu0 0.0
        %1737 = vmatprep.subr.mxu0 0.0
        %1738 = vmatpush1.msra.mxu0 0.0
        %1739 = vmatprep.subr.mxu0 0.0
        %1740 = vmatpush1.msra.mxu0 0.0
        %1741 = vmatprep.subr.mxu0 0.0
        %1742 = vmatpush1.msra.mxu0 0.0
        %1743 = vmatprep.mubr.f32.mxu0 0.0
        %1744 = vmatmul.mubr.f32.gmra.mrb[0].mxu0 %v1677
        %v1745 = vpop.f32.mrb[0].mxu0
        %v1746 = vadd.f32 %v1168, %v1745
        %v1747 = vpop.f32.mrb[0].mxu0
        %1748 = vdwg.mxu0
        %v1750 = vsel %vm571, %v1746, 0
        %1752 = vmatprep.subr.mxu0 0.0
        %1753 = vmatpush1.msra.mxu0 %v394
        %1754 = vmatprep.subr.mxu0 0.0
        %1755 = vmatpush1.msra.mxu0 %v395
        %1756 = vmatprep.subr.mxu0 0.0
        %1757 = vmatpush1.msra.mxu0 %v396
        %1758 = vmatprep.subr.mxu0 0.0
        %1759 = vmatpush1.msra.mxu0 %v397
        %1760 = vmatprep.subr.mxu0 0.0
        %1761 = vmatpush1.msra.mxu0 0.0
        %1762 = vmatprep.subr.mxu0 0.0
        %1763 = vmatpush1.msra.mxu0 0.0
        %1764 = vmatprep.subr.mxu0 0.0
        %1765 = vmatpush1.msra.mxu0 0.0
        %1766 = vmatprep.subr.mxu0 0.0
        %1767 = vmatpush1.msra.mxu0 0.0
        %1768 = vmatprep.subr.mxu0 0.0
        %1769 = vmatpush1.msra.mxu0 0.0
        %1770 = vmatprep.subr.mxu0 0.0
        %1771 = vmatpush1.msra.mxu0 0.0
        %1772 = vmatprep.subr.mxu0 0.0
        %1773 = vmatpush1.msra.mxu0 0.0
        %1774 = vmatprep.subr.mxu0 0.0
        %1775 = vmatpush1.msra.mxu0 0.0
        %1776 = vmatprep.subr.mxu0 0.0
        %1777 = vmatpush1.msra.mxu0 0.0
        %1778 = vmatprep.subr.mxu0 0.0
        %1779 = vmatpush1.msra.mxu0 0.0
        %1780 = vmatprep.subr.mxu0 0.0
        %1781 = vmatpush1.msra.mxu0 0.0
        %1782 = vmatprep.subr.mxu0 0.0
        %1783 = vmatpush1.msra.mxu0 0.0
        %1784 = vmatprep.subr.mxu0 0.0
        %1785 = vmatpush1.msra.mxu0 0.0
        %1786 = vmatprep.subr.mxu0 0.0
        %1787 = vmatpush1.msra.mxu0 0.0
        %1788 = vmatprep.subr.mxu0 0.0
        %1789 = vmatpush1.msra.mxu0 0.0
        %1790 = vmatprep.subr.mxu0 0.0
        %1791 = vmatpush1.msra.mxu0 0.0
        %1792 = vmatprep.subr.mxu0 0.0
        %1793 = vmatpush1.msra.mxu0 0.0
        %1794 = vmatprep.subr.mxu0 0.0
        %1795 = vmatpush1.msra.mxu0 0.0
        %1796 = vmatprep.subr.mxu0 0.0
        %1797 = vmatpush1.msra.mxu0 0.0
        %1798 = vmatprep.subr.mxu0 0.0
        %1799 = vmatpush1.msra.mxu0 0.0
        %1800 = vmatprep.subr.mxu0 0.0
        %1801 = vmatpush1.msra.mxu0 0.0
        %1802 = vmatprep.subr.mxu0 0.0
        %1803 = vmatpush1.msra.mxu0 0.0
        %1804 = vmatprep.subr.mxu0 0.0
        %1805 = vmatpush1.msra.mxu0 0.0
        %1806 = vmatprep.subr.mxu0 0.0
        %1807 = vmatpush1.msra.mxu0 0.0
        %1808 = vmatprep.subr.mxu0 0.0
        %1809 = vmatpush1.msra.mxu0 0.0
        %1810 = vmatprep.subr.mxu0 0.0
        %1811 = vmatpush1.msra.mxu0 0.0
        %1812 = vmatprep.subr.mxu0 0.0
        %1813 = vmatpush1.msra.mxu0 0.0
        %1814 = vmatprep.subr.mxu0 0.0
        %1815 = vmatpush1.msra.mxu0 0.0
        %1816 = vmatprep.mubr.f32.mxu0 0.0
        %1817 = vmatmul.mubr.f32.gmra.mrb[0].mxu0 %v1750
        %v1818 = vpop.f32.mrb[0].mxu0
        %v1819 = vadd.f32 %v1097, %v1818
        %v1820 = vpop.f32.mrb[0].mxu0
        %1821 = vdwg.mxu0
        %1822 = vmatprep.subr.mxu0 0.0
        %1823 = vmatpush1.msra.mxu0 %v1746
        %1824 = vmatprep.subr.mxu0 0.0
        %1825 = vmatpush1.msra.mxu0 0.0
        %1826 = vmatprep.subr.mxu0 0.0
        %1827 = vmatpush1.msra.mxu0 0.0
        %1828 = vmatprep.subr.mxu0 0.0
        %1829 = vmatpush1.msra.mxu0 0.0
        %1830 = vmatprep.subr.mxu0 0.0
        %1831 = vmatpush1.msra.mxu0 0.0
        %1832 = vmatprep.subr.mxu0 0.0
        %1833 = vmatpush1.msra.mxu0 0.0
        %1834 = vmatprep.subr.mxu0 0.0
        %1835 = vmatpush1.msra.mxu0 0.0
        %1836 = vmatprep.subr.mxu0 0.0
        %1837 = vmatpush1.msra.mxu0 0.0
        %1838 = vmatprep.subr.mxu0 0.0
        %1839 = vmatpush1.msra.mxu0 0.0
        %1840 = vmatprep.subr.mxu0 0.0
        %1841 = vmatpush1.msra.mxu0 0.0
        %1842 = vmatprep.subr.mxu0 0.0
        %1843 = vmatpush1.msra.mxu0 0.0
        %1844 = vmatprep.subr.mxu0 0.0
        %1845 = vmatpush1.msra.mxu0 0.0
        %1846 = vmatprep.subr.mxu0 0.0
        %1847 = vmatpush1.msra.mxu0 0.0
        %1848 = vmatprep.subr.mxu0 0.0
        %1849 = vmatpush1.msra.mxu0 0.0
        %1850 = vmatprep.subr.mxu0 0.0
        %1851 = vmatpush1.msra.mxu0 0.0
        %1852 = vmatprep.subr.mxu0 0.0
        %1853 = vmatpush1.msra.mxu0 0.0
        %1854 = vmatprep.subr.mxu0 0.0
        %1855 = vmatpush1.msra.mxu0 0.0
        %1856 = vmatprep.subr.mxu0 0.0
        %1857 = vmatpush1.msra.mxu0 0.0
        %1858 = vmatprep.subr.mxu0 0.0
        %1859 = vmatpush1.msra.mxu0 0.0
        %1860 = vmatprep.subr.mxu0 0.0
        %1861 = vmatpush1.msra.mxu0 0.0
        %1862 = vmatprep.subr.mxu0 0.0
        %1863 = vmatpush1.msra.mxu0 0.0
        %1864 = vmatprep.subr.mxu0 0.0
        %1865 = vmatpush1.msra.mxu0 0.0
        %1866 = vmatprep.subr.mxu0 0.0
        %1867 = vmatpush1.msra.mxu0 0.0
        %1868 = vmatprep.subr.mxu0 0.0
        %1869 = vmatpush1.msra.mxu0 0.0
        %1870 = vmatprep.subr.mxu0 0.0
        %1871 = vmatpush1.msra.mxu0 0.0
        %1872 = vmatprep.subr.mxu0 0.0
        %1873 = vmatpush1.msra.mxu0 0.0
        %1874 = vmatprep.subr.mxu0 0.0
        %1875 = vmatpush1.msra.mxu0 0.0
        %1876 = vmatprep.subr.mxu0 0.0
        %1877 = vmatpush1.msra.mxu0 0.0
        %1878 = vmatprep.subr.mxu0 0.0
        %1879 = vmatpush1.msra.mxu0 0.0
        %1880 = vmatprep.subr.mxu0 0.0
        %1881 = vmatpush1.msra.mxu0 0.0
        %1882 = vmatprep.subr.mxu0 0.0
        %1883 = vmatpush1.msra.mxu0 0.0
        %1884 = vmatprep.subr.mxu0 0.0
        %1885 = vmatpush1.msra.mxu0 0.0
        %1886 = vmatprep.mubr.f32.mxu0 0.0
        %1887 = vmatmul.mubr.f32.gmra.mrb[0].mxu0 %v1172
        %v1888 = vpop.f32.mrb[0].mxu0
        %v1889 = vadd.f32 0.0, %v1888
        %v1890 = vpop.f32.mrb[0].mxu0
        %1891 = vmatprep.mubr.f32.mxu0 0.0
        %1892 = vmatmul.mubr.f32.gmra.mrb[0].mxu0 %v1175
        %v1893 = vpop.f32.mrb[0].mxu0
        %v1894 = vadd.f32 0.0, %v1893
        %v1895 = vpop.f32.mrb[0].mxu0
        %1896 = vdwg.mxu0
        %1899 = vrot.lane.b32.xlu0 %v1889, 32
        %v1900 = vpop.permute.xlu0 %1899
        %1901 = vrot.lane.b32.xlu0 %v1894, 32
        %v1902 = vpop.permute.xlu0 %1901
        %1905 = vrot.lane.b32.xlu0 %v1889, 64
        %v1906 = vpop.permute.xlu0 %1905
        %1907 = vrot.lane.b32.xlu0 %v1894, 64
        %v1908 = vpop.permute.xlu0 %1907
        %1911 = vrot.lane.b32.xlu0 %v1889, 96
        %v1912 = vpop.permute.xlu0 %1911
        %1913 = vrot.lane.b32.xlu0 %v1894, 96
        %v1914 = vpop.permute.xlu0 %1913
        %v1917 = vsel %vm571, %v1889, %v1900
        %v1918 = vsel %vm571, %v1894, %v1902
        %v1919 = vsel %vm1274, %v1917, %v1906
        %v1920 = vsel %vm1274, %v1918, %v1908
        %v1921 = vsel %vm1277, %v1919, %v1912
        %v1922 = vsel %vm1277, %v1920, %v1914
        %v1923 = vmul.f32 %v1921, %v850
        %v1924 = vmul.f32 %v1921, %v852
        %v1925 = vmul.f32 %v1921, %v927
        %v1926 = vmul.f32 %v1921, %v929
        %v1927 = vmul.f32 %v1921, %v1004
        %v1928 = vmul.f32 %v1921, %v1006
        %v1929 = vmul.f32 %v1921, %v1081
        %v1930 = vmul.f32 %v1921, %v1083
        %v1931 = vmul.f32 %v1922, %v856
        %v1932 = vmul.f32 %v1922, %v858
        %v1933 = vmul.f32 %v1922, %v933
        %v1934 = vmul.f32 %v1922, %v935
        %v1935 = vmul.f32 %v1922, %v1010
        %v1936 = vmul.f32 %v1922, %v1012
        %v1937 = vmul.f32 %v1922, %v1087
        %v1938 = vmul.f32 %v1922, %v1089
        %1939 = vmatprep.subr.mxu0 0.0
        %1940 = vmatpush1.msra.mxu0 %v439
        %1941 = vmatprep.subr.mxu0 0.0
        %1942 = vmatpush1.msra.mxu0 %v440
        %1943 = vmatprep.subr.mxu0 0.0
        %1944 = vmatpush1.msra.mxu0 %v441
        %1945 = vmatprep.subr.mxu0 0.0
        %1946 = vmatpush1.msra.mxu0 %v442
        %1947 = vmatprep.subr.mxu0 0.0
        %1948 = vmatpush1.msra.mxu0 %v443
        %1949 = vmatprep.subr.mxu0 0.0
        %1950 = vmatpush1.msra.mxu0 %v444
        %1951 = vmatprep.subr.mxu0 0.0
        %1952 = vmatpush1.msra.mxu0 %v445
        %1953 = vmatprep.subr.mxu0 0.0
        %1954 = vmatpush1.msra.mxu0 %v446
        %1955 = vmatprep.subr.mxu0 0.0
        %1956 = vmatpush1.msra.mxu0 %v447
        %1957 = vmatprep.subr.mxu0 0.0
        %1958 = vmatpush1.msra.mxu0 %v448
        %1959 = vmatprep.subr.mxu0 0.0
        %1960 = vmatpush1.msra.mxu0 %v449
        %1961 = vmatprep.subr.mxu0 0.0
        %1962 = vmatpush1.msra.mxu0 %v450
        %1963 = vmatprep.subr.mxu0 0.0
        %1964 = vmatpush1.msra.mxu0 %v451
        %1965 = vmatprep.subr.mxu0 0.0
        %1966 = vmatpush1.msra.mxu0 %v452
        %1967 = vmatprep.subr.mxu0 0.0
        %1968 = vmatpush1.msra.mxu0 %v453
        %1969 = vmatprep.subr.mxu0 0.0
        %1970 = vmatpush1.msra.mxu0 %v454
        %1971 = vmatprep.subr.mxu0 0.0
        %1972 = vmatpush1.msra.mxu0 %v455
        %1973 = vmatprep.subr.mxu0 0.0
        %1974 = vmatpush1.msra.mxu0 %v456
        %1975 = vmatprep.subr.mxu0 0.0
        %1976 = vmatpush1.msra.mxu0 %v457
        %1977 = vmatprep.subr.mxu0 0.0
        %1978 = vmatpush1.msra.mxu0 %v458
        %1979 = vmatprep.subr.mxu0 0.0
        %1980 = vmatpush1.msra.mxu0 %v459
        %1981 = vmatprep.subr.mxu0 0.0
        %1982 = vmatpush1.msra.mxu0 %v460
        %1983 = vmatprep.subr.mxu0 0.0
        %1984 = vmatpush1.msra.mxu0 %v461
        %1985 = vmatprep.subr.mxu0 0.0
        %1986 = vmatpush1.msra.mxu0 %v462
        %1987 = vmatprep.subr.mxu0 0.0
        %1988 = vmatpush1.msra.mxu0 %v463
        %1989 = vmatprep.subr.mxu0 0.0
        %1990 = vmatpush1.msra.mxu0 %v464
        %1991 = vmatprep.subr.mxu0 0.0
        %1992 = vmatpush1.msra.mxu0 %v465
        %1993 = vmatprep.subr.mxu0 0.0
        %1994 = vmatpush1.msra.mxu0 %v466
        %1995 = vmatprep.subr.mxu0 0.0
        %1996 = vmatpush1.msra.mxu0 %v467
        %1997 = vmatprep.subr.mxu0 0.0
        %1998 = vmatpush1.msra.mxu0 %v468
        %1999 = vmatprep.subr.mxu0 0.0
        %2000 = vmatpush1.msra.mxu0 %v469
        %2001 = vmatprep.subr.mxu0 0.0
        %2002 = vmatpush1.msra.mxu0 %v470
        %2003 = vmatprep.mubr.f32.mxu0 %v1924
        %2004 = vmatmul.mubr.f32.gmra.mrb[0].mxu0 %v1923
        %v2005 = vpop.f32.mrb[0].mxu0
        %v2006 = vadd.f32 0.0, %v2005
        %v2007 = vpop.f32.mrb[0].mxu0
        %2008 = vmatprep.mubr.f32.mxu0 %v1932
        %2009 = vmatmul.mubr.f32.gmra.mrb[0].mxu0 %v1931
        %v2010 = vpop.f32.mrb[0].mxu0
        %v2011 = vadd.f32 0.0, %v2010
        %v2012 = vpop.f32.mrb[0].mxu0
        %2013 = vdwg.mxu0
        %2014 = vmatprep.subr.mxu0 0.0
        %2015 = vmatpush1.msra.mxu0 %v471
        %2016 = vmatprep.subr.mxu0 0.0
        %2017 = vmatpush1.msra.mxu0 %v472
        %2018 = vmatprep.subr.mxu0 0.0
        %2019 = vmatpush1.msra.mxu0 %v473
        %2020 = vmatprep.subr.mxu0 0.0
        %2021 = vmatpush1.msra.mxu0 %v474
        %2022 = vmatprep.subr.mxu0 0.0
        %2023 = vmatpush1.msra.mxu0 %v475
        %2024 = vmatprep.subr.mxu0 0.0
        %2025 = vmatpush1.msra.mxu0 %v476
        %2026 = vmatprep.subr.mxu0 0.0
        %2027 = vmatpush1.msra.mxu0 %v477
        %2028 = vmatprep.subr.mxu0 0.0
        %2029 = vmatpush1.msra.mxu0 %v478
        %2030 = vmatprep.subr.mxu0 0.0
        %2031 = vmatpush1.msra.mxu0 %v479
        %2032 = vmatprep.subr.mxu0 0.0
        %2033 = vmatpush1.msra.mxu0 %v480
        %2034 = vmatprep.subr.mxu0 0.0
        %2035 = vmatpush1.msra.mxu0 %v481
        %2036 = vmatprep.subr.mxu0 0.0
        %2037 = vmatpush1.msra.mxu0 %v482
        %2038 = vmatprep.subr.mxu0 0.0
        %2039 = vmatpush1.msra.mxu0 %v483
        %2040 = vmatprep.subr.mxu0 0.0
        %2041 = vmatpush1.msra.mxu0 %v484
        %2042 = vmatprep.subr.mxu0 0.0
        %2043 = vmatpush1.msra.mxu0 %v485
        %2044 = vmatprep.subr.mxu0 0.0
        %2045 = vmatpush1.msra.mxu0 %v486
        %2046 = vmatprep.subr.mxu0 0.0
        %2047 = vmatpush1.msra.mxu0 %v487
        %2048 = vmatprep.subr.mxu0 0.0
        %2049 = vmatpush1.msra.mxu0 %v488
        %2050 = vmatprep.subr.mxu0 0.0
        %2051 = vmatpush1.msra.mxu0 %v489
        %2052 = vmatprep.subr.mxu0 0.0
        %2053 = vmatpush1.msra.mxu0 %v490
        %2054 = vmatprep.subr.mxu0 0.0
        %2055 = vmatpush1.msra.mxu0 %v491
        %2056 = vmatprep.subr.mxu0 0.0
        %2057 = vmatpush1.msra.mxu0 %v492
        %2058 = vmatprep.subr.mxu0 0.0
        %2059 = vmatpush1.msra.mxu0 %v493
        %2060 = vmatprep.subr.mxu0 0.0
        %2061 = vmatpush1.msra.mxu0 %v494
        %2062 = vmatprep.subr.mxu0 0.0
        %2063 = vmatpush1.msra.mxu0 %v495
        %2064 = vmatprep.subr.mxu0 0.0
        %2065 = vmatpush1.msra.mxu0 %v496
        %2066 = vmatprep.subr.mxu0 0.0
        %2067 = vmatpush1.msra.mxu0 %v497
        %2068 = vmatprep.subr.mxu0 0.0
        %2069 = vmatpush1.msra.mxu0 %v498
        %2070 = vmatprep.subr.mxu0 0.0
        %2071 = vmatpush1.msra.mxu0 %v499
        %2072 = vmatprep.subr.mxu0 0.0
        %2073 = vmatpush1.msra.mxu0 %v500
        %2074 = vmatprep.subr.mxu0 0.0
        %2075 = vmatpush1.msra.mxu0 %v501
        %2076 = vmatprep.subr.mxu0 0.0
        %2077 = vmatpush1.msra.mxu0 %v502
        %2078 = vmatprep.mubr.f32.mxu0 %v1926
        %2079 = vmatmul.mubr.f32.gmra.mrb[0].mxu0 %v1925
        %v2080 = vpop.f32.mrb[0].mxu0
        %v2081 = vadd.f32 %v2006, %v2080
        %v2082 = vpop.f32.mrb[0].mxu0
        %2083 = vmatprep.mubr.f32.mxu0 %v1934
        %2084 = vmatmul.mubr.f32.gmra.mrb[0].mxu0 %v1933
        %v2085 = vpop.f32.mrb[0].mxu0
        %v2086 = vadd.f32 %v2011, %v2085
        %v2087 = vpop.f32.mrb[0].mxu0
        %2088 = vdwg.mxu0
        %2089 = vmatprep.subr.mxu0 0.0
        %2090 = vmatpush1.msra.mxu0 %v503
        %2091 = vmatprep.subr.mxu0 0.0
        %2092 = vmatpush1.msra.mxu0 %v504
        %2093 = vmatprep.subr.mxu0 0.0
        %2094 = vmatpush1.msra.mxu0 %v505
        %2095 = vmatprep.subr.mxu0 0.0
        %2096 = vmatpush1.msra.mxu0 %v506
        %2097 = vmatprep.subr.mxu0 0.0
        %2098 = vmatpush1.msra.mxu0 %v507
        %2099 = vmatprep.subr.mxu0 0.0
        %2100 = vmatpush1.msra.mxu0 %v508
        %2101 = vmatprep.subr.mxu0 0.0
        %2102 = vmatpush1.msra.mxu0 %v509
        %2103 = vmatprep.subr.mxu0 0.0
        %2104 = vmatpush1.msra.mxu0 %v510
        %2105 = vmatprep.subr.mxu0 0.0
        %2106 = vmatpush1.msra.mxu0 %v511
        %2107 = vmatprep.subr.mxu0 0.0
        %2108 = vmatpush1.msra.mxu0 %v512
        %2109 = vmatprep.subr.mxu0 0.0
        %2110 = vmatpush1.msra.mxu0 %v513
        %2111 = vmatprep.subr.mxu0 0.0
        %2112 = vmatpush1.msra.mxu0 %v514
        %2113 = vmatprep.subr.mxu0 0.0
        %2114 = vmatpush1.msra.mxu0 %v515
        %2115 = vmatprep.subr.mxu0 0.0
        %2116 = vmatpush1.msra.mxu0 %v516
        %2117 = vmatprep.subr.mxu0 0.0
        %2118 = vmatpush1.msra.mxu0 %v517
        %2119 = vmatprep.subr.mxu0 0.0
        %2120 = vmatpush1.msra.mxu0 %v518
        %2121 = vmatprep.subr.mxu0 0.0
        %2122 = vmatpush1.msra.mxu0 %v519
        %2123 = vmatprep.subr.mxu0 0.0
        %2124 = vmatpush1.msra.mxu0 %v520
        %2125 = vmatprep.subr.mxu0 0.0
        %2126 = vmatpush1.msra.mxu0 %v521
        %2127 = vmatprep.subr.mxu0 0.0
        %2128 = vmatpush1.msra.mxu0 %v522
        %2129 = vmatprep.subr.mxu0 0.0
        %2130 = vmatpush1.msra.mxu0 %v523
        %2131 = vmatprep.subr.mxu0 0.0
        %2132 = vmatpush1.msra.mxu0 %v524
        %2133 = vmatprep.subr.mxu0 0.0
        %2134 = vmatpush1.msra.mxu0 %v525
        %2135 = vmatprep.subr.mxu0 0.0
        %2136 = vmatpush1.msra.mxu0 %v526
        %2137 = vmatprep.subr.mxu0 0.0
        %2138 = vmatpush1.msra.mxu0 %v527
        %2139 = vmatprep.subr.mxu0 0.0
        %2140 = vmatpush1.msra.mxu0 %v528
        %2141 = vmatprep.subr.mxu0 0.0
        %2142 = vmatpush1.msra.mxu0 %v529
        %2143 = vmatprep.subr.mxu0 0.0
        %2144 = vmatpush1.msra.mxu0 %v530
        %2145 = vmatprep.subr.mxu0 0.0
        %2146 = vmatpush1.msra.mxu0 %v531
        %2147 = vmatprep.subr.mxu0 0.0
        %2148 = vmatpush1.msra.mxu0 %v532
        %2149 = vmatprep.subr.mxu0 0.0
        %2150 = vmatpush1.msra.mxu0 %v533
        %2151 = vmatprep.subr.mxu0 0.0
        %2152 = vmatpush1.msra.mxu0 %v534
        %2153 = vmatprep.mubr.f32.mxu0 %v1928
        %2154 = vmatmul.mubr.f32.gmra.mrb[0].mxu0 %v1927
        %v2155 = vpop.f32.mrb[0].mxu0
        %v2156 = vadd.f32 %v2081, %v2155
        %v2157 = vpop.f32.mrb[0].mxu0
        %2158 = vmatprep.mubr.f32.mxu0 %v1936
        %2159 = vmatmul.mubr.f32.gmra.mrb[0].mxu0 %v1935
        %v2160 = vpop.f32.mrb[0].mxu0
        %v2161 = vadd.f32 %v2086, %v2160
        %v2162 = vpop.f32.mrb[0].mxu0
        %2163 = vdwg.mxu0
        %2164 = vmatprep.subr.mxu0 0.0
        %2165 = vmatpush1.msra.mxu0 %v535
        %2166 = vmatprep.subr.mxu0 0.0
        %2167 = vmatpush1.msra.mxu0 %v536
        %2168 = vmatprep.subr.mxu0 0.0
        %2169 = vmatpush1.msra.mxu0 %v537
        %2170 = vmatprep.subr.mxu0 0.0
        %2171 = vmatpush1.msra.mxu0 %v538
        %2172 = vmatprep.subr.mxu0 0.0
        %2173 = vmatpush1.msra.mxu0 %v539
        %2174 = vmatprep.subr.mxu0 0.0
        %2175 = vmatpush1.msra.mxu0 %v540
        %2176 = vmatprep.subr.mxu0 0.0
        %2177 = vmatpush1.msra.mxu0 %v541
        %2178 = vmatprep.subr.mxu0 0.0
        %2179 = vmatpush1.msra.mxu0 %v542
        %2180 = vmatprep.subr.mxu0 0.0
        %2181 = vmatpush1.msra.mxu0 %v543
        %2182 = vmatprep.subr.mxu0 0.0
        %2183 = vmatpush1.msra.mxu0 %v544
        %2184 = vmatprep.subr.mxu0 0.0
        %2185 = vmatpush1.msra.mxu0 %v545
        %2186 = vmatprep.subr.mxu0 0.0
        %2187 = vmatpush1.msra.mxu0 %v546
        %2188 = vmatprep.subr.mxu0 0.0
        %2189 = vmatpush1.msra.mxu0 %v547
        %2190 = vmatprep.subr.mxu0 0.0
        %2191 = vmatpush1.msra.mxu0 %v548
        %2192 = vmatprep.subr.mxu0 0.0
        %2193 = vmatpush1.msra.mxu0 %v549
        %2194 = vmatprep.subr.mxu0 0.0
        %2195 = vmatpush1.msra.mxu0 %v550
        %2196 = vmatprep.subr.mxu0 0.0
        %2197 = vmatpush1.msra.mxu0 %v551
        %2198 = vmatprep.subr.mxu0 0.0
        %2199 = vmatpush1.msra.mxu0 %v552
        %2200 = vmatprep.subr.mxu0 0.0
        %2201 = vmatpush1.msra.mxu0 %v553
        %2202 = vmatprep.subr.mxu0 0.0
        %2203 = vmatpush1.msra.mxu0 %v554
        %2204 = vmatprep.subr.mxu0 0.0
        %2205 = vmatpush1.msra.mxu0 %v555
        %2206 = vmatprep.subr.mxu0 0.0
        %2207 = vmatpush1.msra.mxu0 %v556
        %2208 = vmatprep.subr.mxu0 0.0
        %2209 = vmatpush1.msra.mxu0 %v557
        %2210 = vmatprep.subr.mxu0 0.0
        %2211 = vmatpush1.msra.mxu0 %v558
        %2212 = vmatprep.subr.mxu0 0.0
        %2213 = vmatpush1.msra.mxu0 %v559
        %2214 = vmatprep.subr.mxu0 0.0
        %2215 = vmatpush1.msra.mxu0 %v560
        %2216 = vmatprep.subr.mxu0 0.0
        %2217 = vmatpush1.msra.mxu0 %v561
        %2218 = vmatprep.subr.mxu0 0.0
        %2219 = vmatpush1.msra.mxu0 %v562
        %2220 = vmatprep.subr.mxu0 0.0
        %2221 = vmatpush1.msra.mxu0 %v563
        %2222 = vmatprep.subr.mxu0 0.0
        %2223 = vmatpush1.msra.mxu0 %v564
        %2224 = vmatprep.subr.mxu0 0.0
        %2225 = vmatpush1.msra.mxu0 %v565
        %2226 = vmatprep.subr.mxu0 0.0
        %2227 = vmatpush1.msra.mxu0 %v566
        %2228 = vmatprep.mubr.f32.mxu0 %v1930
        %2229 = vmatmul.mubr.f32.gmra.mrb[0].mxu0 %v1929
        %v2230 = vpop.f32.mrb[0].mxu0
        %v2231 = vadd.f32 %v2156, %v2230
        %v2232 = vpop.f32.mrb[0].mxu0
        %2233 = vmatprep.mubr.f32.mxu0 %v1938
        %2234 = vmatmul.mubr.f32.gmra.mrb[0].mxu0 %v1937
        %v2235 = vpop.f32.mrb[0].mxu0
        %v2236 = vadd.f32 %v2161, %v2235
        %v2237 = vpop.f32.mrb[0].mxu0
        %2238 = vdwg.mxu0
        %2239 = vmatprep.subr.mxu0 0.0
        %2240 = vmatpush1.msra.mxu0 %v2231
        %2241 = vmatprep.subr.mxu0 0.0
        %2242 = vmatpush1.msra.mxu0 %v2236
        %2243 = vmatprep.subr.mxu0 0.0
        %2244 = vmatpush1.msra.mxu0 0.0
        %2245 = vmatprep.subr.mxu0 0.0
        %2246 = vmatpush1.msra.mxu0 0.0
        %2247 = vmatprep.subr.mxu0 0.0
        %2248 = vmatpush1.msra.mxu0 0.0
        %2249 = vmatprep.subr.mxu0 0.0
        %2250 = vmatpush1.msra.mxu0 0.0
        %2251 = vmatprep.subr.mxu0 0.0
        %2252 = vmatpush1.msra.mxu0 0.0
        %2253 = vmatprep.subr.mxu0 0.0
        %2254 = vmatpush1.msra.mxu0 0.0
        %2255 = vmatprep.subr.mxu0 0.0
        %2256 = vmatpush1.msra.mxu0 0.0
        %2257 = vmatprep.subr.mxu0 0.0
        %2258 = vmatpush1.msra.mxu0 0.0
        %2259 = vmatprep.subr.mxu0 0.0
        %2260 = vmatpush1.msra.mxu0 0.0
        %2261 = vmatprep.subr.mxu0 0.0
        %2262 = vmatpush1.msra.mxu0 0.0
        %2263 = vmatprep.subr.mxu0 0.0
        %2264 = vmatpush1.msra.mxu0 0.0
        %2265 = vmatprep.subr.mxu0 0.0
        %2266 = vmatpush1.msra.mxu0 0.0
        %2267 = vmatprep.subr.mxu0 0.0
        %2268 = vmatpush1.msra.mxu0 0.0
        %2269 = vmatprep.subr.mxu0 0.0
        %2270 = vmatpush1.msra.mxu0 0.0
        %2271 = vmatprep.subr.mxu0 0.0
        %2272 = vmatpush1.msra.mxu0 0.0
        %2273 = vmatprep.subr.mxu0 0.0
        %2274 = vmatpush1.msra.mxu0 0.0
        %2275 = vmatprep.subr.mxu0 0.0
        %2276 = vmatpush1.msra.mxu0 0.0
        %2277 = vmatprep.subr.mxu0 0.0
        %2278 = vmatpush1.msra.mxu0 0.0
        %2279 = vmatprep.subr.mxu0 0.0
        %2280 = vmatpush1.msra.mxu0 0.0
        %2281 = vmatprep.subr.mxu0 0.0
        %2282 = vmatpush1.msra.mxu0 0.0
        %2283 = vmatprep.subr.mxu0 0.0
        %2284 = vmatpush1.msra.mxu0 0.0
        %2285 = vmatprep.subr.mxu0 0.0
        %2286 = vmatpush1.msra.mxu0 0.0
        %2287 = vmatprep.subr.mxu0 0.0
        %2288 = vmatpush1.msra.mxu0 0.0
        %2289 = vmatprep.subr.mxu0 0.0
        %2290 = vmatpush1.msra.mxu0 0.0
        %2291 = vmatprep.subr.mxu0 0.0
        %2292 = vmatpush1.msra.mxu0 0.0
        %2293 = vmatprep.subr.mxu0 0.0
        %2294 = vmatpush1.msra.mxu0 0.0
        %2295 = vmatprep.subr.mxu0 0.0
        %2296 = vmatpush1.msra.mxu0 0.0
        %2297 = vmatprep.subr.mxu0 0.0
        %2298 = vmatpush1.msra.mxu0 0.0
        %2299 = vmatprep.subr.mxu0 0.0
        %2300 = vmatpush1.msra.mxu0 0.0
        %2301 = vmatprep.subr.mxu0 0.0
        %2302 = vmatpush1.msra.mxu0 0.0
        %2303 = vmatprep.mubr.f32.mxu0 0.0
        %2304 = vmatmul.mubr.f32.gmra.mrb[0].mxu0 %v1598
        %v2305 = vpop.f32.mrb[0].mxu0
        %v2306 = vadd.f32 %v1746, %v2305
        %v2307 = vpop.f32.mrb[0].mxu0
        %2308 = vdwg.mxu0
        %v2309 = vadd.f32 %v2306, %v1673
        %v2310 = vmax.f32 %v2309, 0.0
        %v2312 = vsel %vm571, %v2310, 0
        %2314 = vmatprep.subr.mxu0 0.0
        %2315 = vmatpush1.msra.mxu0 %v390
        %2316 = vmatprep.subr.mxu0 0.0
        %2317 = vmatpush1.msra.mxu0 %v391
        %2318 = vmatprep.subr.mxu0 0.0
        %2319 = vmatpush1.msra.mxu0 %v392
        %2320 = vmatprep.subr.mxu0 0.0
        %2321 = vmatpush1.msra.mxu0 %v393
        %2322 = vmatprep.subr.mxu0 0.0
        %2323 = vmatpush1.msra.mxu0 0.0
        %2324 = vmatprep.subr.mxu0 0.0
        %2325 = vmatpush1.msra.mxu0 0.0
        %2326 = vmatprep.subr.mxu0 0.0
        %2327 = vmatpush1.msra.mxu0 0.0
        %2328 = vmatprep.subr.mxu0 0.0
        %2329 = vmatpush1.msra.mxu0 0.0
        %2330 = vmatprep.subr.mxu0 0.0
        %2331 = vmatpush1.msra.mxu0 0.0
        %2332 = vmatprep.subr.mxu0 0.0
        %2333 = vmatpush1.msra.mxu0 0.0
        %2334 = vmatprep.subr.mxu0 0.0
        %2335 = vmatpush1.msra.mxu0 0.0
        %2336 = vmatprep.subr.mxu0 0.0
        %2337 = vmatpush1.msra.mxu0 0.0
        %2338 = vmatprep.subr.mxu0 0.0
        %2339 = vmatpush1.msra.mxu0 0.0
        %2340 = vmatprep.subr.mxu0 0.0
        %2341 = vmatpush1.msra.mxu0 0.0
        %2342 = vmatprep.subr.mxu0 0.0
        %2343 = vmatpush1.msra.mxu0 0.0
        %2344 = vmatprep.subr.mxu0 0.0
        %2345 = vmatpush1.msra.mxu0 0.0
        %2346 = vmatprep.subr.mxu0 0.0
        %2347 = vmatpush1.msra.mxu0 0.0
        %2348 = vmatprep.subr.mxu0 0.0
        %2349 = vmatpush1.msra.mxu0 0.0
        %2350 = vmatprep.subr.mxu0 0.0
        %2351 = vmatpush1.msra.mxu0 0.0
        %2352 = vmatprep.subr.mxu0 0.0
        %2353 = vmatpush1.msra.mxu0 0.0
        %2354 = vmatprep.subr.mxu0 0.0
        %2355 = vmatpush1.msra.mxu0 0.0
        %2356 = vmatprep.subr.mxu0 0.0
        %2357 = vmatpush1.msra.mxu0 0.0
        %2358 = vmatprep.subr.mxu0 0.0
        %2359 = vmatpush1.msra.mxu0 0.0
        %2360 = vmatprep.subr.mxu0 0.0
        %2361 = vmatpush1.msra.mxu0 0.0
        %2362 = vmatprep.subr.mxu0 0.0
        %2363 = vmatpush1.msra.mxu0 0.0
        %2364 = vmatprep.subr.mxu0 0.0
        %2365 = vmatpush1.msra.mxu0 0.0
        %2366 = vmatprep.subr.mxu0 0.0
        %2367 = vmatpush1.msra.mxu0 0.0
        %2368 = vmatprep.subr.mxu0 0.0
        %2369 = vmatpush1.msra.mxu0 0.0
        %2370 = vmatprep.subr.mxu0 0.0
        %2371 = vmatpush1.msra.mxu0 0.0
        %2372 = vmatprep.subr.mxu0 0.0
        %2373 = vmatpush1.msra.mxu0 0.0
        %2374 = vmatprep.subr.mxu0 0.0
        %2375 = vmatpush1.msra.mxu0 0.0
        %2376 = vmatprep.subr.mxu0 0.0
        %2377 = vmatpush1.msra.mxu0 0.0
        %2378 = vmatprep.mubr.f32.mxu0 0.0
        %2379 = vmatmul.mubr.f32.gmra.mrb[0].mxu0 %v2312
        %v2380 = vpop.f32.mrb[0].mxu0
        %v2381 = vadd.f32 %v1819, %v2380
        %v2382 = vpop.f32.mrb[0].mxu0
        %2383 = vdwg.mxu0
        %v2385 = vsel %vm571, %v2381, 0
        %2387 = vmatprep.subr.mxu0 0.0
        %2388 = vmatpush1.msra.mxu0 %v394
        %2389 = vmatprep.subr.mxu0 0.0
        %2390 = vmatpush1.msra.mxu0 %v395
        %2391 = vmatprep.subr.mxu0 0.0
        %2392 = vmatpush1.msra.mxu0 %v396
        %2393 = vmatprep.subr.mxu0 0.0
        %2394 = vmatpush1.msra.mxu0 %v397
        %2395 = vmatprep.subr.mxu0 0.0
        %2396 = vmatpush1.msra.mxu0 0.0
        %2397 = vmatprep.subr.mxu0 0.0
        %2398 = vmatpush1.msra.mxu0 0.0
        %2399 = vmatprep.subr.mxu0 0.0
        %2400 = vmatpush1.msra.mxu0 0.0
        %2401 = vmatprep.subr.mxu0 0.0
        %2402 = vmatpush1.msra.mxu0 0.0
        %2403 = vmatprep.subr.mxu0 0.0
        %2404 = vmatpush1.msra.mxu0 0.0
        %2405 = vmatprep.subr.mxu0 0.0
        %2406 = vmatpush1.msra.mxu0 0.0
        %2407 = vmatprep.subr.mxu0 0.0
        %2408 = vmatpush1.msra.mxu0 0.0
        %2409 = vmatprep.subr.mxu0 0.0
        %2410 = vmatpush1.msra.mxu0 0.0
        %2411 = vmatprep.subr.mxu0 0.0
        %2412 = vmatpush1.msra.mxu0 0.0
        %2413 = vmatprep.subr.mxu0 0.0
        %2414 = vmatpush1.msra.mxu0 0.0
        %2415 = vmatprep.subr.mxu0 0.0
        %2416 = vmatpush1.msra.mxu0 0.0
        %2417 = vmatprep.subr.mxu0 0.0
        %2418 = vmatpush1.msra.mxu0 0.0
        %2419 = vmatprep.subr.mxu0 0.0
        %2420 = vmatpush1.msra.mxu0 0.0
        %2421 = vmatprep.subr.mxu0 0.0
        %2422 = vmatpush1.msra.mxu0 0.0
        %2423 = vmatprep.subr.mxu0 0.0
        %2424 = vmatpush1.msra.mxu0 0.0
        %2425 = vmatprep.subr.mxu0 0.0
        %2426 = vmatpush1.msra.mxu0 0.0
        %2427 = vmatprep.subr.mxu0 0.0
        %2428 = vmatpush1.msra.mxu0 0.0
        %2429 = vmatprep.subr.mxu0 0.0
        %2430 = vmatpush1.msra.mxu0 0.0
        %2431 = vmatprep.subr.mxu0 0.0
        %2432 = vmatpush1.msra.mxu0 0.0
        %2433 = vmatprep.subr.mxu0 0.0
        %2434 = vmatpush1.msra.mxu0 0.0
        %2435 = vmatprep.subr.mxu0 0.0
        %2436 = vmatpush1.msra.mxu0 0.0
        %2437 = vmatprep.subr.mxu0 0.0
        %2438 = vmatpush1.msra.mxu0 0.0
        %2439 = vmatprep.subr.mxu0 0.0
        %2440 = vmatpush1.msra.mxu0 0.0
        %2441 = vmatprep.subr.mxu0 0.0
        %2442 = vmatpush1.msra.mxu0 0.0
        %2443 = vmatprep.subr.mxu0 0.0
        %2444 = vmatpush1.msra.mxu0 0.0
        %2445 = vmatprep.subr.mxu0 0.0
        %2446 = vmatpush1.msra.mxu0 0.0
        %2447 = vmatprep.subr.mxu0 0.0
        %2448 = vmatpush1.msra.mxu0 0.0
        %2449 = vmatprep.subr.mxu0 0.0
        %2450 = vmatpush1.msra.mxu0 0.0
        %2451 = vmatprep.mubr.f32.mxu0 0.0
        %2452 = vmatmul.mubr.f32.gmra.mrb[0].mxu0 %v2385
        %v2453 = vpop.f32.mrb[0].mxu0
        %v2454 = vadd.f32 %v1097, %v2453
        %v2455 = vpop.f32.mrb[0].mxu0
        %2456 = vdwg.mxu0
        %2457 = vmatprep.subr.mxu0 0.0
        %2458 = vmatpush1.msra.mxu0 %v2381
        %2459 = vmatprep.subr.mxu0 0.0
        %2460 = vmatpush1.msra.mxu0 0.0
        %2461 = vmatprep.subr.mxu0 0.0
        %2462 = vmatpush1.msra.mxu0 0.0
        %2463 = vmatprep.subr.mxu0 0.0
        %2464 = vmatpush1.msra.mxu0 0.0
        %2465 = vmatprep.subr.mxu0 0.0
        %2466 = vmatpush1.msra.mxu0 0.0
        %2467 = vmatprep.subr.mxu0 0.0
        %2468 = vmatpush1.msra.mxu0 0.0
        %2469 = vmatprep.subr.mxu0 0.0
        %2470 = vmatpush1.msra.mxu0 0.0
        %2471 = vmatprep.subr.mxu0 0.0
        %2472 = vmatpush1.msra.mxu0 0.0
        %2473 = vmatprep.subr.mxu0 0.0
        %2474 = vmatpush1.msra.mxu0 0.0
        %2475 = vmatprep.subr.mxu0 0.0
        %2476 = vmatpush1.msra.mxu0 0.0
        %2477 = vmatprep.subr.mxu0 0.0
        %2478 = vmatpush1.msra.mxu0 0.0
        %2479 = vmatprep.subr.mxu0 0.0
        %2480 = vmatpush1.msra.mxu0 0.0
        %2481 = vmatprep.subr.mxu0 0.0
        %2482 = vmatpush1.msra.mxu0 0.0
        %2483 = vmatprep.subr.mxu0 0.0
        %2484 = vmatpush1.msra.mxu0 0.0
        %2485 = vmatprep.subr.mxu0 0.0
        %2486 = vmatpush1.msra.mxu0 0.0
        %2487 = vmatprep.subr.mxu0 0.0
        %2488 = vmatpush1.msra.mxu0 0.0
        %2489 = vmatprep.subr.mxu0 0.0
        %2490 = vmatpush1.msra.mxu0 0.0
        %2491 = vmatprep.subr.mxu0 0.0
        %2492 = vmatpush1.msra.mxu0 0.0
        %2493 = vmatprep.subr.mxu0 0.0
        %2494 = vmatpush1.msra.mxu0 0.0
        %2495 = vmatprep.subr.mxu0 0.0
        %2496 = vmatpush1.msra.mxu0 0.0
        %2497 = vmatprep.subr.mxu0 0.0
        %2498 = vmatpush1.msra.mxu0 0.0
        %2499 = vmatprep.subr.mxu0 0.0
        %2500 = vmatpush1.msra.mxu0 0.0
        %2501 = vmatprep.subr.mxu0 0.0
        %2502 = vmatpush1.msra.mxu0 0.0
        %2503 = vmatprep.subr.mxu0 0.0
        %2504 = vmatpush1.msra.mxu0 0.0
        %2505 = vmatprep.subr.mxu0 0.0
        %2506 = vmatpush1.msra.mxu0 0.0
        %2507 = vmatprep.subr.mxu0 0.0
        %2508 = vmatpush1.msra.mxu0 0.0
        %2509 = vmatprep.subr.mxu0 0.0
        %2510 = vmatpush1.msra.mxu0 0.0
        %2511 = vmatprep.subr.mxu0 0.0
        %2512 = vmatpush1.msra.mxu0 0.0
        %2513 = vmatprep.subr.mxu0 0.0
        %2514 = vmatpush1.msra.mxu0 0.0
        %2515 = vmatprep.subr.mxu0 0.0
        %2516 = vmatpush1.msra.mxu0 0.0
        %2517 = vmatprep.subr.mxu0 0.0
        %2518 = vmatpush1.msra.mxu0 0.0
        %2519 = vmatprep.subr.mxu0 0.0
        %2520 = vmatpush1.msra.mxu0 0.0
        %2521 = vmatprep.mubr.f32.mxu0 0.0
        %2522 = vmatmul.mubr.f32.gmra.mrb[0].mxu0 %v1172
        %v2523 = vpop.f32.mrb[0].mxu0
        %v2524 = vadd.f32 0.0, %v2523
        %v2525 = vpop.f32.mrb[0].mxu0
        %2526 = vmatprep.mubr.f32.mxu0 0.0
        %2527 = vmatmul.mubr.f32.gmra.mrb[0].mxu0 %v1175
        %v2528 = vpop.f32.mrb[0].mxu0
        %v2529 = vadd.f32 0.0, %v2528
        %v2530 = vpop.f32.mrb[0].mxu0
        %2531 = vdwg.mxu0
        %2534 = vrot.lane.b32.xlu0 %v2524, 32
        %v2535 = vpop.permute.xlu0 %2534
        %2536 = vrot.lane.b32.xlu0 %v2529, 32
        %v2537 = vpop.permute.xlu0 %2536
        %2540 = vrot.lane.b32.xlu0 %v2524, 64
        %v2541 = vpop.permute.xlu0 %2540
        %2542 = vrot.lane.b32.xlu0 %v2529, 64
        %v2543 = vpop.permute.xlu0 %2542
        %2546 = vrot.lane.b32.xlu0 %v2524, 96
        %v2547 = vpop.permute.xlu0 %2546
        %2548 = vrot.lane.b32.xlu0 %v2529, 96
        %v2549 = vpop.permute.xlu0 %2548
        %v2552 = vsel %vm571, %v2524, %v2535
        %v2553 = vsel %vm571, %v2529, %v2537
        %v2554 = vsel %vm1274, %v2552, %v2541
        %v2555 = vsel %vm1274, %v2553, %v2543
        %v2556 = vsel %vm1277, %v2554, %v2547
        %v2557 = vsel %vm1277, %v2555, %v2549
        %v2558 = vmul.f32 %v2556, %v850
        %v2559 = vmul.f32 %v2556, %v852
        %v2560 = vmul.f32 %v2556, %v927
        %v2561 = vmul.f32 %v2556, %v929
        %v2562 = vmul.f32 %v2556, %v1004
        %v2563 = vmul.f32 %v2556, %v1006
        %v2564 = vmul.f32 %v2556, %v1081
        %v2565 = vmul.f32 %v2556, %v1083
        %v2566 = vmul.f32 %v2557, %v856
        %v2567 = vmul.f32 %v2557, %v858
        %v2568 = vmul.f32 %v2557, %v933
        %v2569 = vmul.f32 %v2557, %v935
        %v2570 = vmul.f32 %v2557, %v1010
        %v2571 = vmul.f32 %v2557, %v1012
        %v2572 = vmul.f32 %v2557, %v1087
        %v2573 = vmul.f32 %v2557, %v1089
        %2574 = vmatprep.subr.mxu0 0.0
        %2575 = vmatpush1.msra.mxu0 %v439
        %2576 = vmatprep.subr.mxu0 0.0
        %2577 = vmatpush1.msra.mxu0 %v440
        %2578 = vmatprep.subr.mxu0 0.0
        %2579 = vmatpush1.msra.mxu0 %v441
        %2580 = vmatprep.subr.mxu0 0.0
        %2581 = vmatpush1.msra.mxu0 %v442
        %2582 = vmatprep.subr.mxu0 0.0
        %2583 = vmatpush1.msra.mxu0 %v443
        %2584 = vmatprep.subr.mxu0 0.0
        %2585 = vmatpush1.msra.mxu0 %v444
        %2586 = vmatprep.subr.mxu0 0.0
        %2587 = vmatpush1.msra.mxu0 %v445
        %2588 = vmatprep.subr.mxu0 0.0
        %2589 = vmatpush1.msra.mxu0 %v446
        %2590 = vmatprep.subr.mxu0 0.0
        %2591 = vmatpush1.msra.mxu0 %v447
        %2592 = vmatprep.subr.mxu0 0.0
        %2593 = vmatpush1.msra.mxu0 %v448
        %2594 = vmatprep.subr.mxu0 0.0
        %2595 = vmatpush1.msra.mxu0 %v449
        %2596 = vmatprep.subr.mxu0 0.0
        %2597 = vmatpush1.msra.mxu0 %v450
        %2598 = vmatprep.subr.mxu0 0.0
        %2599 = vmatpush1.msra.mxu0 %v451
        %2600 = vmatprep.subr.mxu0 0.0
        %2601 = vmatpush1.msra.mxu0 %v452
        %2602 = vmatprep.subr.mxu0 0.0
        %2603 = vmatpush1.msra.mxu0 %v453
        %2604 = vmatprep.subr.mxu0 0.0
        %2605 = vmatpush1.msra.mxu0 %v454
        %2606 = vmatprep.subr.mxu0 0.0
        %2607 = vmatpush1.msra.mxu0 %v455
        %2608 = vmatprep.subr.mxu0 0.0
        %2609 = vmatpush1.msra.mxu0 %v456
        %2610 = vmatprep.subr.mxu0 0.0
        %2611 = vmatpush1.msra.mxu0 %v457
        %2612 = vmatprep.subr.mxu0 0.0
        %2613 = vmatpush1.msra.mxu0 %v458
        %2614 = vmatprep.subr.mxu0 0.0
        %2615 = vmatpush1.msra.mxu0 %v459
        %2616 = vmatprep.subr.mxu0 0.0
        %2617 = vmatpush1.msra.mxu0 %v460
        %2618 = vmatprep.subr.mxu0 0.0
        %2619 = vmatpush1.msra.mxu0 %v461
        %2620 = vmatprep.subr.mxu0 0.0
        %2621 = vmatpush1.msra.mxu0 %v462
        %2622 = vmatprep.subr.mxu0 0.0
        %2623 = vmatpush1.msra.mxu0 %v463
        %2624 = vmatprep.subr.mxu0 0.0
        %2625 = vmatpush1.msra.mxu0 %v464
        %2626 = vmatprep.subr.mxu0 0.0
        %2627 = vmatpush1.msra.mxu0 %v465
        %2628 = vmatprep.subr.mxu0 0.0
        %2629 = vmatpush1.msra.mxu0 %v466
        %2630 = vmatprep.subr.mxu0 0.0
        %2631 = vmatpush1.msra.mxu0 %v467
        %2632 = vmatprep.subr.mxu0 0.0
        %2633 = vmatpush1.msra.mxu0 %v468
        %2634 = vmatprep.subr.mxu0 0.0
        %2635 = vmatpush1.msra.mxu0 %v469
        %2636 = vmatprep.subr.mxu0 0.0
        %2637 = vmatpush1.msra.mxu0 %v470
        %2638 = vmatprep.mubr.f32.mxu0 %v2559
        %2639 = vmatmul.mubr.f32.gmra.mrb[0].mxu0 %v2558
        %v2640 = vpop.f32.mrb[0].mxu0
        %v2641 = vadd.f32 0.0, %v2640
        %v2642 = vpop.f32.mrb[0].mxu0
        %2643 = vmatprep.mubr.f32.mxu0 %v2567
        %2644 = vmatmul.mubr.f32.gmra.mrb[0].mxu0 %v2566
        %v2645 = vpop.f32.mrb[0].mxu0
        %v2646 = vadd.f32 0.0, %v2645
        %v2647 = vpop.f32.mrb[0].mxu0
        %2648 = vdwg.mxu0
        %2649 = vmatprep.subr.mxu0 0.0
        %2650 = vmatpush1.msra.mxu0 %v471
        %2651 = vmatprep.subr.mxu0 0.0
        %2652 = vmatpush1.msra.mxu0 %v472
        %2653 = vmatprep.subr.mxu0 0.0
        %2654 = vmatpush1.msra.mxu0 %v473
        %2655 = vmatprep.subr.mxu0 0.0
        %2656 = vmatpush1.msra.mxu0 %v474
        %2657 = vmatprep.subr.mxu0 0.0
        %2658 = vmatpush1.msra.mxu0 %v475
        %2659 = vmatprep.subr.mxu0 0.0
        %2660 = vmatpush1.msra.mxu0 %v476
        %2661 = vmatprep.subr.mxu0 0.0
        %2662 = vmatpush1.msra.mxu0 %v477
        %2663 = vmatprep.subr.mxu0 0.0
        %2664 = vmatpush1.msra.mxu0 %v478
        %2665 = vmatprep.subr.mxu0 0.0
        %2666 = vmatpush1.msra.mxu0 %v479
        %2667 = vmatprep.subr.mxu0 0.0
        %2668 = vmatpush1.msra.mxu0 %v480
        %2669 = vmatprep.subr.mxu0 0.0
        %2670 = vmatpush1.msra.mxu0 %v481
        %2671 = vmatprep.subr.mxu0 0.0
        %2672 = vmatpush1.msra.mxu0 %v482
        %2673 = vmatprep.subr.mxu0 0.0
        %2674 = vmatpush1.msra.mxu0 %v483
        %2675 = vmatprep.subr.mxu0 0.0
        %2676 = vmatpush1.msra.mxu0 %v484
        %2677 = vmatprep.subr.mxu0 0.0
        %2678 = vmatpush1.msra.mxu0 %v485
        %2679 = vmatprep.subr.mxu0 0.0
        %2680 = vmatpush1.msra.mxu0 %v486
        %2681 = vmatprep.subr.mxu0 0.0
        %2682 = vmatpush1.msra.mxu0 %v487
        %2683 = vmatprep.subr.mxu0 0.0
        %2684 = vmatpush1.msra.mxu0 %v488
        %2685 = vmatprep.subr.mxu0 0.0
        %2686 = vmatpush1.msra.mxu0 %v489
        %2687 = vmatprep.subr.mxu0 0.0
        %2688 = vmatpush1.msra.mxu0 %v490
        %2689 = vmatprep.subr.mxu0 0.0
        %2690 = vmatpush1.msra.mxu0 %v491
        %2691 = vmatprep.subr.mxu0 0.0
        %2692 = vmatpush1.msra.mxu0 %v492
        %2693 = vmatprep.subr.mxu0 0.0
        %2694 = vmatpush1.msra.mxu0 %v493
        %2695 = vmatprep.subr.mxu0 0.0
        %2696 = vmatpush1.msra.mxu0 %v494
        %2697 = vmatprep.subr.mxu0 0.0
        %2698 = vmatpush1.msra.mxu0 %v495
        %2699 = vmatprep.subr.mxu0 0.0
        %2700 = vmatpush1.msra.mxu0 %v496
        %2701 = vmatprep.subr.mxu0 0.0
        %2702 = vmatpush1.msra.mxu0 %v497
        %2703 = vmatprep.subr.mxu0 0.0
        %2704 = vmatpush1.msra.mxu0 %v498
        %2705 = vmatprep.subr.mxu0 0.0
        %2706 = vmatpush1.msra.mxu0 %v499
        %2707 = vmatprep.subr.mxu0 0.0
        %2708 = vmatpush1.msra.mxu0 %v500
        %2709 = vmatprep.subr.mxu0 0.0
        %2710 = vmatpush1.msra.mxu0 %v501
        %2711 = vmatprep.subr.mxu0 0.0
        %2712 = vmatpush1.msra.mxu0 %v502
        %2713 = vmatprep.mubr.f32.mxu0 %v2561
        %2714 = vmatmul.mubr.f32.gmra.mrb[0].mxu0 %v2560
        %v2715 = vpop.f32.mrb[0].mxu0
        %v2716 = vadd.f32 %v2641, %v2715
        %v2717 = vpop.f32.mrb[0].mxu0
        %2718 = vmatprep.mubr.f32.mxu0 %v2569
        %2719 = vmatmul.mubr.f32.gmra.mrb[0].mxu0 %v2568
        %v2720 = vpop.f32.mrb[0].mxu0
        %v2721 = vadd.f32 %v2646, %v2720
        %v2722 = vpop.f32.mrb[0].mxu0
        %2723 = vdwg.mxu0
        %2724 = vmatprep.subr.mxu0 0.0
        %2725 = vmatpush1.msra.mxu0 %v503
        %2726 = vmatprep.subr.mxu0 0.0
        %2727 = vmatpush1.msra.mxu0 %v504
        %2728 = vmatprep.subr.mxu0 0.0
        %2729 = vmatpush1.msra.mxu0 %v505
        %2730 = vmatprep.subr.mxu0 0.0
        %2731 = vmatpush1.msra.mxu0 %v506
        %2732 = vmatprep.subr.mxu0 0.0
        %2733 = vmatpush1.msra.mxu0 %v507
        %2734 = vmatprep.subr.mxu0 0.0
        %2735 = vmatpush1.msra.mxu0 %v508
        %2736 = vmatprep.subr.mxu0 0.0
        %2737 = vmatpush1.msra.mxu0 %v509
        %2738 = vmatprep.subr.mxu0 0.0
        %2739 = vmatpush1.msra.mxu0 %v510
        %2740 = vmatprep.subr.mxu0 0.0
        %2741 = vmatpush1.msra.mxu0 %v511
        %2742 = vmatprep.subr.mxu0 0.0
        %2743 = vmatpush1.msra.mxu0 %v512
        %2744 = vmatprep.subr.mxu0 0.0
        %2745 = vmatpush1.msra.mxu0 %v513
        %2746 = vmatprep.subr.mxu0 0.0
        %2747 = vmatpush1.msra.mxu0 %v514
        %2748 = vmatprep.subr.mxu0 0.0
        %2749 = vmatpush1.msra.mxu0 %v515
        %2750 = vmatprep.subr.mxu0 0.0
        %2751 = vmatpush1.msra.mxu0 %v516
        %2752 = vmatprep.subr.mxu0 0.0
        %2753 = vmatpush1.msra.mxu0 %v517
        %2754 = vmatprep.subr.mxu0 0.0
        %2755 = vmatpush1.msra.mxu0 %v518
        %2756 = vmatprep.subr.mxu0 0.0
        %2757 = vmatpush1.msra.mxu0 %v519
        %2758 = vmatprep.subr.mxu0 0.0
        %2759 = vmatpush1.msra.mxu0 %v520
        %2760 = vmatprep.subr.mxu0 0.0
        %2761 = vmatpush1.msra.mxu0 %v521
        %2762 = vmatprep.subr.mxu0 0.0
        %2763 = vmatpush1.msra.mxu0 %v522
        %2764 = vmatprep.subr.mxu0 0.0
        %2765 = vmatpush1.msra.mxu0 %v523
        %2766 = vmatprep.subr.mxu0 0.0
        %2767 = vmatpush1.msra.mxu0 %v524
        %2768 = vmatprep.subr.mxu0 0.0
        %2769 = vmatpush1.msra.mxu0 %v525
        %2770 = vmatprep.subr.mxu0 0.0
        %2771 = vmatpush1.msra.mxu0 %v526
        %2772 = vmatprep.subr.mxu0 0.0
        %2773 = vmatpush1.msra.mxu0 %v527
        %2774 = vmatprep.subr.mxu0 0.0
        %2775 = vmatpush1.msra.mxu0 %v528
        %2776 = vmatprep.subr.mxu0 0.0
        %2777 = vmatpush1.msra.mxu0 %v529
        %2778 = vmatprep.subr.mxu0 0.0
        %2779 = vmatpush1.msra.mxu0 %v530
        %2780 = vmatprep.subr.mxu0 0.0
        %2781 = vmatpush1.msra.mxu0 %v531
        %2782 = vmatprep.subr.mxu0 0.0
        %2783 = vmatpush1.msra.mxu0 %v532
        %2784 = vmatprep.subr.mxu0 0.0
        %2785 = vmatpush1.msra.mxu0 %v533
        %2786 = vmatprep.subr.mxu0 0.0
        %2787 = vmatpush1.msra.mxu0 %v534
        %2788 = vmatprep.mubr.f32.mxu0 %v2563
        %2789 = vmatmul.mubr.f32.gmra.mrb[0].mxu0 %v2562
        %v2790 = vpop.f32.mrb[0].mxu0
        %v2791 = vadd.f32 %v2716, %v2790
        %v2792 = vpop.f32.mrb[0].mxu0
        %2793 = vmatprep.mubr.f32.mxu0 %v2571
        %2794 = vmatmul.mubr.f32.gmra.mrb[0].mxu0 %v2570
        %v2795 = vpop.f32.mrb[0].mxu0
        %v2796 = vadd.f32 %v2721, %v2795
        %v2797 = vpop.f32.mrb[0].mxu0
        %2798 = vdwg.mxu0
        %2799 = vmatprep.subr.mxu0 0.0
        %2800 = vmatpush1.msra.mxu0 %v535
        %2801 = vmatprep.subr.mxu0 0.0
        %2802 = vmatpush1.msra.mxu0 %v536
        %2803 = vmatprep.subr.mxu0 0.0
        %2804 = vmatpush1.msra.mxu0 %v537
        %2805 = vmatprep.subr.mxu0 0.0
        %2806 = vmatpush1.msra.mxu0 %v538
        %2807 = vmatprep.subr.mxu0 0.0
        %2808 = vmatpush1.msra.mxu0 %v539
        %2809 = vmatprep.subr.mxu0 0.0
        %2810 = vmatpush1.msra.mxu0 %v540
        %2811 = vmatprep.subr.mxu0 0.0
        %2812 = vmatpush1.msra.mxu0 %v541
        %2813 = vmatprep.subr.mxu0 0.0
        %2814 = vmatpush1.msra.mxu0 %v542
        %2815 = vmatprep.subr.mxu0 0.0
        %2816 = vmatpush1.msra.mxu0 %v543
        %2817 = vmatprep.subr.mxu0 0.0
        %2818 = vmatpush1.msra.mxu0 %v544
        %2819 = vmatprep.subr.mxu0 0.0
        %2820 = vmatpush1.msra.mxu0 %v545
        %2821 = vmatprep.subr.mxu0 0.0
        %2822 = vmatpush1.msra.mxu0 %v546
        %2823 = vmatprep.subr.mxu0 0.0
        %2824 = vmatpush1.msra.mxu0 %v547
        %2825 = vmatprep.subr.mxu0 0.0
        %2826 = vmatpush1.msra.mxu0 %v548
        %2827 = vmatprep.subr.mxu0 0.0
        %2828 = vmatpush1.msra.mxu0 %v549
        %2829 = vmatprep.subr.mxu0 0.0
        %2830 = vmatpush1.msra.mxu0 %v550
        %2831 = vmatprep.subr.mxu0 0.0
        %2832 = vmatpush1.msra.mxu0 %v551
        %2833 = vmatprep.subr.mxu0 0.0
        %2834 = vmatpush1.msra.mxu0 %v552
        %2835 = vmatprep.subr.mxu0 0.0
        %2836 = vmatpush1.msra.mxu0 %v553
        %2837 = vmatprep.subr.mxu0 0.0
        %2838 = vmatpush1.msra.mxu0 %v554
        %2839 = vmatprep.subr.mxu0 0.0
        %2840 = vmatpush1.msra.mxu0 %v555
        %2841 = vmatprep.subr.mxu0 0.0
        %2842 = vmatpush1.msra.mxu0 %v556
        %2843 = vmatprep.subr.mxu0 0.0
        %2844 = vmatpush1.msra.mxu0 %v557
        %2845 = vmatprep.subr.mxu0 0.0
        %2846 = vmatpush1.msra.mxu0 %v558
        %2847 = vmatprep.subr.mxu0 0.0
        %2848 = vmatpush1.msra.mxu0 %v559
        %2849 = vmatprep.subr.mxu0 0.0
        %2850 = vmatpush1.msra.mxu0 %v560
        %2851 = vmatprep.subr.mxu0 0.0
        %2852 = vmatpush1.msra.mxu0 %v561
        %2853 = vmatprep.subr.mxu0 0.0
        %2854 = vmatpush1.msra.mxu0 %v562
        %2855 = vmatprep.subr.mxu0 0.0
        %2856 = vmatpush1.msra.mxu0 %v563
        %2857 = vmatprep.subr.mxu0 0.0
        %2858 = vmatpush1.msra.mxu0 %v564
        %2859 = vmatprep.subr.mxu0 0.0
        %2860 = vmatpush1.msra.mxu0 %v565
        %2861 = vmatprep.subr.mxu0 0.0
        %2862 = vmatpush1.msra.mxu0 %v566
        %2863 = vmatprep.mubr.f32.mxu0 %v2565
        %2864 = vmatmul.mubr.f32.gmra.mrb[0].mxu0 %v2564
        %v2865 = vpop.f32.mrb[0].mxu0
        %v2866 = vadd.f32 %v2791, %v2865
        %v2867 = vpop.f32.mrb[0].mxu0
        %2868 = vmatprep.mubr.f32.mxu0 %v2573
        %2869 = vmatmul.mubr.f32.gmra.mrb[0].mxu0 %v2572
        %v2870 = vpop.f32.mrb[0].mxu0
        %v2871 = vadd.f32 %v2796, %v2870
        %v2872 = vpop.f32.mrb[0].mxu0
        %2873 = vdwg.mxu0
        %2874 = vmatprep.subr.mxu0 0.0
        %2875 = vmatpush1.msra.mxu0 %v2866
        %2876 = vmatprep.subr.mxu0 0.0
        %2877 = vmatpush1.msra.mxu0 %v2871
        %2878 = vmatprep.subr.mxu0 0.0
        %2879 = vmatpush1.msra.mxu0 0.0
        %2880 = vmatprep.subr.mxu0 0.0
        %2881 = vmatpush1.msra.mxu0 0.0
        %2882 = vmatprep.subr.mxu0 0.0
        %2883 = vmatpush1.msra.mxu0 0.0
        %2884 = vmatprep.subr.mxu0 0.0
        %2885 = vmatpush1.msra.mxu0 0.0
        %2886 = vmatprep.subr.mxu0 0.0
        %2887 = vmatpush1.msra.mxu0 0.0
        %2888 = vmatprep.subr.mxu0 0.0
        %2889 = vmatpush1.msra.mxu0 0.0
        %2890 = vmatprep.subr.mxu0 0.0
        %2891 = vmatpush1.msra.mxu0 0.0
        %2892 = vmatprep.subr.mxu0 0.0
        %2893 = vmatpush1.msra.mxu0 0.0
        %2894 = vmatprep.subr.mxu0 0.0
        %2895 = vmatpush1.msra.mxu0 0.0
        %2896 = vmatprep.subr.mxu0 0.0
        %2897 = vmatpush1.msra.mxu0 0.0
        %2898 = vmatprep.subr.mxu0 0.0
        %2899 = vmatpush1.msra.mxu0 0.0
        %2900 = vmatprep.subr.mxu0 0.0
        %2901 = vmatpush1.msra.mxu0 0.0
        %2902 = vmatprep.subr.mxu0 0.0
        %2903 = vmatpush1.msra.mxu0 0.0
        %2904 = vmatprep.subr.mxu0 0.0
        %2905 = vmatpush1.msra.mxu0 0.0
        %2906 = vmatprep.subr.mxu0 0.0
        %2907 = vmatpush1.msra.mxu0 0.0
        %2908 = vmatprep.subr.mxu0 0.0
        %2909 = vmatpush1.msra.mxu0 0.0
        %2910 = vmatprep.subr.mxu0 0.0
        %2911 = vmatpush1.msra.mxu0 0.0
        %2912 = vmatprep.subr.mxu0 0.0
        %2913 = vmatpush1.msra.mxu0 0.0
        %2914 = vmatprep.subr.mxu0 0.0
        %2915 = vmatpush1.msra.mxu0 0.0
        %2916 = vmatprep.subr.mxu0 0.0
        %2917 = vmatpush1.msra.mxu0 0.0
        %2918 = vmatprep.subr.mxu0 0.0
        %2919 = vmatpush1.msra.mxu0 0.0
        %2920 = vmatprep.subr.mxu0 0.0
        %2921 = vmatpush1.msra.mxu0 0.0
        %2922 = vmatprep.subr.mxu0 0.0
        %2923 = vmatpush1.msra.mxu0 0.0
        %2924 = vmatprep.subr.mxu0 0.0
        %2925 = vmatpush1.msra.mxu0 0.0
        %2926 = vmatprep.subr.mxu0 0.0
        %2927 = vmatpush1.msra.mxu0 0.0
        %2928 = vmatprep.subr.mxu0 0.0
        %2929 = vmatpush1.msra.mxu0 0.0
        %2930 = vmatprep.subr.mxu0 0.0
        %2931 = vmatpush1.msra.mxu0 0.0
        %2932 = vmatprep.subr.mxu0 0.0
        %2933 = vmatpush1.msra.mxu0 0.0
        %2934 = vmatprep.subr.mxu0 0.0
        %2935 = vmatpush1.msra.mxu0 0.0
        %2936 = vmatprep.subr.mxu0 0.0
        %2937 = vmatpush1.msra.mxu0 0.0
        %2938 = vmatprep.mubr.f32.mxu0 0.0
        %2939 = vmatmul.mubr.f32.gmra.mrb[0].mxu0 %v1598
        %v2940 = vpop.f32.mrb[0].mxu0
        %v2941 = vadd.f32 %v2381, %v2940
        %v2942 = vpop.f32.mrb[0].mxu0
        %2943 = vdwg.mxu0
        %v2944 = vadd.f32 %v2941, %v1673
        %v2945 = vmax.f32 %v2944, 0.0
        %v2947 = vsel %vm571, %v2945, 0
        %2949 = vmatprep.subr.mxu0 0.0
        %2950 = vmatpush1.msra.mxu0 %v390
        %2951 = vmatprep.subr.mxu0 0.0
        %2952 = vmatpush1.msra.mxu0 %v391
        %2953 = vmatprep.subr.mxu0 0.0
        %2954 = vmatpush1.msra.mxu0 %v392
        %2955 = vmatprep.subr.mxu0 0.0
        %2956 = vmatpush1.msra.mxu0 %v393
        %2957 = vmatprep.subr.mxu0 0.0
        %2958 = vmatpush1.msra.mxu0 0.0
        %2959 = vmatprep.subr.mxu0 0.0
        %2960 = vmatpush1.msra.mxu0 0.0
        %2961 = vmatprep.subr.mxu0 0.0
        %2962 = vmatpush1.msra.mxu0 0.0
        %2963 = vmatprep.subr.mxu0 0.0
        %2964 = vmatpush1.msra.mxu0 0.0
        %2965 = vmatprep.subr.mxu0 0.0
        %2966 = vmatpush1.msra.mxu0 0.0
        %2967 = vmatprep.subr.mxu0 0.0
        %2968 = vmatpush1.msra.mxu0 0.0
        %2969 = vmatprep.subr.mxu0 0.0
        %2970 = vmatpush1.msra.mxu0 0.0
        %2971 = vmatprep.subr.mxu0 0.0
        %2972 = vmatpush1.msra.mxu0 0.0
        %2973 = vmatprep.subr.mxu0 0.0
        %2974 = vmatpush1.msra.mxu0 0.0
        %2975 = vmatprep.subr.mxu0 0.0
        %2976 = vmatpush1.msra.mxu0 0.0
        %2977 = vmatprep.subr.mxu0 0.0
        %2978 = vmatpush1.msra.mxu0 0.0
        %2979 = vmatprep.subr.mxu0 0.0
        %2980 = vmatpush1.msra.mxu0 0.0
        %2981 = vmatprep.subr.mxu0 0.0
        %2982 = vmatpush1.msra.mxu0 0.0
        %2983 = vmatprep.subr.mxu0 0.0
        %2984 = vmatpush1.msra.mxu0 0.0
        %2985 = vmatprep.subr.mxu0 0.0
        %2986 = vmatpush1.msra.mxu0 0.0
        %2987 = vmatprep.subr.mxu0 0.0
        %2988 = vmatpush1.msra.mxu0 0.0
        %2989 = vmatprep.subr.mxu0 0.0
        %2990 = vmatpush1.msra.mxu0 0.0
        %2991 = vmatprep.subr.mxu0 0.0
        %2992 = vmatpush1.msra.mxu0 0.0
        %2993 = vmatprep.subr.mxu0 0.0
        %2994 = vmatpush1.msra.mxu0 0.0
        %2995 = vmatprep.subr.mxu0 0.0
        %2996 = vmatpush1.msra.mxu0 0.0
        %2997 = vmatprep.subr.mxu0 0.0
        %2998 = vmatpush1.msra.mxu0 0.0
        %2999 = vmatprep.subr.mxu0 0.0
        %3000 = vmatpush1.msra.mxu0 0.0
        %3001 = vmatprep.subr.mxu0 0.0
        %3002 = vmatpush1.msra.mxu0 0.0
        %3003 = vmatprep.subr.mxu0 0.0
        %3004 = vmatpush1.msra.mxu0 0.0
        %3005 = vmatprep.subr.mxu0 0.0
        %3006 = vmatpush1.msra.mxu0 0.0
        %3007 = vmatprep.subr.mxu0 0.0
        %3008 = vmatpush1.msra.mxu0 0.0
        %3009 = vmatprep.subr.mxu0 0.0
        %3010 = vmatpush1.msra.mxu0 0.0
        %3011 = vmatprep.subr.mxu0 0.0
        %3012 = vmatpush1.msra.mxu0 0.0
        %3013 = vmatprep.mubr.f32.mxu0 0.0
        %3014 = vmatmul.mubr.f32.gmra.mrb[0].mxu0 %v2947
        %v3015 = vpop.f32.mrb[0].mxu0
        %v3016 = vadd.f32 %v2454, %v3015
        %v3017 = vpop.f32.mrb[0].mxu0
        %3018 = vdwg.mxu0
        %v3020 = vsel %vm571, %v3016, 0
        %3022 = vmatprep.subr.mxu0 0.0
        %3023 = vmatpush1.msra.mxu0 %v394
        %3024 = vmatprep.subr.mxu0 0.0
        %3025 = vmatpush1.msra.mxu0 %v395
        %3026 = vmatprep.subr.mxu0 0.0
        %3027 = vmatpush1.msra.mxu0 %v396
        %3028 = vmatprep.subr.mxu0 0.0
        %3029 = vmatpush1.msra.mxu0 %v397
        %3030 = vmatprep.subr.mxu0 0.0
        %3031 = vmatpush1.msra.mxu0 0.0
        %3032 = vmatprep.subr.mxu0 0.0
        %3033 = vmatpush1.msra.mxu0 0.0
        %3034 = vmatprep.subr.mxu0 0.0
        %3035 = vmatpush1.msra.mxu0 0.0
        %3036 = vmatprep.subr.mxu0 0.0
        %3037 = vmatpush1.msra.mxu0 0.0
        %3038 = vmatprep.subr.mxu0 0.0
        %3039 = vmatpush1.msra.mxu0 0.0
        %3040 = vmatprep.subr.mxu0 0.0
        %3041 = vmatpush1.msra.mxu0 0.0
        %3042 = vmatprep.subr.mxu0 0.0
        %3043 = vmatpush1.msra.mxu0 0.0
        %3044 = vmatprep.subr.mxu0 0.0
        %3045 = vmatpush1.msra.mxu0 0.0
        %3046 = vmatprep.subr.mxu0 0.0
        %3047 = vmatpush1.msra.mxu0 0.0
        %3048 = vmatprep.subr.mxu0 0.0
        %3049 = vmatpush1.msra.mxu0 0.0
        %3050 = vmatprep.subr.mxu0 0.0
        %3051 = vmatpush1.msra.mxu0 0.0
        %3052 = vmatprep.subr.mxu0 0.0
        %3053 = vmatpush1.msra.mxu0 0.0
        %3054 = vmatprep.subr.mxu0 0.0
        %3055 = vmatpush1.msra.mxu0 0.0
        %3056 = vmatprep.subr.mxu0 0.0
        %3057 = vmatpush1.msra.mxu0 0.0
        %3058 = vmatprep.subr.mxu0 0.0
        %3059 = vmatpush1.msra.mxu0 0.0
        %3060 = vmatprep.subr.mxu0 0.0
        %3061 = vmatpush1.msra.mxu0 0.0
        %3062 = vmatprep.subr.mxu0 0.0
        %3063 = vmatpush1.msra.mxu0 0.0
        %3064 = vmatprep.subr.mxu0 0.0
        %3065 = vmatpush1.msra.mxu0 0.0
        %3066 = vmatprep.subr.mxu0 0.0
        %3067 = vmatpush1.msra.mxu0 0.0
        %3068 = vmatprep.subr.mxu0 0.0
        %3069 = vmatpush1.msra.mxu0 0.0
        %3070 = vmatprep.subr.mxu0 0.0
        %3071 = vmatpush1.msra.mxu0 0.0
        %3072 = vmatprep.subr.mxu0 0.0
        %3073 = vmatpush1.msra.mxu0 0.0
        %3074 = vmatprep.subr.mxu0 0.0
        %3075 = vmatpush1.msra.mxu0 0.0
        %3076 = vmatprep.subr.mxu0 0.0
        %3077 = vmatpush1.msra.mxu0 0.0
        %3078 = vmatprep.subr.mxu0 0.0
        %3079 = vmatpush1.msra.mxu0 0.0
        %3080 = vmatprep.subr.mxu0 0.0
        %3081 = vmatpush1.msra.mxu0 0.0
        %3082 = vmatprep.subr.mxu0 0.0
        %3083 = vmatpush1.msra.mxu0 0.0
        %3084 = vmatprep.subr.mxu0 0.0
        %3085 = vmatpush1.msra.mxu0 0.0
        %3086 = vmatprep.mubr.f32.mxu0 0.0
        %3087 = vmatmul.mubr.f32.gmra.mrb[0].mxu0 %v3020
        %v3088 = vpop.f32.mrb[0].mxu0
        %v3089 = vadd.f32 %v1097, %v3088
        %v3090 = vpop.f32.mrb[0].mxu0
        %3091 = vdwg.mxu0
        %3092 = vmatprep.subr.mxu0 0.0
        %3093 = vmatpush1.msra.mxu0 %v3016
        %3094 = vmatprep.subr.mxu0 0.0
        %3095 = vmatpush1.msra.mxu0 0.0
        %3096 = vmatprep.subr.mxu0 0.0
        %3097 = vmatpush1.msra.mxu0 0.0
        %3098 = vmatprep.subr.mxu0 0.0
        %3099 = vmatpush1.msra.mxu0 0.0
        %3100 = vmatprep.subr.mxu0 0.0
        %3101 = vmatpush1.msra.mxu0 0.0
        %3102 = vmatprep.subr.mxu0 0.0
        %3103 = vmatpush1.msra.mxu0 0.0
        %3104 = vmatprep.subr.mxu0 0.0
        %3105 = vmatpush1.msra.mxu0 0.0
        %3106 = vmatprep.subr.mxu0 0.0
        %3107 = vmatpush1.msra.mxu0 0.0
        %3108 = vmatprep.subr.mxu0 0.0
        %3109 = vmatpush1.msra.mxu0 0.0
        %3110 = vmatprep.subr.mxu0 0.0
        %3111 = vmatpush1.msra.mxu0 0.0
        %3112 = vmatprep.subr.mxu0 0.0
        %3113 = vmatpush1.msra.mxu0 0.0
        %3114 = vmatprep.subr.mxu0 0.0
        %3115 = vmatpush1.msra.mxu0 0.0
        %3116 = vmatprep.subr.mxu0 0.0
        %3117 = vmatpush1.msra.mxu0 0.0
        %3118 = vmatprep.subr.mxu0 0.0
        %3119 = vmatpush1.msra.mxu0 0.0
        %3120 = vmatprep.subr.mxu0 0.0
        %3121 = vmatpush1.msra.mxu0 0.0
        %3122 = vmatprep.subr.mxu0 0.0
        %3123 = vmatpush1.msra.mxu0 0.0
        %3124 = vmatprep.subr.mxu0 0.0
        %3125 = vmatpush1.msra.mxu0 0.0
        %3126 = vmatprep.subr.mxu0 0.0
        %3127 = vmatpush1.msra.mxu0 0.0
        %3128 = vmatprep.subr.mxu0 0.0
        %3129 = vmatpush1.msra.mxu0 0.0
        %3130 = vmatprep.subr.mxu0 0.0
        %3131 = vmatpush1.msra.mxu0 0.0
        %3132 = vmatprep.subr.mxu0 0.0
        %3133 = vmatpush1.msra.mxu0 0.0
        %3134 = vmatprep.subr.mxu0 0.0
        %3135 = vmatpush1.msra.mxu0 0.0
        %3136 = vmatprep.subr.mxu0 0.0
        %3137 = vmatpush1.msra.mxu0 0.0
        %3138 = vmatprep.subr.mxu0 0.0
        %3139 = vmatpush1.msra.mxu0 0.0
        %3140 = vmatprep.subr.mxu0 0.0
        %3141 = vmatpush1.msra.mxu0 0.0
        %3142 = vmatprep.subr.mxu0 0.0
        %3143 = vmatpush1.msra.mxu0 0.0
        %3144 = vmatprep.subr.mxu0 0.0
        %3145 = vmatpush1.msra.mxu0 0.0
        %3146 = vmatprep.subr.mxu0 0.0
        %3147 = vmatpush1.msra.mxu0 0.0
        %3148 = vmatprep.subr.mxu0 0.0
        %3149 = vmatpush1.msra.mxu0 0.0
        %3150 = vmatprep.subr.mxu0 0.0
        %3151 = vmatpush1.msra.mxu0 0.0
        %3152 = vmatprep.subr.mxu0 0.0
        %3153 = vmatpush1.msra.mxu0 0.0
        %3154 = vmatprep.subr.mxu0 0.0
        %3155 = vmatpush1.msra.mxu0 0.0
        %3156 = vmatprep.mubr.f32.mxu0 0.0
        %3157 = vmatmul.mubr.f32.gmra.mrb[0].mxu0 %v1172
        %v3158 = vpop.f32.mrb[0].mxu0
        %v3159 = vadd.f32 0.0, %v3158
        %v3160 = vpop.f32.mrb[0].mxu0
        %3161 = vmatprep.mubr.f32.mxu0 0.0
        %3162 = vmatmul.mubr.f32.gmra.mrb[0].mxu0 %v1175
        %v3163 = vpop.f32.mrb[0].mxu0
        %v3164 = vadd.f32 0.0, %v3163
        %v3165 = vpop.f32.mrb[0].mxu0
        %3166 = vdwg.mxu0
        %3169 = vrot.lane.b32.xlu0 %v3159, 32
        %v3170 = vpop.permute.xlu0 %3169
        %3171 = vrot.lane.b32.xlu0 %v3164, 32
        %v3172 = vpop.permute.xlu0 %3171
        %3175 = vrot.lane.b32.xlu0 %v3159, 64
        %v3176 = vpop.permute.xlu0 %3175
        %3177 = vrot.lane.b32.xlu0 %v3164, 64
        %v3178 = vpop.permute.xlu0 %3177
        %3181 = vrot.lane.b32.xlu0 %v3159, 96
        %v3182 = vpop.permute.xlu0 %3181
        %3183 = vrot.lane.b32.xlu0 %v3164, 96
        %v3184 = vpop.permute.xlu0 %3183
        %v3187 = vsel %vm571, %v3159, %v3170
        %v3188 = vsel %vm571, %v3164, %v3172
        %v3189 = vsel %vm1274, %v3187, %v3176
        %v3190 = vsel %vm1274, %v3188, %v3178
        %v3191 = vsel %vm1277, %v3189, %v3182
        %v3192 = vsel %vm1277, %v3190, %v3184
        %v3193 = vmul.f32 %v3191, %v850
        %v3194 = vmul.f32 %v3191, %v852
        %v3195 = vmul.f32 %v3191, %v927
        %v3196 = vmul.f32 %v3191, %v929
        %v3197 = vmul.f32 %v3191, %v1004
        %v3198 = vmul.f32 %v3191, %v1006
        %v3199 = vmul.f32 %v3191, %v1081
        %v3200 = vmul.f32 %v3191, %v1083
        %v3201 = vmul.f32 %v3192, %v856
        %v3202 = vmul.f32 %v3192, %v858
        %v3203 = vmul.f32 %v3192, %v933
        %v3204 = vmul.f32 %v3192, %v935
        %v3205 = vmul.f32 %v3192, %v1010
        %v3206 = vmul.f32 %v3192, %v1012
        %v3207 = vmul.f32 %v3192, %v1087
        %v3208 = vmul.f32 %v3192, %v1089
        %3209 = vmatprep.subr.mxu0 0.0
        %3210 = vmatpush1.msra.mxu0 %v439
        %3211 = vmatprep.subr.mxu0 0.0
        %3212 = vmatpush1.msra.mxu0 %v440
        %3213 = vmatprep.subr.mxu0 0.0
        %3214 = vmatpush1.msra.mxu0 %v441
        %3215 = vmatprep.subr.mxu0 0.0
        %3216 = vmatpush1.msra.mxu0 %v442
        %3217 = vmatprep.subr.mxu0 0.0
        %3218 = vmatpush1.msra.mxu0 %v443
        %3219 = vmatprep.subr.mxu0 0.0
        %3220 = vmatpush1.msra.mxu0 %v444
        %3221 = vmatprep.subr.mxu0 0.0
        %3222 = vmatpush1.msra.mxu0 %v445
        %3223 = vmatprep.subr.mxu0 0.0
        %3224 = vmatpush1.msra.mxu0 %v446
        %3225 = vmatprep.subr.mxu0 0.0
        %3226 = vmatpush1.msra.mxu0 %v447
        %3227 = vmatprep.subr.mxu0 0.0
        %3228 = vmatpush1.msra.mxu0 %v448
        %3229 = vmatprep.subr.mxu0 0.0
        %3230 = vmatpush1.msra.mxu0 %v449
        %3231 = vmatprep.subr.mxu0 0.0
        %3232 = vmatpush1.msra.mxu0 %v450
        %3233 = vmatprep.subr.mxu0 0.0
        %3234 = vmatpush1.msra.mxu0 %v451
        %3235 = vmatprep.subr.mxu0 0.0
        %3236 = vmatpush1.msra.mxu0 %v452
        %3237 = vmatprep.subr.mxu0 0.0
        %3238 = vmatpush1.msra.mxu0 %v453
        %3239 = vmatprep.subr.mxu0 0.0
        %3240 = vmatpush1.msra.mxu0 %v454
        %3241 = vmatprep.subr.mxu0 0.0
        %3242 = vmatpush1.msra.mxu0 %v455
        %3243 = vmatprep.subr.mxu0 0.0
        %3244 = vmatpush1.msra.mxu0 %v456
        %3245 = vmatprep.subr.mxu0 0.0
        %3246 = vmatpush1.msra.mxu0 %v457
        %3247 = vmatprep.subr.mxu0 0.0
        %3248 = vmatpush1.msra.mxu0 %v458
        %3249 = vmatprep.subr.mxu0 0.0
        %3250 = vmatpush1.msra.mxu0 %v459
        %3251 = vmatprep.subr.mxu0 0.0
        %3252 = vmatpush1.msra.mxu0 %v460
        %3253 = vmatprep.subr.mxu0 0.0
        %3254 = vmatpush1.msra.mxu0 %v461
        %3255 = vmatprep.subr.mxu0 0.0
        %3256 = vmatpush1.msra.mxu0 %v462
        %3257 = vmatprep.subr.mxu0 0.0
        %3258 = vmatpush1.msra.mxu0 %v463
        %3259 = vmatprep.subr.mxu0 0.0
        %3260 = vmatpush1.msra.mxu0 %v464
        %3261 = vmatprep.subr.mxu0 0.0
        %3262 = vmatpush1.msra.mxu0 %v465
        %3263 = vmatprep.subr.mxu0 0.0
        %3264 = vmatpush1.msra.mxu0 %v466
        %3265 = vmatprep.subr.mxu0 0.0
        %3266 = vmatpush1.msra.mxu0 %v467
        %3267 = vmatprep.subr.mxu0 0.0
        %3268 = vmatpush1.msra.mxu0 %v468
        %3269 = vmatprep.subr.mxu0 0.0
        %3270 = vmatpush1.msra.mxu0 %v469
        %3271 = vmatprep.subr.mxu0 0.0
        %3272 = vmatpush1.msra.mxu0 %v470
        %3273 = vmatprep.mubr.f32.mxu0 %v3194
        %3274 = vmatmul.mubr.f32.gmra.mrb[0].mxu0 %v3193
        %v3275 = vpop.f32.mrb[0].mxu0
        %v3276 = vadd.f32 0.0, %v3275
        %v3277 = vpop.f32.mrb[0].mxu0
        %3278 = vmatprep.mubr.f32.mxu0 %v3202
        %3279 = vmatmul.mubr.f32.gmra.mrb[0].mxu0 %v3201
        %v3280 = vpop.f32.mrb[0].mxu0
        %v3281 = vadd.f32 0.0, %v3280
        %v3282 = vpop.f32.mrb[0].mxu0
        %3283 = vdwg.mxu0
        %3284 = vmatprep.subr.mxu0 0.0
        %3285 = vmatpush1.msra.mxu0 %v471
        %3286 = vmatprep.subr.mxu0 0.0
        %3287 = vmatpush1.msra.mxu0 %v472
        %3288 = vmatprep.subr.mxu0 0.0
        %3289 = vmatpush1.msra.mxu0 %v473
        %3290 = vmatprep.subr.mxu0 0.0
        %3291 = vmatpush1.msra.mxu0 %v474
        %3292 = vmatprep.subr.mxu0 0.0
        %3293 = vmatpush1.msra.mxu0 %v475
        %3294 = vmatprep.subr.mxu0 0.0
        %3295 = vmatpush1.msra.mxu0 %v476
        %3296 = vmatprep.subr.mxu0 0.0
        %3297 = vmatpush1.msra.mxu0 %v477
        %3298 = vmatprep.subr.mxu0 0.0
        %3299 = vmatpush1.msra.mxu0 %v478
        %3300 = vmatprep.subr.mxu0 0.0
        %3301 = vmatpush1.msra.mxu0 %v479
        %3302 = vmatprep.subr.mxu0 0.0
        %3303 = vmatpush1.msra.mxu0 %v480
        %3304 = vmatprep.subr.mxu0 0.0
        %3305 = vmatpush1.msra.mxu0 %v481
        %3306 = vmatprep.subr.mxu0 0.0
        %3307 = vmatpush1.msra.mxu0 %v482
        %3308 = vmatprep.subr.mxu0 0.0
        %3309 = vmatpush1.msra.mxu0 %v483
        %3310 = vmatprep.subr.mxu0 0.0
        %3311 = vmatpush1.msra.mxu0 %v484
        %3312 = vmatprep.subr.mxu0 0.0
        %3313 = vmatpush1.msra.mxu0 %v485
        %3314 = vmatprep.subr.mxu0 0.0
        %3315 = vmatpush1.msra.mxu0 %v486
        %3316 = vmatprep.subr.mxu0 0.0
        %3317 = vmatpush1.msra.mxu0 %v487
        %3318 = vmatprep.subr.mxu0 0.0
        %3319 = vmatpush1.msra.mxu0 %v488
        %3320 = vmatprep.subr.mxu0 0.0
        %3321 = vmatpush1.msra.mxu0 %v489
        %3322 = vmatprep.subr.mxu0 0.0
        %3323 = vmatpush1.msra.mxu0 %v490
        %3324 = vmatprep.subr.mxu0 0.0
        %3325 = vmatpush1.msra.mxu0 %v491
        %3326 = vmatprep.subr.mxu0 0.0
        %3327 = vmatpush1.msra.mxu0 %v492
        %3328 = vmatprep.subr.mxu0 0.0
        %3329 = vmatpush1.msra.mxu0 %v493
        %3330 = vmatprep.subr.mxu0 0.0
        %3331 = vmatpush1.msra.mxu0 %v494
        %3332 = vmatprep.subr.mxu0 0.0
        %3333 = vmatpush1.msra.mxu0 %v495
        %3334 = vmatprep.subr.mxu0 0.0
        %3335 = vmatpush1.msra.mxu0 %v496
        %3336 = vmatprep.subr.mxu0 0.0
        %3337 = vmatpush1.msra.mxu0 %v497
        %3338 = vmatprep.subr.mxu0 0.0
        %3339 = vmatpush1.msra.mxu0 %v498
        %3340 = vmatprep.subr.mxu0 0.0
        %3341 = vmatpush1.msra.mxu0 %v499
        %3342 = vmatprep.subr.mxu0 0.0
        %3343 = vmatpush1.msra.mxu0 %v500
        %3344 = vmatprep.subr.mxu0 0.0
        %3345 = vmatpush1.msra.mxu0 %v501
        %3346 = vmatprep.subr.mxu0 0.0
        %3347 = vmatpush1.msra.mxu0 %v502
        %3348 = vmatprep.mubr.f32.mxu0 %v3196
        %3349 = vmatmul.mubr.f32.gmra.mrb[0].mxu0 %v3195
        %v3350 = vpop.f32.mrb[0].mxu0
        %v3351 = vadd.f32 %v3276, %v3350
        %v3352 = vpop.f32.mrb[0].mxu0
        %3353 = vmatprep.mubr.f32.mxu0 %v3204
        %3354 = vmatmul.mubr.f32.gmra.mrb[0].mxu0 %v3203
        %v3355 = vpop.f32.mrb[0].mxu0
        %v3356 = vadd.f32 %v3281, %v3355
        %v3357 = vpop.f32.mrb[0].mxu0
        %3358 = vdwg.mxu0
        %3359 = vmatprep.subr.mxu0 0.0
        %3360 = vmatpush1.msra.mxu0 %v503
        %3361 = vmatprep.subr.mxu0 0.0
        %3362 = vmatpush1.msra.mxu0 %v504
        %3363 = vmatprep.subr.mxu0 0.0
        %3364 = vmatpush1.msra.mxu0 %v505
        %3365 = vmatprep.subr.mxu0 0.0
        %3366 = vmatpush1.msra.mxu0 %v506
        %3367 = vmatprep.subr.mxu0 0.0
        %3368 = vmatpush1.msra.mxu0 %v507
        %3369 = vmatprep.subr.mxu0 0.0
        %3370 = vmatpush1.msra.mxu0 %v508
        %3371 = vmatprep.subr.mxu0 0.0
        %3372 = vmatpush1.msra.mxu0 %v509
        %3373 = vmatprep.subr.mxu0 0.0
        %3374 = vmatpush1.msra.mxu0 %v510
        %3375 = vmatprep.subr.mxu0 0.0
        %3376 = vmatpush1.msra.mxu0 %v511
        %3377 = vmatprep.subr.mxu0 0.0
        %3378 = vmatpush1.msra.mxu0 %v512
        %3379 = vmatprep.subr.mxu0 0.0
        %3380 = vmatpush1.msra.mxu0 %v513
        %3381 = vmatprep.subr.mxu0 0.0
        %3382 = vmatpush1.msra.mxu0 %v514
        %3383 = vmatprep.subr.mxu0 0.0
        %3384 = vmatpush1.msra.mxu0 %v515
        %3385 = vmatprep.subr.mxu0 0.0
        %3386 = vmatpush1.msra.mxu0 %v516
        %3387 = vmatprep.subr.mxu0 0.0
        %3388 = vmatpush1.msra.mxu0 %v517
        %3389 = vmatprep.subr.mxu0 0.0
        %3390 = vmatpush1.msra.mxu0 %v518
        %3391 = vmatprep.subr.mxu0 0.0
        %3392 = vmatpush1.msra.mxu0 %v519
        %3393 = vmatprep.subr.mxu0 0.0
        %3394 = vmatpush1.msra.mxu0 %v520
        %3395 = vmatprep.subr.mxu0 0.0
        %3396 = vmatpush1.msra.mxu0 %v521
        %3397 = vmatprep.subr.mxu0 0.0
        %3398 = vmatpush1.msra.mxu0 %v522
        %3399 = vmatprep.subr.mxu0 0.0
        %3400 = vmatpush1.msra.mxu0 %v523
        %3401 = vmatprep.subr.mxu0 0.0
        %3402 = vmatpush1.msra.mxu0 %v524
        %3403 = vmatprep.subr.mxu0 0.0
        %3404 = vmatpush1.msra.mxu0 %v525
        %3405 = vmatprep.subr.mxu0 0.0
        %3406 = vmatpush1.msra.mxu0 %v526
        %3407 = vmatprep.subr.mxu0 0.0
        %3408 = vmatpush1.msra.mxu0 %v527
        %3409 = vmatprep.subr.mxu0 0.0
        %3410 = vmatpush1.msra.mxu0 %v528
        %3411 = vmatprep.subr.mxu0 0.0
        %3412 = vmatpush1.msra.mxu0 %v529
        %3413 = vmatprep.subr.mxu0 0.0
        %3414 = vmatpush1.msra.mxu0 %v530
        %3415 = vmatprep.subr.mxu0 0.0
        %3416 = vmatpush1.msra.mxu0 %v531
        %3417 = vmatprep.subr.mxu0 0.0
        %3418 = vmatpush1.msra.mxu0 %v532
        %3419 = vmatprep.subr.mxu0 0.0
        %3420 = vmatpush1.msra.mxu0 %v533
        %3421 = vmatprep.subr.mxu0 0.0
        %3422 = vmatpush1.msra.mxu0 %v534
        %3423 = vmatprep.mubr.f32.mxu0 %v3198
        %3424 = vmatmul.mubr.f32.gmra.mrb[0].mxu0 %v3197
        %v3425 = vpop.f32.mrb[0].mxu0
        %v3426 = vadd.f32 %v3351, %v3425
        %v3427 = vpop.f32.mrb[0].mxu0
        %3428 = vmatprep.mubr.f32.mxu0 %v3206
        %3429 = vmatmul.mubr.f32.gmra.mrb[0].mxu0 %v3205
        %v3430 = vpop.f32.mrb[0].mxu0
        %v3431 = vadd.f32 %v3356, %v3430
        %v3432 = vpop.f32.mrb[0].mxu0
        %3433 = vdwg.mxu0
        %3434 = vmatprep.subr.mxu0 0.0
        %3435 = vmatpush1.msra.mxu0 %v535
        %3436 = vmatprep.subr.mxu0 0.0
        %3437 = vmatpush1.msra.mxu0 %v536
        %3438 = vmatprep.subr.mxu0 0.0
        %3439 = vmatpush1.msra.mxu0 %v537
        %3440 = vmatprep.subr.mxu0 0.0
        %3441 = vmatpush1.msra.mxu0 %v538
        %3442 = vmatprep.subr.mxu0 0.0
        %3443 = vmatpush1.msra.mxu0 %v539
        %3444 = vmatprep.subr.mxu0 0.0
        %3445 = vmatpush1.msra.mxu0 %v540
        %3446 = vmatprep.subr.mxu0 0.0
        %3447 = vmatpush1.msra.mxu0 %v541
        %3448 = vmatprep.subr.mxu0 0.0
        %3449 = vmatpush1.msra.mxu0 %v542
        %3450 = vmatprep.subr.mxu0 0.0
        %3451 = vmatpush1.msra.mxu0 %v543
        %3452 = vmatprep.subr.mxu0 0.0
        %3453 = vmatpush1.msra.mxu0 %v544
        %3454 = vmatprep.subr.mxu0 0.0
        %3455 = vmatpush1.msra.mxu0 %v545
        %3456 = vmatprep.subr.mxu0 0.0
        %3457 = vmatpush1.msra.mxu0 %v546
        %3458 = vmatprep.subr.mxu0 0.0
        %3459 = vmatpush1.msra.mxu0 %v547
        %3460 = vmatprep.subr.mxu0 0.0
        %3461 = vmatpush1.msra.mxu0 %v548
        %3462 = vmatprep.subr.mxu0 0.0
        %3463 = vmatpush1.msra.mxu0 %v549
        %3464 = vmatprep.subr.mxu0 0.0
        %3465 = vmatpush1.msra.mxu0 %v550
        %3466 = vmatprep.subr.mxu0 0.0
        %3467 = vmatpush1.msra.mxu0 %v551
        %3468 = vmatprep.subr.mxu0 0.0
        %3469 = vmatpush1.msra.mxu0 %v552
        %3470 = vmatprep.subr.mxu0 0.0
        %3471 = vmatpush1.msra.mxu0 %v553
        %3472 = vmatprep.subr.mxu0 0.0
        %3473 = vmatpush1.msra.mxu0 %v554
        %3474 = vmatprep.subr.mxu0 0.0
        %3475 = vmatpush1.msra.mxu0 %v555
        %3476 = vmatprep.subr.mxu0 0.0
        %3477 = vmatpush1.msra.mxu0 %v556
        %3478 = vmatprep.subr.mxu0 0.0
        %3479 = vmatpush1.msra.mxu0 %v557
        %3480 = vmatprep.subr.mxu0 0.0
        %3481 = vmatpush1.msra.mxu0 %v558
        %3482 = vmatprep.subr.mxu0 0.0
        %3483 = vmatpush1.msra.mxu0 %v559
        %3484 = vmatprep.subr.mxu0 0.0
        %3485 = vmatpush1.msra.mxu0 %v560
        %3486 = vmatprep.subr.mxu0 0.0
        %3487 = vmatpush1.msra.mxu0 %v561
        %3488 = vmatprep.subr.mxu0 0.0
        %3489 = vmatpush1.msra.mxu0 %v562
        %3490 = vmatprep.subr.mxu0 0.0
        %3491 = vmatpush1.msra.mxu0 %v563
        %3492 = vmatprep.subr.mxu0 0.0
        %3493 = vmatpush1.msra.mxu0 %v564
        %3494 = vmatprep.subr.mxu0 0.0
        %3495 = vmatpush1.msra.mxu0 %v565
        %3496 = vmatprep.subr.mxu0 0.0
        %3497 = vmatpush1.msra.mxu0 %v566
        %3498 = vmatprep.mubr.f32.mxu0 %v3200
        %3499 = vmatmul.mubr.f32.gmra.mrb[0].mxu0 %v3199
        %v3500 = vpop.f32.mrb[0].mxu0
        %v3501 = vadd.f32 %v3426, %v3500
        %v3502 = vpop.f32.mrb[0].mxu0
        %3503 = vmatprep.mubr.f32.mxu0 %v3208
        %3504 = vmatmul.mubr.f32.gmra.mrb[0].mxu0 %v3207
        %v3505 = vpop.f32.mrb[0].mxu0
        %v3506 = vadd.f32 %v3431, %v3505
        %v3507 = vpop.f32.mrb[0].mxu0
        %3508 = vdwg.mxu0
        %3509 = vmatprep.subr.mxu0 0.0
        %3510 = vmatpush1.msra.mxu0 %v3501
        %3511 = vmatprep.subr.mxu0 0.0
        %3512 = vmatpush1.msra.mxu0 %v3506
        %3513 = vmatprep.subr.mxu0 0.0
        %3514 = vmatpush1.msra.mxu0 0.0
        %3515 = vmatprep.subr.mxu0 0.0
        %3516 = vmatpush1.msra.mxu0 0.0
        %3517 = vmatprep.subr.mxu0 0.0
        %3518 = vmatpush1.msra.mxu0 0.0
        %3519 = vmatprep.subr.mxu0 0.0
        %3520 = vmatpush1.msra.mxu0 0.0
        %3521 = vmatprep.subr.mxu0 0.0
        %3522 = vmatpush1.msra.mxu0 0.0
        %3523 = vmatprep.subr.mxu0 0.0
        %3524 = vmatpush1.msra.mxu0 0.0
        %3525 = vmatprep.subr.mxu0 0.0
        %3526 = vmatpush1.msra.mxu0 0.0
        %3527 = vmatprep.subr.mxu0 0.0
        %3528 = vmatpush1.msra.mxu0 0.0
        %3529 = vmatprep.subr.mxu0 0.0
        %3530 = vmatpush1.msra.mxu0 0.0
        %3531 = vmatprep.subr.mxu0 0.0
        %3532 = vmatpush1.msra.mxu0 0.0
        %3533 = vmatprep.subr.mxu0 0.0
        %3534 = vmatpush1.msra.mxu0 0.0
        %3535 = vmatprep.subr.mxu0 0.0
        %3536 = vmatpush1.msra.mxu0 0.0
        %3537 = vmatprep.subr.mxu0 0.0
        %3538 = vmatpush1.msra.mxu0 0.0
        %3539 = vmatprep.subr.mxu0 0.0
        %3540 = vmatpush1.msra.mxu0 0.0
        %3541 = vmatprep.subr.mxu0 0.0
        %3542 = vmatpush1.msra.mxu0 0.0
        %3543 = vmatprep.subr.mxu0 0.0
        %3544 = vmatpush1.msra.mxu0 0.0
        %3545 = vmatprep.subr.mxu0 0.0
        %3546 = vmatpush1.msra.mxu0 0.0
        %3547 = vmatprep.subr.mxu0 0.0
        %3548 = vmatpush1.msra.mxu0 0.0
        %3549 = vmatprep.subr.mxu0 0.0
        %3550 = vmatpush1.msra.mxu0 0.0
        %3551 = vmatprep.subr.mxu0 0.0
        %3552 = vmatpush1.msra.mxu0 0.0
        %3553 = vmatprep.subr.mxu0 0.0
        %3554 = vmatpush1.msra.mxu0 0.0
        %3555 = vmatprep.subr.mxu0 0.0
        %3556 = vmatpush1.msra.mxu0 0.0
        %3557 = vmatprep.subr.mxu0 0.0
        %3558 = vmatpush1.msra.mxu0 0.0
        %3559 = vmatprep.subr.mxu0 0.0
        %3560 = vmatpush1.msra.mxu0 0.0
        %3561 = vmatprep.subr.mxu0 0.0
        %3562 = vmatpush1.msra.mxu0 0.0
        %3563 = vmatprep.subr.mxu0 0.0
        %3564 = vmatpush1.msra.mxu0 0.0
        %3565 = vmatprep.subr.mxu0 0.0
        %3566 = vmatpush1.msra.mxu0 0.0
        %3567 = vmatprep.subr.mxu0 0.0
        %3568 = vmatpush1.msra.mxu0 0.0
        %3569 = vmatprep.subr.mxu0 0.0
        %3570 = vmatpush1.msra.mxu0 0.0
        %3571 = vmatprep.subr.mxu0 0.0
        %3572 = vmatpush1.msra.mxu0 0.0
        %3573 = vmatprep.mubr.f32.mxu0 0.0
        %3574 = vmatmul.mubr.f32.gmra.mrb[0].mxu0 %v1598
        %v3575 = vpop.f32.mrb[0].mxu0
        %v3576 = vadd.f32 %v3016, %v3575
        %v3577 = vpop.f32.mrb[0].mxu0
        %3578 = vdwg.mxu0
        %v3579 = vadd.f32 %v3576, %v1673
        %v3580 = vmax.f32 %v3579, 0.0
        %v3582 = vsel %vm571, %v3580, 0
        %3584 = vmatprep.subr.mxu0 0.0
        %3585 = vmatpush1.msra.mxu0 %v390
        %3586 = vmatprep.subr.mxu0 0.0
        %3587 = vmatpush1.msra.mxu0 %v391
        %3588 = vmatprep.subr.mxu0 0.0
        %3589 = vmatpush1.msra.mxu0 %v392
        %3590 = vmatprep.subr.mxu0 0.0
        %3591 = vmatpush1.msra.mxu0 %v393
        %3592 = vmatprep.subr.mxu0 0.0
        %3593 = vmatpush1.msra.mxu0 0.0
        %3594 = vmatprep.subr.mxu0 0.0
        %3595 = vmatpush1.msra.mxu0 0.0
        %3596 = vmatprep.subr.mxu0 0.0
        %3597 = vmatpush1.msra.mxu0 0.0
        %3598 = vmatprep.subr.mxu0 0.0
        %3599 = vmatpush1.msra.mxu0 0.0
        %3600 = vmatprep.subr.mxu0 0.0
        %3601 = vmatpush1.msra.mxu0 0.0
        %3602 = vmatprep.subr.mxu0 0.0
        %3603 = vmatpush1.msra.mxu0 0.0
        %3604 = vmatprep.subr.mxu0 0.0
        %3605 = vmatpush1.msra.mxu0 0.0
        %3606 = vmatprep.subr.mxu0 0.0
        %3607 = vmatpush1.msra.mxu0 0.0
        %3608 = vmatprep.subr.mxu0 0.0
        %3609 = vmatpush1.msra.mxu0 0.0
        %3610 = vmatprep.subr.mxu0 0.0
        %3611 = vmatpush1.msra.mxu0 0.0
        %3612 = vmatprep.subr.mxu0 0.0
        %3613 = vmatpush1.msra.mxu0 0.0
        %3614 = vmatprep.subr.mxu0 0.0
        %3615 = vmatpush1.msra.mxu0 0.0
        %3616 = vmatprep.subr.mxu0 0.0
        %3617 = vmatpush1.msra.mxu0 0.0
        %3618 = vmatprep.subr.mxu0 0.0
        %3619 = vmatpush1.msra.mxu0 0.0
        %3620 = vmatprep.subr.mxu0 0.0
        %3621 = vmatpush1.msra.mxu0 0.0
        %3622 = vmatprep.subr.mxu0 0.0
        %3623 = vmatpush1.msra.mxu0 0.0
        %3624 = vmatprep.subr.mxu0 0.0
        %3625 = vmatpush1.msra.mxu0 0.0
        %3626 = vmatprep.subr.mxu0 0.0
        %3627 = vmatpush1.msra.mxu0 0.0
        %3628 = vmatprep.subr.mxu0 0.0
        %3629 = vmatpush1.msra.mxu0 0.0
        %3630 = vmatprep.subr.mxu0 0.0
        %3631 = vmatpush1.msra.mxu0 0.0
        %3632 = vmatprep.subr.mxu0 0.0
        %3633 = vmatpush1.msra.mxu0 0.0
        %3634 = vmatprep.subr.mxu0 0.0
        %3635 = vmatpush1.msra.mxu0 0.0
        %3636 = vmatprep.subr.mxu0 0.0
        %3637 = vmatpush1.msra.mxu0 0.0
        %3638 = vmatprep.subr.mxu0 0.0
        %3639 = vmatpush1.msra.mxu0 0.0
        %3640 = vmatprep.subr.mxu0 0.0
        %3641 = vmatpush1.msra.mxu0 0.0
        %3642 = vmatprep.subr.mxu0 0.0
        %3643 = vmatpush1.msra.mxu0 0.0
        %3644 = vmatprep.subr.mxu0 0.0
        %3645 = vmatpush1.msra.mxu0 0.0
        %3646 = vmatprep.subr.mxu0 0.0
        %3647 = vmatpush1.msra.mxu0 0.0
        %3648 = vmatprep.mubr.f32.mxu0 0.0
        %3649 = vmatmul.mubr.f32.gmra.mrb[0].mxu0 %v3582
        %v3650 = vpop.f32.mrb[0].mxu0
        %v3651 = vadd.f32 %v3089, %v3650
        %v3652 = vpop.f32.mrb[0].mxu0
        %3653 = vdwg.mxu0
        %v3655 = vsel %vm571, %v3651, 0
        %3657 = vmatprep.subr.mxu0 0.0
        %3658 = vmatpush1.msra.mxu0 %v394
        %3659 = vmatprep.subr.mxu0 0.0
        %3660 = vmatpush1.msra.mxu0 %v395
        %3661 = vmatprep.subr.mxu0 0.0
        %3662 = vmatpush1.msra.mxu0 %v396
        %3663 = vmatprep.subr.mxu0 0.0
        %3664 = vmatpush1.msra.mxu0 %v397
        %3665 = vmatprep.subr.mxu0 0.0
        %3666 = vmatpush1.msra.mxu0 0.0
        %3667 = vmatprep.subr.mxu0 0.0
        %3668 = vmatpush1.msra.mxu0 0.0
        %3669 = vmatprep.subr.mxu0 0.0
        %3670 = vmatpush1.msra.mxu0 0.0
        %3671 = vmatprep.subr.mxu0 0.0
        %3672 = vmatpush1.msra.mxu0 0.0
        %3673 = vmatprep.subr.mxu0 0.0
        %3674 = vmatpush1.msra.mxu0 0.0
        %3675 = vmatprep.subr.mxu0 0.0
        %3676 = vmatpush1.msra.mxu0 0.0
        %3677 = vmatprep.subr.mxu0 0.0
        %3678 = vmatpush1.msra.mxu0 0.0
        %3679 = vmatprep.subr.mxu0 0.0
        %3680 = vmatpush1.msra.mxu0 0.0
        %3681 = vmatprep.subr.mxu0 0.0
        %3682 = vmatpush1.msra.mxu0 0.0
        %3683 = vmatprep.subr.mxu0 0.0
        %3684 = vmatpush1.msra.mxu0 0.0
        %3685 = vmatprep.subr.mxu0 0.0
        %3686 = vmatpush1.msra.mxu0 0.0
        %3687 = vmatprep.subr.mxu0 0.0
        %3688 = vmatpush1.msra.mxu0 0.0
        %3689 = vmatprep.subr.mxu0 0.0
        %3690 = vmatpush1.msra.mxu0 0.0
        %3691 = vmatprep.subr.mxu0 0.0
        %3692 = vmatpush1.msra.mxu0 0.0
        %3693 = vmatprep.subr.mxu0 0.0
        %3694 = vmatpush1.msra.mxu0 0.0
        %3695 = vmatprep.subr.mxu0 0.0
        %3696 = vmatpush1.msra.mxu0 0.0
        %3697 = vmatprep.subr.mxu0 0.0
        %3698 = vmatpush1.msra.mxu0 0.0
        %3699 = vmatprep.subr.mxu0 0.0
        %3700 = vmatpush1.msra.mxu0 0.0
        %3701 = vmatprep.subr.mxu0 0.0
        %3702 = vmatpush1.msra.mxu0 0.0
        %3703 = vmatprep.subr.mxu0 0.0
        %3704 = vmatpush1.msra.mxu0 0.0
        %3705 = vmatprep.subr.mxu0 0.0
        %3706 = vmatpush1.msra.mxu0 0.0
        %3707 = vmatprep.subr.mxu0 0.0
        %3708 = vmatpush1.msra.mxu0 0.0
        %3709 = vmatprep.subr.mxu0 0.0
        %3710 = vmatpush1.msra.mxu0 0.0
        %3711 = vmatprep.subr.mxu0 0.0
        %3712 = vmatpush1.msra.mxu0 0.0
        %3713 = vmatprep.subr.mxu0 0.0
        %3714 = vmatpush1.msra.mxu0 0.0
        %3715 = vmatprep.subr.mxu0 0.0
        %3716 = vmatpush1.msra.mxu0 0.0
        %3717 = vmatprep.subr.mxu0 0.0
        %3718 = vmatpush1.msra.mxu0 0.0
        %3719 = vmatprep.subr.mxu0 0.0
        %3720 = vmatpush1.msra.mxu0 0.0
        %3721 = vmatprep.mubr.f32.mxu0 0.0
        %3722 = vmatmul.mubr.f32.gmra.mrb[0].mxu0 %v3655
        %v3723 = vpop.f32.mrb[0].mxu0
        %v3724 = vadd.f32 %v1097, %v3723
        %v3725 = vpop.f32.mrb[0].mxu0
        %3726 = vdwg.mxu0
        %3727 = vmatprep.subr.mxu0 0.0
        %3728 = vmatpush1.msra.mxu0 %v3651
        %3729 = vmatprep.subr.mxu0 0.0
        %3730 = vmatpush1.msra.mxu0 0.0
        %3731 = vmatprep.subr.mxu0 0.0
        %3732 = vmatpush1.msra.mxu0 0.0
        %3733 = vmatprep.subr.mxu0 0.0
        %3734 = vmatpush1.msra.mxu0 0.0
        %3735 = vmatprep.subr.mxu0 0.0
        %3736 = vmatpush1.msra.mxu0 0.0
        %3737 = vmatprep.subr.mxu0 0.0
        %3738 = vmatpush1.msra.mxu0 0.0
        %3739 = vmatprep.subr.mxu0 0.0
        %3740 = vmatpush1.msra.mxu0 0.0
        %3741 = vmatprep.subr.mxu0 0.0
        %3742 = vmatpush1.msra.mxu0 0.0
        %3743 = vmatprep.subr.mxu0 0.0
        %3744 = vmatpush1.msra.mxu0 0.0
        %3745 = vmatprep.subr.mxu0 0.0
        %3746 = vmatpush1.msra.mxu0 0.0
        %3747 = vmatprep.subr.mxu0 0.0
        %3748 = vmatpush1.msra.mxu0 0.0
        %3749 = vmatprep.subr.mxu0 0.0
        %3750 = vmatpush1.msra.mxu0 0.0
        %3751 = vmatprep.subr.mxu0 0.0
        %3752 = vmatpush1.msra.mxu0 0.0
        %3753 = vmatprep.subr.mxu0 0.0
        %3754 = vmatpush1.msra.mxu0 0.0
        %3755 = vmatprep.subr.mxu0 0.0
        %3756 = vmatpush1.msra.mxu0 0.0
        %3757 = vmatprep.subr.mxu0 0.0
        %3758 = vmatpush1.msra.mxu0 0.0
        %3759 = vmatprep.subr.mxu0 0.0
        %3760 = vmatpush1.msra.mxu0 0.0
        %3761 = vmatprep.subr.mxu0 0.0
        %3762 = vmatpush1.msra.mxu0 0.0
        %3763 = vmatprep.subr.mxu0 0.0
        %3764 = vmatpush1.msra.mxu0 0.0
        %3765 = vmatprep.subr.mxu0 0.0
        %3766 = vmatpush1.msra.mxu0 0.0
        %3767 = vmatprep.subr.mxu0 0.0
        %3768 = vmatpush1.msra.mxu0 0.0
        %3769 = vmatprep.subr.mxu0 0.0
        %3770 = vmatpush1.msra.mxu0 0.0
        %3771 = vmatprep.subr.mxu0 0.0
        %3772 = vmatpush1.msra.mxu0 0.0
        %3773 = vmatprep.subr.mxu0 0.0
        %3774 = vmatpush1.msra.mxu0 0.0
        %3775 = vmatprep.subr.mxu0 0.0
        %3776 = vmatpush1.msra.mxu0 0.0
        %3777 = vmatprep.subr.mxu0 0.0
        %3778 = vmatpush1.msra.mxu0 0.0
        %3779 = vmatprep.subr.mxu0 0.0
        %3780 = vmatpush1.msra.mxu0 0.0
        %3781 = vmatprep.subr.mxu0 0.0
        %3782 = vmatpush1.msra.mxu0 0.0
        %3783 = vmatprep.subr.mxu0 0.0
        %3784 = vmatpush1.msra.mxu0 0.0
        %3785 = vmatprep.subr.mxu0 0.0
        %3786 = vmatpush1.msra.mxu0 0.0
        %3787 = vmatprep.subr.mxu0 0.0
        %3788 = vmatpush1.msra.mxu0 0.0
        %3789 = vmatprep.subr.mxu0 0.0
        %3790 = vmatpush1.msra.mxu0 0.0
        %3791 = vmatprep.mubr.f32.mxu0 0.0
        %3792 = vmatmul.mubr.f32.gmra.mrb[0].mxu0 %v1172
        %v3793 = vpop.f32.mrb[0].mxu0
        %v3794 = vadd.f32 0.0, %v3793
        %v3795 = vpop.f32.mrb[0].mxu0
        %3796 = vmatprep.mubr.f32.mxu0 0.0
        %3797 = vmatmul.mubr.f32.gmra.mrb[0].mxu0 %v1175
        %v3798 = vpop.f32.mrb[0].mxu0
        %v3799 = vadd.f32 0.0, %v3798
        %v3800 = vpop.f32.mrb[0].mxu0
        %3801 = vdwg.mxu0
        %3804 = vrot.lane.b32.xlu0 %v3794, 32
        %v3805 = vpop.permute.xlu0 %3804
        %3806 = vrot.lane.b32.xlu0 %v3799, 32
        %v3807 = vpop.permute.xlu0 %3806
        %3810 = vrot.lane.b32.xlu0 %v3794, 64
        %v3811 = vpop.permute.xlu0 %3810
        %3812 = vrot.lane.b32.xlu0 %v3799, 64
        %v3813 = vpop.permute.xlu0 %3812
        %3816 = vrot.lane.b32.xlu0 %v3794, 96
        %v3817 = vpop.permute.xlu0 %3816
        %3818 = vrot.lane.b32.xlu0 %v3799, 96
        %v3819 = vpop.permute.xlu0 %3818
        %v3822 = vsel %vm571, %v3794, %v3805
        %v3823 = vsel %vm571, %v3799, %v3807
        %v3824 = vsel %vm1274, %v3822, %v3811
        %v3825 = vsel %vm1274, %v3823, %v3813
        %v3826 = vsel %vm1277, %v3824, %v3817
        %v3827 = vsel %vm1277, %v3825, %v3819
        %v3828 = vmul.f32 %v3826, %v850
        %v3829 = vmul.f32 %v3826, %v852
        %v3830 = vmul.f32 %v3826, %v927
        %v3831 = vmul.f32 %v3826, %v929
        %v3832 = vmul.f32 %v3826, %v1004
        %v3833 = vmul.f32 %v3826, %v1006
        %v3834 = vmul.f32 %v3826, %v1081
        %v3835 = vmul.f32 %v3826, %v1083
        %v3836 = vmul.f32 %v3827, %v856
        %v3837 = vmul.f32 %v3827, %v858
        %v3838 = vmul.f32 %v3827, %v933
        %v3839 = vmul.f32 %v3827, %v935
        %v3840 = vmul.f32 %v3827, %v1010
        %v3841 = vmul.f32 %v3827, %v1012
        %v3842 = vmul.f32 %v3827, %v1087
        %v3843 = vmul.f32 %v3827, %v1089
        %3844 = vmatprep.subr.mxu0 0.0
        %3845 = vmatpush1.msra.mxu0 %v439
        %3846 = vmatprep.subr.mxu0 0.0
        %3847 = vmatpush1.msra.mxu0 %v440
        %3848 = vmatprep.subr.mxu0 0.0
        %3849 = vmatpush1.msra.mxu0 %v441
        %3850 = vmatprep.subr.mxu0 0.0
        %3851 = vmatpush1.msra.mxu0 %v442
        %3852 = vmatprep.subr.mxu0 0.0
        %3853 = vmatpush1.msra.mxu0 %v443
        %3854 = vmatprep.subr.mxu0 0.0
        %3855 = vmatpush1.msra.mxu0 %v444
        %3856 = vmatprep.subr.mxu0 0.0
        %3857 = vmatpush1.msra.mxu0 %v445
        %3858 = vmatprep.subr.mxu0 0.0
        %3859 = vmatpush1.msra.mxu0 %v446
        %3860 = vmatprep.subr.mxu0 0.0
        %3861 = vmatpush1.msra.mxu0 %v447
        %3862 = vmatprep.subr.mxu0 0.0
        %3863 = vmatpush1.msra.mxu0 %v448
        %3864 = vmatprep.subr.mxu0 0.0
        %3865 = vmatpush1.msra.mxu0 %v449
        %3866 = vmatprep.subr.mxu0 0.0
        %3867 = vmatpush1.msra.mxu0 %v450
        %3868 = vmatprep.subr.mxu0 0.0
        %3869 = vmatpush1.msra.mxu0 %v451
        %3870 = vmatprep.subr.mxu0 0.0
        %3871 = vmatpush1.msra.mxu0 %v452
        %3872 = vmatprep.subr.mxu0 0.0
        %3873 = vmatpush1.msra.mxu0 %v453
        %3874 = vmatprep.subr.mxu0 0.0
        %3875 = vmatpush1.msra.mxu0 %v454
        %3876 = vmatprep.subr.mxu0 0.0
        %3877 = vmatpush1.msra.mxu0 %v455
        %3878 = vmatprep.subr.mxu0 0.0
        %3879 = vmatpush1.msra.mxu0 %v456
        %3880 = vmatprep.subr.mxu0 0.0
        %3881 = vmatpush1.msra.mxu0 %v457
        %3882 = vmatprep.subr.mxu0 0.0
        %3883 = vmatpush1.msra.mxu0 %v458
        %3884 = vmatprep.subr.mxu0 0.0
        %3885 = vmatpush1.msra.mxu0 %v459
        %3886 = vmatprep.subr.mxu0 0.0
        %3887 = vmatpush1.msra.mxu0 %v460
        %3888 = vmatprep.subr.mxu0 0.0
        %3889 = vmatpush1.msra.mxu0 %v461
        %3890 = vmatprep.subr.mxu0 0.0
        %3891 = vmatpush1.msra.mxu0 %v462
        %3892 = vmatprep.subr.mxu0 0.0
        %3893 = vmatpush1.msra.mxu0 %v463
        %3894 = vmatprep.subr.mxu0 0.0
        %3895 = vmatpush1.msra.mxu0 %v464
        %3896 = vmatprep.subr.mxu0 0.0
        %3897 = vmatpush1.msra.mxu0 %v465
        %3898 = vmatprep.subr.mxu0 0.0
        %3899 = vmatpush1.msra.mxu0 %v466
        %3900 = vmatprep.subr.mxu0 0.0
        %3901 = vmatpush1.msra.mxu0 %v467
        %3902 = vmatprep.subr.mxu0 0.0
        %3903 = vmatpush1.msra.mxu0 %v468
        %3904 = vmatprep.subr.mxu0 0.0
        %3905 = vmatpush1.msra.mxu0 %v469
        %3906 = vmatprep.subr.mxu0 0.0
        %3907 = vmatpush1.msra.mxu0 %v470
        %3908 = vmatprep.mubr.f32.mxu0 %v3829
        %3909 = vmatmul.mubr.f32.gmra.mrb[0].mxu0 %v3828
        %v3910 = vpop.f32.mrb[0].mxu0
        %v3911 = vadd.f32 0.0, %v3910
        %v3912 = vpop.f32.mrb[0].mxu0
        %3913 = vmatprep.mubr.f32.mxu0 %v3837
        %3914 = vmatmul.mubr.f32.gmra.mrb[0].mxu0 %v3836
        %v3915 = vpop.f32.mrb[0].mxu0
        %v3916 = vadd.f32 0.0, %v3915
        %v3917 = vpop.f32.mrb[0].mxu0
        %3918 = vdwg.mxu0
        %3919 = vmatprep.subr.mxu0 0.0
        %3920 = vmatpush1.msra.mxu0 %v471
        %3921 = vmatprep.subr.mxu0 0.0
        %3922 = vmatpush1.msra.mxu0 %v472
        %3923 = vmatprep.subr.mxu0 0.0
        %3924 = vmatpush1.msra.mxu0 %v473
        %3925 = vmatprep.subr.mxu0 0.0
        %3926 = vmatpush1.msra.mxu0 %v474
        %3927 = vmatprep.subr.mxu0 0.0
        %3928 = vmatpush1.msra.mxu0 %v475
        %3929 = vmatprep.subr.mxu0 0.0
        %3930 = vmatpush1.msra.mxu0 %v476
        %3931 = vmatprep.subr.mxu0 0.0
        %3932 = vmatpush1.msra.mxu0 %v477
        %3933 = vmatprep.subr.mxu0 0.0
        %3934 = vmatpush1.msra.mxu0 %v478
        %3935 = vmatprep.subr.mxu0 0.0
        %3936 = vmatpush1.msra.mxu0 %v479
        %3937 = vmatprep.subr.mxu0 0.0
        %3938 = vmatpush1.msra.mxu0 %v480
        %3939 = vmatprep.subr.mxu0 0.0
        %3940 = vmatpush1.msra.mxu0 %v481
        %3941 = vmatprep.subr.mxu0 0.0
        %3942 = vmatpush1.msra.mxu0 %v482
        %3943 = vmatprep.subr.mxu0 0.0
        %3944 = vmatpush1.msra.mxu0 %v483
        %3945 = vmatprep.subr.mxu0 0.0
        %3946 = vmatpush1.msra.mxu0 %v484
        %3947 = vmatprep.subr.mxu0 0.0
        %3948 = vmatpush1.msra.mxu0 %v485
        %3949 = vmatprep.subr.mxu0 0.0
        %3950 = vmatpush1.msra.mxu0 %v486
        %3951 = vmatprep.subr.mxu0 0.0
        %3952 = vmatpush1.msra.mxu0 %v487
        %3953 = vmatprep.subr.mxu0 0.0
        %3954 = vmatpush1.msra.mxu0 %v488
        %3955 = vmatprep.subr.mxu0 0.0
        %3956 = vmatpush1.msra.mxu0 %v489
        %3957 = vmatprep.subr.mxu0 0.0
        %3958 = vmatpush1.msra.mxu0 %v490
        %3959 = vmatprep.subr.mxu0 0.0
        %3960 = vmatpush1.msra.mxu0 %v491
        %3961 = vmatprep.subr.mxu0 0.0
        %3962 = vmatpush1.msra.mxu0 %v492
        %3963 = vmatprep.subr.mxu0 0.0
        %3964 = vmatpush1.msra.mxu0 %v493
        %3965 = vmatprep.subr.mxu0 0.0
        %3966 = vmatpush1.msra.mxu0 %v494
        %3967 = vmatprep.subr.mxu0 0.0
        %3968 = vmatpush1.msra.mxu0 %v495
        %3969 = vmatprep.subr.mxu0 0.0
        %3970 = vmatpush1.msra.mxu0 %v496
        %3971 = vmatprep.subr.mxu0 0.0
        %3972 = vmatpush1.msra.mxu0 %v497
        %3973 = vmatprep.subr.mxu0 0.0
        %3974 = vmatpush1.msra.mxu0 %v498
        %3975 = vmatprep.subr.mxu0 0.0
        %3976 = vmatpush1.msra.mxu0 %v499
        %3977 = vmatprep.subr.mxu0 0.0
        %3978 = vmatpush1.msra.mxu0 %v500
        %3979 = vmatprep.subr.mxu0 0.0
        %3980 = vmatpush1.msra.mxu0 %v501
        %3981 = vmatprep.subr.mxu0 0.0
        %3982 = vmatpush1.msra.mxu0 %v502
        %3983 = vmatprep.mubr.f32.mxu0 %v3831
        %3984 = vmatmul.mubr.f32.gmra.mrb[0].mxu0 %v3830
        %v3985 = vpop.f32.mrb[0].mxu0
        %v3986 = vadd.f32 %v3911, %v3985
        %v3987 = vpop.f32.mrb[0].mxu0
        %3988 = vmatprep.mubr.f32.mxu0 %v3839
        %3989 = vmatmul.mubr.f32.gmra.mrb[0].mxu0 %v3838
        %v3990 = vpop.f32.mrb[0].mxu0
        %v3991 = vadd.f32 %v3916, %v3990
        %v3992 = vpop.f32.mrb[0].mxu0
        %3993 = vdwg.mxu0
        %3994 = vmatprep.subr.mxu0 0.0
        %3995 = vmatpush1.msra.mxu0 %v503
        %3996 = vmatprep.subr.mxu0 0.0
        %3997 = vmatpush1.msra.mxu0 %v504
        %3998 = vmatprep.subr.mxu0 0.0
        %3999 = vmatpush1.msra.mxu0 %v505
        %4000 = vmatprep.subr.mxu0 0.0
        %4001 = vmatpush1.msra.mxu0 %v506
        %4002 = vmatprep.subr.mxu0 0.0
        %4003 = vmatpush1.msra.mxu0 %v507
        %4004 = vmatprep.subr.mxu0 0.0
        %4005 = vmatpush1.msra.mxu0 %v508
        %4006 = vmatprep.subr.mxu0 0.0
        %4007 = vmatpush1.msra.mxu0 %v509
        %4008 = vmatprep.subr.mxu0 0.0
        %4009 = vmatpush1.msra.mxu0 %v510
        %4010 = vmatprep.subr.mxu0 0.0
        %4011 = vmatpush1.msra.mxu0 %v511
        %4012 = vmatprep.subr.mxu0 0.0
        %4013 = vmatpush1.msra.mxu0 %v512
        %4014 = vmatprep.subr.mxu0 0.0
        %4015 = vmatpush1.msra.mxu0 %v513
        %4016 = vmatprep.subr.mxu0 0.0
        %4017 = vmatpush1.msra.mxu0 %v514
        %4018 = vmatprep.subr.mxu0 0.0
        %4019 = vmatpush1.msra.mxu0 %v515
        %4020 = vmatprep.subr.mxu0 0.0
        %4021 = vmatpush1.msra.mxu0 %v516
        %4022 = vmatprep.subr.mxu0 0.0
        %4023 = vmatpush1.msra.mxu0 %v517
        %4024 = vmatprep.subr.mxu0 0.0
        %4025 = vmatpush1.msra.mxu0 %v518
        %4026 = vmatprep.subr.mxu0 0.0
        %4027 = vmatpush1.msra.mxu0 %v519
        %4028 = vmatprep.subr.mxu0 0.0
        %4029 = vmatpush1.msra.mxu0 %v520
        %4030 = vmatprep.subr.mxu0 0.0
        %4031 = vmatpush1.msra.mxu0 %v521
        %4032 = vmatprep.subr.mxu0 0.0
        %4033 = vmatpush1.msra.mxu0 %v522
        %4034 = vmatprep.subr.mxu0 0.0
        %4035 = vmatpush1.msra.mxu0 %v523
        %4036 = vmatprep.subr.mxu0 0.0
        %4037 = vmatpush1.msra.mxu0 %v524
        %4038 = vmatprep.subr.mxu0 0.0
        %4039 = vmatpush1.msra.mxu0 %v525
        %4040 = vmatprep.subr.mxu0 0.0
        %4041 = vmatpush1.msra.mxu0 %v526
        %4042 = vmatprep.subr.mxu0 0.0
        %4043 = vmatpush1.msra.mxu0 %v527
        %4044 = vmatprep.subr.mxu0 0.0
        %4045 = vmatpush1.msra.mxu0 %v528
        %4046 = vmatprep.subr.mxu0 0.0
        %4047 = vmatpush1.msra.mxu0 %v529
        %4048 = vmatprep.subr.mxu0 0.0
        %4049 = vmatpush1.msra.mxu0 %v530
        %4050 = vmatprep.subr.mxu0 0.0
        %4051 = vmatpush1.msra.mxu0 %v531
        %4052 = vmatprep.subr.mxu0 0.0
        %4053 = vmatpush1.msra.mxu0 %v532
        %4054 = vmatprep.subr.mxu0 0.0
        %4055 = vmatpush1.msra.mxu0 %v533
        %4056 = vmatprep.subr.mxu0 0.0
        %4057 = vmatpush1.msra.mxu0 %v534
        %4058 = vmatprep.mubr.f32.mxu0 %v3833
        %4059 = vmatmul.mubr.f32.gmra.mrb[0].mxu0 %v3832
        %v4060 = vpop.f32.mrb[0].mxu0
        %v4061 = vadd.f32 %v3986, %v4060
        %v4062 = vpop.f32.mrb[0].mxu0
        %4063 = vmatprep.mubr.f32.mxu0 %v3841
        %4064 = vmatmul.mubr.f32.gmra.mrb[0].mxu0 %v3840
        %v4065 = vpop.f32.mrb[0].mxu0
        %v4066 = vadd.f32 %v3991, %v4065
        %v4067 = vpop.f32.mrb[0].mxu0
        %4068 = vdwg.mxu0
        %4069 = vmatprep.subr.mxu0 0.0
        %4070 = vmatpush1.msra.mxu0 %v535
        %4071 = vmatprep.subr.mxu0 0.0
        %4072 = vmatpush1.msra.mxu0 %v536
        %4073 = vmatprep.subr.mxu0 0.0
        %4074 = vmatpush1.msra.mxu0 %v537
        %4075 = vmatprep.subr.mxu0 0.0
        %4076 = vmatpush1.msra.mxu0 %v538
        %4077 = vmatprep.subr.mxu0 0.0
        %4078 = vmatpush1.msra.mxu0 %v539
        %4079 = vmatprep.subr.mxu0 0.0
        %4080 = vmatpush1.msra.mxu0 %v540
        %4081 = vmatprep.subr.mxu0 0.0
        %4082 = vmatpush1.msra.mxu0 %v541
        %4083 = vmatprep.subr.mxu0 0.0
        %4084 = vmatpush1.msra.mxu0 %v542
        %4085 = vmatprep.subr.mxu0 0.0
        %4086 = vmatpush1.msra.mxu0 %v543
        %4087 = vmatprep.subr.mxu0 0.0
        %4088 = vmatpush1.msra.mxu0 %v544
        %4089 = vmatprep.subr.mxu0 0.0
        %4090 = vmatpush1.msra.mxu0 %v545
        %4091 = vmatprep.subr.mxu0 0.0
        %4092 = vmatpush1.msra.mxu0 %v546
        %4093 = vmatprep.subr.mxu0 0.0
        %4094 = vmatpush1.msra.mxu0 %v547
        %4095 = vmatprep.subr.mxu0 0.0
        %4096 = vmatpush1.msra.mxu0 %v548
        %4097 = vmatprep.subr.mxu0 0.0
        %4098 = vmatpush1.msra.mxu0 %v549
        %4099 = vmatprep.subr.mxu0 0.0
        %4100 = vmatpush1.msra.mxu0 %v550
        %4101 = vmatprep.subr.mxu0 0.0
        %4102 = vmatpush1.msra.mxu0 %v551
        %4103 = vmatprep.subr.mxu0 0.0
        %4104 = vmatpush1.msra.mxu0 %v552
        %4105 = vmatprep.subr.mxu0 0.0
        %4106 = vmatpush1.msra.mxu0 %v553
        %4107 = vmatprep.subr.mxu0 0.0
        %4108 = vmatpush1.msra.mxu0 %v554
        %4109 = vmatprep.subr.mxu0 0.0
        %4110 = vmatpush1.msra.mxu0 %v555
        %4111 = vmatprep.subr.mxu0 0.0
        %4112 = vmatpush1.msra.mxu0 %v556
        %4113 = vmatprep.subr.mxu0 0.0
        %4114 = vmatpush1.msra.mxu0 %v557
        %4115 = vmatprep.subr.mxu0 0.0
        %4116 = vmatpush1.msra.mxu0 %v558
        %4117 = vmatprep.subr.mxu0 0.0
        %4118 = vmatpush1.msra.mxu0 %v559
        %4119 = vmatprep.subr.mxu0 0.0
        %4120 = vmatpush1.msra.mxu0 %v560
        %4121 = vmatprep.subr.mxu0 0.0
        %4122 = vmatpush1.msra.mxu0 %v561
        %4123 = vmatprep.subr.mxu0 0.0
        %4124 = vmatpush1.msra.mxu0 %v562
        %4125 = vmatprep.subr.mxu0 0.0
        %4126 = vmatpush1.msra.mxu0 %v563
        %4127 = vmatprep.subr.mxu0 0.0
        %4128 = vmatpush1.msra.mxu0 %v564
        %4129 = vmatprep.subr.mxu0 0.0
        %4130 = vmatpush1.msra.mxu0 %v565
        %4131 = vmatprep.subr.mxu0 0.0
        %4132 = vmatpush1.msra.mxu0 %v566
        %4133 = vmatprep.mubr.f32.mxu0 %v3835
        %4134 = vmatmul.mubr.f32.gmra.mrb[0].mxu0 %v3834
        %v4135 = vpop.f32.mrb[0].mxu0
        %v4136 = vadd.f32 %v4061, %v4135
        %v4137 = vpop.f32.mrb[0].mxu0
        %4138 = vmatprep.mubr.f32.mxu0 %v3843
        %4139 = vmatmul.mubr.f32.gmra.mrb[0].mxu0 %v3842
        %v4140 = vpop.f32.mrb[0].mxu0
        %v4141 = vadd.f32 %v4066, %v4140
        %v4142 = vpop.f32.mrb[0].mxu0
        %4143 = vdwg.mxu0
        %4144 = vmatprep.subr.mxu0 0.0
        %4145 = vmatpush1.msra.mxu0 %v4136
        %4146 = vmatprep.subr.mxu0 0.0
        %4147 = vmatpush1.msra.mxu0 %v4141
        %4148 = vmatprep.subr.mxu0 0.0
        %4149 = vmatpush1.msra.mxu0 0.0
        %4150 = vmatprep.subr.mxu0 0.0
        %4151 = vmatpush1.msra.mxu0 0.0
        %4152 = vmatprep.subr.mxu0 0.0
        %4153 = vmatpush1.msra.mxu0 0.0
        %4154 = vmatprep.subr.mxu0 0.0
        %4155 = vmatpush1.msra.mxu0 0.0
        %4156 = vmatprep.subr.mxu0 0.0
        %4157 = vmatpush1.msra.mxu0 0.0
        %4158 = vmatprep.subr.mxu0 0.0
        %4159 = vmatpush1.msra.mxu0 0.0
        %4160 = vmatprep.subr.mxu0 0.0
        %4161 = vmatpush1.msra.mxu0 0.0
        %4162 = vmatprep.subr.mxu0 0.0
        %4163 = vmatpush1.msra.mxu0 0.0
        %4164 = vmatprep.subr.mxu0 0.0
        %4165 = vmatpush1.msra.mxu0 0.0
        %4166 = vmatprep.subr.mxu0 0.0
        %4167 = vmatpush1.msra.mxu0 0.0
        %4168 = vmatprep.subr.mxu0 0.0
        %4169 = vmatpush1.msra.mxu0 0.0
        %4170 = vmatprep.subr.mxu0 0.0
        %4171 = vmatpush1.msra.mxu0 0.0
        %4172 = vmatprep.subr.mxu0 0.0
        %4173 = vmatpush1.msra.mxu0 0.0
        %4174 = vmatprep.subr.mxu0 0.0
        %4175 = vmatpush1.msra.mxu0 0.0
        %4176 = vmatprep.subr.mxu0 0.0
        %4177 = vmatpush1.msra.mxu0 0.0
        %4178 = vmatprep.subr.mxu0 0.0
        %4179 = vmatpush1.msra.mxu0 0.0
        %4180 = vmatprep.subr.mxu0 0.0
        %4181 = vmatpush1.msra.mxu0 0.0
        %4182 = vmatprep.subr.mxu0 0.0
        %4183 = vmatpush1.msra.mxu0 0.0
        %4184 = vmatprep.subr.mxu0 0.0
        %4185 = vmatpush1.msra.mxu0 0.0
        %4186 = vmatprep.subr.mxu0 0.0
        %4187 = vmatpush1.msra.mxu0 0.0
        %4188 = vmatprep.subr.mxu0 0.0
        %4189 = vmatpush1.msra.mxu0 0.0
        %4190 = vmatprep.subr.mxu0 0.0
        %4191 = vmatpush1.msra.mxu0 0.0
        %4192 = vmatprep.subr.mxu0 0.0
        %4193 = vmatpush1.msra.mxu0 0.0
        %4194 = vmatprep.subr.mxu0 0.0
        %4195 = vmatpush1.msra.mxu0 0.0
        %4196 = vmatprep.subr.mxu0 0.0
        %4197 = vmatpush1.msra.mxu0 0.0
        %4198 = vmatprep.subr.mxu0 0.0
        %4199 = vmatpush1.msra.mxu0 0.0
        %4200 = vmatprep.subr.mxu0 0.0
        %4201 = vmatpush1.msra.mxu0 0.0
        %4202 = vmatprep.subr.mxu0 0.0
        %4203 = vmatpush1.msra.mxu0 0.0
        %4204 = vmatprep.subr.mxu0 0.0
        %4205 = vmatpush1.msra.mxu0 0.0
        %4206 = vmatprep.subr.mxu0 0.0
        %4207 = vmatpush1.msra.mxu0 0.0
        %4208 = vmatprep.mubr.f32.mxu0 0.0
        %4209 = vmatmul.mubr.f32.gmra.mrb[0].mxu0 %v1598
        %v4210 = vpop.f32.mrb[0].mxu0
        %v4211 = vadd.f32 %v3651, %v4210
        %v4212 = vpop.f32.mrb[0].mxu0
        %4213 = vdwg.mxu0
        %v4214 = vadd.f32 %v4211, %v1673
        %v4215 = vmax.f32 %v4214, 0.0
        %v4217 = vsel %vm571, %v4215, 0
        %4219 = vmatprep.subr.mxu0 0.0
        %4220 = vmatpush1.msra.mxu0 %v390
        %4221 = vmatprep.subr.mxu0 0.0
        %4222 = vmatpush1.msra.mxu0 %v391
        %4223 = vmatprep.subr.mxu0 0.0
        %4224 = vmatpush1.msra.mxu0 %v392
        %4225 = vmatprep.subr.mxu0 0.0
        %4226 = vmatpush1.msra.mxu0 %v393
        %4227 = vmatprep.subr.mxu0 0.0
        %4228 = vmatpush1.msra.mxu0 0.0
        %4229 = vmatprep.subr.mxu0 0.0
        %4230 = vmatpush1.msra.mxu0 0.0
        %4231 = vmatprep.subr.mxu0 0.0
        %4232 = vmatpush1.msra.mxu0 0.0
        %4233 = vmatprep.subr.mxu0 0.0
        %4234 = vmatpush1.msra.mxu0 0.0
        %4235 = vmatprep.subr.mxu0 0.0
        %4236 = vmatpush1.msra.mxu0 0.0
        %4237 = vmatprep.subr.mxu0 0.0
        %4238 = vmatpush1.msra.mxu0 0.0
        %4239 = vmatprep.subr.mxu0 0.0
        %4240 = vmatpush1.msra.mxu0 0.0
        %4241 = vmatprep.subr.mxu0 0.0
        %4242 = vmatpush1.msra.mxu0 0.0
        %4243 = vmatprep.subr.mxu0 0.0
        %4244 = vmatpush1.msra.mxu0 0.0
        %4245 = vmatprep.subr.mxu0 0.0
        %4246 = vmatpush1.msra.mxu0 0.0
        %4247 = vmatprep.subr.mxu0 0.0
        %4248 = vmatpush1.msra.mxu0 0.0
        %4249 = vmatprep.subr.mxu0 0.0
        %4250 = vmatpush1.msra.mxu0 0.0
        %4251 = vmatprep.subr.mxu0 0.0
        %4252 = vmatpush1.msra.mxu0 0.0
        %4253 = vmatprep.subr.mxu0 0.0
        %4254 = vmatpush1.msra.mxu0 0.0
        %4255 = vmatprep.subr.mxu0 0.0
        %4256 = vmatpush1.msra.mxu0 0.0
        %4257 = vmatprep.subr.mxu0 0.0
        %4258 = vmatpush1.msra.mxu0 0.0
        %4259 = vmatprep.subr.mxu0 0.0
        %4260 = vmatpush1.msra.mxu0 0.0
        %4261 = vmatprep.subr.mxu0 0.0
        %4262 = vmatpush1.msra.mxu0 0.0
        %4263 = vmatprep.subr.mxu0 0.0
        %4264 = vmatpush1.msra.mxu0 0.0
        %4265 = vmatprep.subr.mxu0 0.0
        %4266 = vmatpush1.msra.mxu0 0.0
        %4267 = vmatprep.subr.mxu0 0.0
        %4268 = vmatpush1.msra.mxu0 0.0
        %4269 = vmatprep.subr.mxu0 0.0
        %4270 = vmatpush1.msra.mxu0 0.0
        %4271 = vmatprep.subr.mxu0 0.0
        %4272 = vmatpush1.msra.mxu0 0.0
        %4273 = vmatprep.subr.mxu0 0.0
        %4274 = vmatpush1.msra.mxu0 0.0
        %4275 = vmatprep.subr.mxu0 0.0
        %4276 = vmatpush1.msra.mxu0 0.0
        %4277 = vmatprep.subr.mxu0 0.0
        %4278 = vmatpush1.msra.mxu0 0.0
        %4279 = vmatprep.subr.mxu0 0.0
        %4280 = vmatpush1.msra.mxu0 0.0
        %4281 = vmatprep.subr.mxu0 0.0
        %4282 = vmatpush1.msra.mxu0 0.0
        %4283 = vmatprep.mubr.f32.mxu0 0.0
        %4284 = vmatmul.mubr.f32.gmra.mrb[0].mxu0 %v4217
        %v4285 = vpop.f32.mrb[0].mxu0
        %v4286 = vadd.f32 %v3724, %v4285
        %v4287 = vpop.f32.mrb[0].mxu0
        %4288 = vdwg.mxu0
        %v4290 = vsel %vm571, %v4286, 0
        %4292 = vmatprep.subr.mxu0 0.0
        %4293 = vmatpush1.msra.mxu0 %v394
        %4294 = vmatprep.subr.mxu0 0.0
        %4295 = vmatpush1.msra.mxu0 %v395
        %4296 = vmatprep.subr.mxu0 0.0
        %4297 = vmatpush1.msra.mxu0 %v396
        %4298 = vmatprep.subr.mxu0 0.0
        %4299 = vmatpush1.msra.mxu0 %v397
        %4300 = vmatprep.subr.mxu0 0.0
        %4301 = vmatpush1.msra.mxu0 0.0
        %4302 = vmatprep.subr.mxu0 0.0
        %4303 = vmatpush1.msra.mxu0 0.0
        %4304 = vmatprep.subr.mxu0 0.0
        %4305 = vmatpush1.msra.mxu0 0.0
        %4306 = vmatprep.subr.mxu0 0.0
        %4307 = vmatpush1.msra.mxu0 0.0
        %4308 = vmatprep.subr.mxu0 0.0
        %4309 = vmatpush1.msra.mxu0 0.0
        %4310 = vmatprep.subr.mxu0 0.0
        %4311 = vmatpush1.msra.mxu0 0.0
        %4312 = vmatprep.subr.mxu0 0.0
        %4313 = vmatpush1.msra.mxu0 0.0
        %4314 = vmatprep.subr.mxu0 0.0
        %4315 = vmatpush1.msra.mxu0 0.0
        %4316 = vmatprep.subr.mxu0 0.0
        %4317 = vmatpush1.msra.mxu0 0.0
        %4318 = vmatprep.subr.mxu0 0.0
        %4319 = vmatpush1.msra.mxu0 0.0
        %4320 = vmatprep.subr.mxu0 0.0
        %4321 = vmatpush1.msra.mxu0 0.0
        %4322 = vmatprep.subr.mxu0 0.0
        %4323 = vmatpush1.msra.mxu0 0.0
        %4324 = vmatprep.subr.mxu0 0.0
        %4325 = vmatpush1.msra.mxu0 0.0
        %4326 = vmatprep.subr.mxu0 0.0
        %4327 = vmatpush1.msra.mxu0 0.0
        %4328 = vmatprep.subr.mxu0 0.0
        %4329 = vmatpush1.msra.mxu0 0.0
        %4330 = vmatprep.subr.mxu0 0.0
        %4331 = vmatpush1.msra.mxu0 0.0
        %4332 = vmatprep.subr.mxu0 0.0
        %4333 = vmatpush1.msra.mxu0 0.0
        %4334 = vmatprep.subr.mxu0 0.0
        %4335 = vmatpush1.msra.mxu0 0.0
        %4336 = vmatprep.subr.mxu0 0.0
        %4337 = vmatpush1.msra.mxu0 0.0
        %4338 = vmatprep.subr.mxu0 0.0
        %4339 = vmatpush1.msra.mxu0 0.0
        %4340 = vmatprep.subr.mxu0 0.0
        %4341 = vmatpush1.msra.mxu0 0.0
        %4342 = vmatprep.subr.mxu0 0.0
        %4343 = vmatpush1.msra.mxu0 0.0
        %4344 = vmatprep.subr.mxu0 0.0
        %4345 = vmatpush1.msra.mxu0 0.0
        %4346 = vmatprep.subr.mxu0 0.0
        %4347 = vmatpush1.msra.mxu0 0.0
        %4348 = vmatprep.subr.mxu0 0.0
        %4349 = vmatpush1.msra.mxu0 0.0
        %4350 = vmatprep.subr.mxu0 0.0
        %4351 = vmatpush1.msra.mxu0 0.0
        %4352 = vmatprep.subr.mxu0 0.0
        %4353 = vmatpush1.msra.mxu0 0.0
        %4354 = vmatprep.subr.mxu0 0.0
        %4355 = vmatpush1.msra.mxu0 0.0
        %4356 = vmatprep.mubr.f32.mxu0 0.0
        %4357 = vmatmul.mubr.f32.gmra.mrb[0].mxu0 %v4290
        %v4358 = vpop.f32.mrb[0].mxu0
        %v4359 = vadd.f32 %v1097, %v4358
        %v4360 = vpop.f32.mrb[0].mxu0
        %4361 = vdwg.mxu0
        %4362 = vmatprep.subr.mxu0 0.0
        %4363 = vmatpush1.msra.mxu0 %v4286
        %4364 = vmatprep.subr.mxu0 0.0
        %4365 = vmatpush1.msra.mxu0 0.0
        %4366 = vmatprep.subr.mxu0 0.0
        %4367 = vmatpush1.msra.mxu0 0.0
        %4368 = vmatprep.subr.mxu0 0.0
        %4369 = vmatpush1.msra.mxu0 0.0
        %4370 = vmatprep.subr.mxu0 0.0
        %4371 = vmatpush1.msra.mxu0 0.0
        %4372 = vmatprep.subr.mxu0 0.0
        %4373 = vmatpush1.msra.mxu0 0.0
        %4374 = vmatprep.subr.mxu0 0.0
        %4375 = vmatpush1.msra.mxu0 0.0
        %4376 = vmatprep.subr.mxu0 0.0
        %4377 = vmatpush1.msra.mxu0 0.0
        %4378 = vmatprep.subr.mxu0 0.0
        %4379 = vmatpush1.msra.mxu0 0.0
        %4380 = vmatprep.subr.mxu0 0.0
        %4381 = vmatpush1.msra.mxu0 0.0
        %4382 = vmatprep.subr.mxu0 0.0
        %4383 = vmatpush1.msra.mxu0 0.0
        %4384 = vmatprep.subr.mxu0 0.0
        %4385 = vmatpush1.msra.mxu0 0.0
        %4386 = vmatprep.subr.mxu0 0.0
        %4387 = vmatpush1.msra.mxu0 0.0
        %4388 = vmatprep.subr.mxu0 0.0
        %4389 = vmatpush1.msra.mxu0 0.0
        %4390 = vmatprep.subr.mxu0 0.0
        %4391 = vmatpush1.msra.mxu0 0.0
        %4392 = vmatprep.subr.mxu0 0.0
        %4393 = vmatpush1.msra.mxu0 0.0
        %4394 = vmatprep.subr.mxu0 0.0
        %4395 = vmatpush1.msra.mxu0 0.0
        %4396 = vmatprep.subr.mxu0 0.0
        %4397 = vmatpush1.msra.mxu0 0.0
        %4398 = vmatprep.subr.mxu0 0.0
        %4399 = vmatpush1.msra.mxu0 0.0
        %4400 = vmatprep.subr.mxu0 0.0
        %4401 = vmatpush1.msra.mxu0 0.0
        %4402 = vmatprep.subr.mxu0 0.0
        %4403 = vmatpush1.msra.mxu0 0.0
        %4404 = vmatprep.subr.mxu0 0.0
        %4405 = vmatpush1.msra.mxu0 0.0
        %4406 = vmatprep.subr.mxu0 0.0
        %4407 = vmatpush1.msra.mxu0 0.0
        %4408 = vmatprep.subr.mxu0 0.0
        %4409 = vmatpush1.msra.mxu0 0.0
        %4410 = vmatprep.subr.mxu0 0.0
        %4411 = vmatpush1.msra.mxu0 0.0
        %4412 = vmatprep.subr.mxu0 0.0
        %4413 = vmatpush1.msra.mxu0 0.0
        %4414 = vmatprep.subr.mxu0 0.0
        %4415 = vmatpush1.msra.mxu0 0.0
        %4416 = vmatprep.subr.mxu0 0.0
        %4417 = vmatpush1.msra.mxu0 0.0
        %4418 = vmatprep.subr.mxu0 0.0
        %4419 = vmatpush1.msra.mxu0 0.0
        %4420 = vmatprep.subr.mxu0 0.0
        %4421 = vmatpush1.msra.mxu0 0.0
        %4422 = vmatprep.subr.mxu0 0.0
        %4423 = vmatpush1.msra.mxu0 0.0
        %4424 = vmatprep.subr.mxu0 0.0
        %4425 = vmatpush1.msra.mxu0 0.0
        %4426 = vmatprep.mubr.f32.mxu0 0.0
        %4427 = vmatmul.mubr.f32.gmra.mrb[0].mxu0 %v1172
        %v4428 = vpop.f32.mrb[0].mxu0
        %v4429 = vadd.f32 0.0, %v4428
        %v4430 = vpop.f32.mrb[0].mxu0
        %4431 = vmatprep.mubr.f32.mxu0 0.0
        %4432 = vmatmul.mubr.f32.gmra.mrb[0].mxu0 %v1175
        %v4433 = vpop.f32.mrb[0].mxu0
        %v4434 = vadd.f32 0.0, %v4433
        %v4435 = vpop.f32.mrb[0].mxu0
        %4436 = vdwg.mxu0
        %4439 = vrot.lane.b32.xlu0 %v4429, 32
        %v4440 = vpop.permute.xlu0 %4439
        %4441 = vrot.lane.b32.xlu0 %v4434, 32
        %v4442 = vpop.permute.xlu0 %4441
        %4445 = vrot.lane.b32.xlu0 %v4429, 64
        %v4446 = vpop.permute.xlu0 %4445
        %4447 = vrot.lane.b32.xlu0 %v4434, 64
        %v4448 = vpop.permute.xlu0 %4447
        %4451 = vrot.lane.b32.xlu0 %v4429, 96
        %v4452 = vpop.permute.xlu0 %4451
        %4453 = vrot.lane.b32.xlu0 %v4434, 96
        %v4454 = vpop.permute.xlu0 %4453
        %v4457 = vsel %vm571, %v4429, %v4440
        %v4458 = vsel %vm571, %v4434, %v4442
        %v4459 = vsel %vm1274, %v4457, %v4446
        %v4460 = vsel %vm1274, %v4458, %v4448
        %v4461 = vsel %vm1277, %v4459, %v4452
        %v4462 = vsel %vm1277, %v4460, %v4454
        %v4463 = vmul.f32 %v4461, %v850
        %v4464 = vmul.f32 %v4461, %v852
        %v4465 = vmul.f32 %v4461, %v927
        %v4466 = vmul.f32 %v4461, %v929
        %v4467 = vmul.f32 %v4461, %v1004
        %v4468 = vmul.f32 %v4461, %v1006
        %v4469 = vmul.f32 %v4461, %v1081
        %v4470 = vmul.f32 %v4461, %v1083
        %v4471 = vmul.f32 %v4462, %v856
        %v4472 = vmul.f32 %v4462, %v858
        %v4473 = vmul.f32 %v4462, %v933
        %v4474 = vmul.f32 %v4462, %v935
        %v4475 = vmul.f32 %v4462, %v1010
        %v4476 = vmul.f32 %v4462, %v1012
        %v4477 = vmul.f32 %v4462, %v1087
        %v4478 = vmul.f32 %v4462, %v1089
        %4479 = vmatprep.subr.mxu0 0.0
        %4480 = vmatpush1.msra.mxu0 %v439
        %4481 = vmatprep.subr.mxu0 0.0
        %4482 = vmatpush1.msra.mxu0 %v440
        %4483 = vmatprep.subr.mxu0 0.0
        %4484 = vmatpush1.msra.mxu0 %v441
        %4485 = vmatprep.subr.mxu0 0.0
        %4486 = vmatpush1.msra.mxu0 %v442
        %4487 = vmatprep.subr.mxu0 0.0
        %4488 = vmatpush1.msra.mxu0 %v443
        %4489 = vmatprep.subr.mxu0 0.0
        %4490 = vmatpush1.msra.mxu0 %v444
        %4491 = vmatprep.subr.mxu0 0.0
        %4492 = vmatpush1.msra.mxu0 %v445
        %4493 = vmatprep.subr.mxu0 0.0
        %4494 = vmatpush1.msra.mxu0 %v446
        %4495 = vmatprep.subr.mxu0 0.0
        %4496 = vmatpush1.msra.mxu0 %v447
        %4497 = vmatprep.subr.mxu0 0.0
        %4498 = vmatpush1.msra.mxu0 %v448
        %4499 = vmatprep.subr.mxu0 0.0
        %4500 = vmatpush1.msra.mxu0 %v449
        %4501 = vmatprep.subr.mxu0 0.0
        %4502 = vmatpush1.msra.mxu0 %v450
        %4503 = vmatprep.subr.mxu0 0.0
        %4504 = vmatpush1.msra.mxu0 %v451
        %4505 = vmatprep.subr.mxu0 0.0
        %4506 = vmatpush1.msra.mxu0 %v452
        %4507 = vmatprep.subr.mxu0 0.0
        %4508 = vmatpush1.msra.mxu0 %v453
        %4509 = vmatprep.subr.mxu0 0.0
        %4510 = vmatpush1.msra.mxu0 %v454
        %4511 = vmatprep.subr.mxu0 0.0
        %4512 = vmatpush1.msra.mxu0 %v455
        %4513 = vmatprep.subr.mxu0 0.0
        %4514 = vmatpush1.msra.mxu0 %v456
        %4515 = vmatprep.subr.mxu0 0.0
        %4516 = vmatpush1.msra.mxu0 %v457
        %4517 = vmatprep.subr.mxu0 0.0
        %4518 = vmatpush1.msra.mxu0 %v458
        %4519 = vmatprep.subr.mxu0 0.0
        %4520 = vmatpush1.msra.mxu0 %v459
        %4521 = vmatprep.subr.mxu0 0.0
        %4522 = vmatpush1.msra.mxu0 %v460
        %4523 = vmatprep.subr.mxu0 0.0
        %4524 = vmatpush1.msra.mxu0 %v461
        %4525 = vmatprep.subr.mxu0 0.0
        %4526 = vmatpush1.msra.mxu0 %v462
        %4527 = vmatprep.subr.mxu0 0.0
        %4528 = vmatpush1.msra.mxu0 %v463
        %4529 = vmatprep.subr.mxu0 0.0
        %4530 = vmatpush1.msra.mxu0 %v464
        %4531 = vmatprep.subr.mxu0 0.0
        %4532 = vmatpush1.msra.mxu0 %v465
        %4533 = vmatprep.subr.mxu0 0.0
        %4534 = vmatpush1.msra.mxu0 %v466
        %4535 = vmatprep.subr.mxu0 0.0
        %4536 = vmatpush1.msra.mxu0 %v467
        %4537 = vmatprep.subr.mxu0 0.0
        %4538 = vmatpush1.msra.mxu0 %v468
        %4539 = vmatprep.subr.mxu0 0.0
        %4540 = vmatpush1.msra.mxu0 %v469
        %4541 = vmatprep.subr.mxu0 0.0
        %4542 = vmatpush1.msra.mxu0 %v470
        %4543 = vmatprep.mubr.f32.mxu0 %v4464
        %4544 = vmatmul.mubr.f32.gmra.mrb[0].mxu0 %v4463
        %v4545 = vpop.f32.mrb[0].mxu0
        %v4546 = vadd.f32 0.0, %v4545
        %v4547 = vpop.f32.mrb[0].mxu0
        %4548 = vmatprep.mubr.f32.mxu0 %v4472
        %4549 = vmatmul.mubr.f32.gmra.mrb[0].mxu0 %v4471
        %v4550 = vpop.f32.mrb[0].mxu0
        %v4551 = vadd.f32 0.0, %v4550
        %v4552 = vpop.f32.mrb[0].mxu0
        %4553 = vdwg.mxu0
        %4554 = vmatprep.subr.mxu0 0.0
        %4555 = vmatpush1.msra.mxu0 %v471
        %4556 = vmatprep.subr.mxu0 0.0
        %4557 = vmatpush1.msra.mxu0 %v472
        %4558 = vmatprep.subr.mxu0 0.0
        %4559 = vmatpush1.msra.mxu0 %v473
        %4560 = vmatprep.subr.mxu0 0.0
        %4561 = vmatpush1.msra.mxu0 %v474
        %4562 = vmatprep.subr.mxu0 0.0
        %4563 = vmatpush1.msra.mxu0 %v475
        %4564 = vmatprep.subr.mxu0 0.0
        %4565 = vmatpush1.msra.mxu0 %v476
        %4566 = vmatprep.subr.mxu0 0.0
        %4567 = vmatpush1.msra.mxu0 %v477
        %4568 = vmatprep.subr.mxu0 0.0
        %4569 = vmatpush1.msra.mxu0 %v478
        %4570 = vmatprep.subr.mxu0 0.0
        %4571 = vmatpush1.msra.mxu0 %v479
        %4572 = vmatprep.subr.mxu0 0.0
        %4573 = vmatpush1.msra.mxu0 %v480
        %4574 = vmatprep.subr.mxu0 0.0
        %4575 = vmatpush1.msra.mxu0 %v481
        %4576 = vmatprep.subr.mxu0 0.0
        %4577 = vmatpush1.msra.mxu0 %v482
        %4578 = vmatprep.subr.mxu0 0.0
        %4579 = vmatpush1.msra.mxu0 %v483
        %4580 = vmatprep.subr.mxu0 0.0
        %4581 = vmatpush1.msra.mxu0 %v484
        %4582 = vmatprep.subr.mxu0 0.0
        %4583 = vmatpush1.msra.mxu0 %v485
        %4584 = vmatprep.subr.mxu0 0.0
        %4585 = vmatpush1.msra.mxu0 %v486
        %4586 = vmatprep.subr.mxu0 0.0
        %4587 = vmatpush1.msra.mxu0 %v487
        %4588 = vmatprep.subr.mxu0 0.0
        %4589 = vmatpush1.msra.mxu0 %v488
        %4590 = vmatprep.subr.mxu0 0.0
        %4591 = vmatpush1.msra.mxu0 %v489
        %4592 = vmatprep.subr.mxu0 0.0
        %4593 = vmatpush1.msra.mxu0 %v490
        %4594 = vmatprep.subr.mxu0 0.0
        %4595 = vmatpush1.msra.mxu0 %v491
        %4596 = vmatprep.subr.mxu0 0.0
        %4597 = vmatpush1.msra.mxu0 %v492
        %4598 = vmatprep.subr.mxu0 0.0
        %4599 = vmatpush1.msra.mxu0 %v493
        %4600 = vmatprep.subr.mxu0 0.0
        %4601 = vmatpush1.msra.mxu0 %v494
        %4602 = vmatprep.subr.mxu0 0.0
        %4603 = vmatpush1.msra.mxu0 %v495
        %4604 = vmatprep.subr.mxu0 0.0
        %4605 = vmatpush1.msra.mxu0 %v496
        %4606 = vmatprep.subr.mxu0 0.0
        %4607 = vmatpush1.msra.mxu0 %v497
        %4608 = vmatprep.subr.mxu0 0.0
        %4609 = vmatpush1.msra.mxu0 %v498
        %4610 = vmatprep.subr.mxu0 0.0
        %4611 = vmatpush1.msra.mxu0 %v499
        %4612 = vmatprep.subr.mxu0 0.0
        %4613 = vmatpush1.msra.mxu0 %v500
        %4614 = vmatprep.subr.mxu0 0.0
        %4615 = vmatpush1.msra.mxu0 %v501
        %4616 = vmatprep.subr.mxu0 0.0
        %4617 = vmatpush1.msra.mxu0 %v502
        %4618 = vmatprep.mubr.f32.mxu0 %v4466
        %4619 = vmatmul.mubr.f32.gmra.mrb[0].mxu0 %v4465
        %v4620 = vpop.f32.mrb[0].mxu0
        %v4621 = vadd.f32 %v4546, %v4620
        %v4622 = vpop.f32.mrb[0].mxu0
        %4623 = vmatprep.mubr.f32.mxu0 %v4474
        %4624 = vmatmul.mubr.f32.gmra.mrb[0].mxu0 %v4473
        %v4625 = vpop.f32.mrb[0].mxu0
        %v4626 = vadd.f32 %v4551, %v4625
        %v4627 = vpop.f32.mrb[0].mxu0
        %4628 = vdwg.mxu0
        %4629 = vmatprep.subr.mxu0 0.0
        %4630 = vmatpush1.msra.mxu0 %v503
        %4631 = vmatprep.subr.mxu0 0.0
        %4632 = vmatpush1.msra.mxu0 %v504
        %4633 = vmatprep.subr.mxu0 0.0
        %4634 = vmatpush1.msra.mxu0 %v505
        %4635 = vmatprep.subr.mxu0 0.0
        %4636 = vmatpush1.msra.mxu0 %v506
        %4637 = vmatprep.subr.mxu0 0.0
        %4638 = vmatpush1.msra.mxu0 %v507
        %4639 = vmatprep.subr.mxu0 0.0
        %4640 = vmatpush1.msra.mxu0 %v508
        %4641 = vmatprep.subr.mxu0 0.0
        %4642 = vmatpush1.msra.mxu0 %v509
        %4643 = vmatprep.subr.mxu0 0.0
        %4644 = vmatpush1.msra.mxu0 %v510
        %4645 = vmatprep.subr.mxu0 0.0
        %4646 = vmatpush1.msra.mxu0 %v511
        %4647 = vmatprep.subr.mxu0 0.0
        %4648 = vmatpush1.msra.mxu0 %v512
        %4649 = vmatprep.subr.mxu0 0.0
        %4650 = vmatpush1.msra.mxu0 %v513
        %4651 = vmatprep.subr.mxu0 0.0
        %4652 = vmatpush1.msra.mxu0 %v514
        %4653 = vmatprep.subr.mxu0 0.0
        %4654 = vmatpush1.msra.mxu0 %v515
        %4655 = vmatprep.subr.mxu0 0.0
        %4656 = vmatpush1.msra.mxu0 %v516
        %4657 = vmatprep.subr.mxu0 0.0
        %4658 = vmatpush1.msra.mxu0 %v517
        %4659 = vmatprep.subr.mxu0 0.0
        %4660 = vmatpush1.msra.mxu0 %v518
        %4661 = vmatprep.subr.mxu0 0.0
        %4662 = vmatpush1.msra.mxu0 %v519
        %4663 = vmatprep.subr.mxu0 0.0
        %4664 = vmatpush1.msra.mxu0 %v520
        %4665 = vmatprep.subr.mxu0 0.0
        %4666 = vmatpush1.msra.mxu0 %v521
        %4667 = vmatprep.subr.mxu0 0.0
        %4668 = vmatpush1.msra.mxu0 %v522
        %4669 = vmatprep.subr.mxu0 0.0
        %4670 = vmatpush1.msra.mxu0 %v523
        %4671 = vmatprep.subr.mxu0 0.0
        %4672 = vmatpush1.msra.mxu0 %v524
        %4673 = vmatprep.subr.mxu0 0.0
        %4674 = vmatpush1.msra.mxu0 %v525
        %4675 = vmatprep.subr.mxu0 0.0
        %4676 = vmatpush1.msra.mxu0 %v526
        %4677 = vmatprep.subr.mxu0 0.0
        %4678 = vmatpush1.msra.mxu0 %v527
        %4679 = vmatprep.subr.mxu0 0.0
        %4680 = vmatpush1.msra.mxu0 %v528
        %4681 = vmatprep.subr.mxu0 0.0
        %4682 = vmatpush1.msra.mxu0 %v529
        %4683 = vmatprep.subr.mxu0 0.0
        %4684 = vmatpush1.msra.mxu0 %v530
        %4685 = vmatprep.subr.mxu0 0.0
        %4686 = vmatpush1.msra.mxu0 %v531
        %4687 = vmatprep.subr.mxu0 0.0
        %4688 = vmatpush1.msra.mxu0 %v532
        %4689 = vmatprep.subr.mxu0 0.0
        %4690 = vmatpush1.msra.mxu0 %v533
        %4691 = vmatprep.subr.mxu0 0.0
        %4692 = vmatpush1.msra.mxu0 %v534
        %4693 = vmatprep.mubr.f32.mxu0 %v4468
        %4694 = vmatmul.mubr.f32.gmra.mrb[0].mxu0 %v4467
        %v4695 = vpop.f32.mrb[0].mxu0
        %v4696 = vadd.f32 %v4621, %v4695
        %v4697 = vpop.f32.mrb[0].mxu0
        %4698 = vmatprep.mubr.f32.mxu0 %v4476
        %4699 = vmatmul.mubr.f32.gmra.mrb[0].mxu0 %v4475
        %v4700 = vpop.f32.mrb[0].mxu0
        %v4701 = vadd.f32 %v4626, %v4700
        %v4702 = vpop.f32.mrb[0].mxu0
        %4703 = vdwg.mxu0
        %4704 = vmatprep.subr.mxu0 0.0
        %4705 = vmatpush1.msra.mxu0 %v535
        %4706 = vmatprep.subr.mxu0 0.0
        %4707 = vmatpush1.msra.mxu0 %v536
        %4708 = vmatprep.subr.mxu0 0.0
        %4709 = vmatpush1.msra.mxu0 %v537
        %4710 = vmatprep.subr.mxu0 0.0
        %4711 = vmatpush1.msra.mxu0 %v538
        %4712 = vmatprep.subr.mxu0 0.0
        %4713 = vmatpush1.msra.mxu0 %v539
        %4714 = vmatprep.subr.mxu0 0.0
        %4715 = vmatpush1.msra.mxu0 %v540
        %4716 = vmatprep.subr.mxu0 0.0
        %4717 = vmatpush1.msra.mxu0 %v541
        %4718 = vmatprep.subr.mxu0 0.0
        %4719 = vmatpush1.msra.mxu0 %v542
        %4720 = vmatprep.subr.mxu0 0.0
        %4721 = vmatpush1.msra.mxu0 %v543
        %4722 = vmatprep.subr.mxu0 0.0
        %4723 = vmatpush1.msra.mxu0 %v544
        %4724 = vmatprep.subr.mxu0 0.0
        %4725 = vmatpush1.msra.mxu0 %v545
        %4726 = vmatprep.subr.mxu0 0.0
        %4727 = vmatpush1.msra.mxu0 %v546
        %4728 = vmatprep.subr.mxu0 0.0
        %4729 = vmatpush1.msra.mxu0 %v547
        %4730 = vmatprep.subr.mxu0 0.0
        %4731 = vmatpush1.msra.mxu0 %v548
        %4732 = vmatprep.subr.mxu0 0.0
        %4733 = vmatpush1.msra.mxu0 %v549
        %4734 = vmatprep.subr.mxu0 0.0
        %4735 = vmatpush1.msra.mxu0 %v550
        %4736 = vmatprep.subr.mxu0 0.0
        %4737 = vmatpush1.msra.mxu0 %v551
        %4738 = vmatprep.subr.mxu0 0.0
        %4739 = vmatpush1.msra.mxu0 %v552
        %4740 = vmatprep.subr.mxu0 0.0
        %4741 = vmatpush1.msra.mxu0 %v553
        %4742 = vmatprep.subr.mxu0 0.0
        %4743 = vmatpush1.msra.mxu0 %v554
        %4744 = vmatprep.subr.mxu0 0.0
        %4745 = vmatpush1.msra.mxu0 %v555
        %4746 = vmatprep.subr.mxu0 0.0
        %4747 = vmatpush1.msra.mxu0 %v556
        %4748 = vmatprep.subr.mxu0 0.0
        %4749 = vmatpush1.msra.mxu0 %v557
        %4750 = vmatprep.subr.mxu0 0.0
        %4751 = vmatpush1.msra.mxu0 %v558
        %4752 = vmatprep.subr.mxu0 0.0
        %4753 = vmatpush1.msra.mxu0 %v559
        %4754 = vmatprep.subr.mxu0 0.0
        %4755 = vmatpush1.msra.mxu0 %v560
        %4756 = vmatprep.subr.mxu0 0.0
        %4757 = vmatpush1.msra.mxu0 %v561
        %4758 = vmatprep.subr.mxu0 0.0
        %4759 = vmatpush1.msra.mxu0 %v562
        %4760 = vmatprep.subr.mxu0 0.0
        %4761 = vmatpush1.msra.mxu0 %v563
        %4762 = vmatprep.subr.mxu0 0.0
        %4763 = vmatpush1.msra.mxu0 %v564
        %4764 = vmatprep.subr.mxu0 0.0
        %4765 = vmatpush1.msra.mxu0 %v565
        %4766 = vmatprep.subr.mxu0 0.0
        %4767 = vmatpush1.msra.mxu0 %v566
        %4768 = vmatprep.mubr.f32.mxu0 %v4470
        %4769 = vmatmul.mubr.f32.gmra.mrb[0].mxu0 %v4469
        %v4770 = vpop.f32.mrb[0].mxu0
        %v4771 = vadd.f32 %v4696, %v4770
        %v4772 = vpop.f32.mrb[0].mxu0
        %4773 = vmatprep.mubr.f32.mxu0 %v4478
        %4774 = vmatmul.mubr.f32.gmra.mrb[0].mxu0 %v4477
        %v4775 = vpop.f32.mrb[0].mxu0
        %v4776 = vadd.f32 %v4701, %v4775
        %v4777 = vpop.f32.mrb[0].mxu0
        %4778 = vdwg.mxu0
        %4779 = vmatprep.subr.mxu0 0.0
        %4780 = vmatpush1.msra.mxu0 %v4771
        %4781 = vmatprep.subr.mxu0 0.0
        %4782 = vmatpush1.msra.mxu0 %v4776
        %4783 = vmatprep.subr.mxu0 0.0
        %4784 = vmatpush1.msra.mxu0 0.0
        %4785 = vmatprep.subr.mxu0 0.0
        %4786 = vmatpush1.msra.mxu0 0.0
        %4787 = vmatprep.subr.mxu0 0.0
        %4788 = vmatpush1.msra.mxu0 0.0
        %4789 = vmatprep.subr.mxu0 0.0
        %4790 = vmatpush1.msra.mxu0 0.0
        %4791 = vmatprep.subr.mxu0 0.0
        %4792 = vmatpush1.msra.mxu0 0.0
        %4793 = vmatprep.subr.mxu0 0.0
        %4794 = vmatpush1.msra.mxu0 0.0
        %4795 = vmatprep.subr.mxu0 0.0
        %4796 = vmatpush1.msra.mxu0 0.0
        %4797 = vmatprep.subr.mxu0 0.0
        %4798 = vmatpush1.msra.mxu0 0.0
        %4799 = vmatprep.subr.mxu0 0.0
        %4800 = vmatpush1.msra.mxu0 0.0
        %4801 = vmatprep.subr.mxu0 0.0
        %4802 = vmatpush1.msra.mxu0 0.0
        %4803 = vmatprep.subr.mxu0 0.0
        %4804 = vmatpush1.msra.mxu0 0.0
        %4805 = vmatprep.subr.mxu0 0.0
        %4806 = vmatpush1.msra.mxu0 0.0
        %4807 = vmatprep.subr.mxu0 0.0
        %4808 = vmatpush1.msra.mxu0 0.0
        %4809 = vmatprep.subr.mxu0 0.0
        %4810 = vmatpush1.msra.mxu0 0.0
        %4811 = vmatprep.subr.mxu0 0.0
        %4812 = vmatpush1.msra.mxu0 0.0
        %4813 = vmatprep.subr.mxu0 0.0
        %4814 = vmatpush1.msra.mxu0 0.0
        %4815 = vmatprep.subr.mxu0 0.0
        %4816 = vmatpush1.msra.mxu0 0.0
        %4817 = vmatprep.subr.mxu0 0.0
        %4818 = vmatpush1.msra.mxu0 0.0
        %4819 = vmatprep.subr.mxu0 0.0
        %4820 = vmatpush1.msra.mxu0 0.0
        %4821 = vmatprep.subr.mxu0 0.0
        %4822 = vmatpush1.msra.mxu0 0.0
        %4823 = vmatprep.subr.mxu0 0.0
        %4824 = vmatpush1.msra.mxu0 0.0
        %4825 = vmatprep.subr.mxu0 0.0
        %4826 = vmatpush1.msra.mxu0 0.0
        %4827 = vmatprep.subr.mxu0 0.0
        %4828 = vmatpush1.msra.mxu0 0.0
        %4829 = vmatprep.subr.mxu0 0.0
        %4830 = vmatpush1.msra.mxu0 0.0
        %4831 = vmatprep.subr.mxu0 0.0
        %4832 = vmatpush1.msra.mxu0 0.0
        %4833 = vmatprep.subr.mxu0 0.0
        %4834 = vmatpush1.msra.mxu0 0.0
        %4835 = vmatprep.subr.mxu0 0.0
        %4836 = vmatpush1.msra.mxu0 0.0
        %4837 = vmatprep.subr.mxu0 0.0
        %4838 = vmatpush1.msra.mxu0 0.0
        %4839 = vmatprep.subr.mxu0 0.0
        %4840 = vmatpush1.msra.mxu0 0.0
        %4841 = vmatprep.subr.mxu0 0.0
        %4842 = vmatpush1.msra.mxu0 0.0
        %4843 = vmatprep.mubr.f32.mxu0 0.0
        %4844 = vmatmul.mubr.f32.gmra.mrb[0].mxu0 %v1598
        %v4845 = vpop.f32.mrb[0].mxu0
        %v4846 = vadd.f32 %v4286, %v4845
        %v4847 = vpop.f32.mrb[0].mxu0
        %4848 = vdwg.mxu0
        %v4849 = vadd.f32 %v4846, %v1673
        %v4850 = vmax.f32 %v4849, 0.0
        %v4852 = vsel %vm571, %v4850, 0
        %4854 = vmatprep.subr.mxu0 0.0
        %4855 = vmatpush1.msra.mxu0 %v390
        %4856 = vmatprep.subr.mxu0 0.0
        %4857 = vmatpush1.msra.mxu0 %v391
        %4858 = vmatprep.subr.mxu0 0.0
        %4859 = vmatpush1.msra.mxu0 %v392
        %4860 = vmatprep.subr.mxu0 0.0
        %4861 = vmatpush1.msra.mxu0 %v393
        %4862 = vmatprep.subr.mxu0 0.0
        %4863 = vmatpush1.msra.mxu0 0.0
        %4864 = vmatprep.subr.mxu0 0.0
        %4865 = vmatpush1.msra.mxu0 0.0
        %4866 = vmatprep.subr.mxu0 0.0
        %4867 = vmatpush1.msra.mxu0 0.0
        %4868 = vmatprep.subr.mxu0 0.0
        %4869 = vmatpush1.msra.mxu0 0.0
        %4870 = vmatprep.subr.mxu0 0.0
        %4871 = vmatpush1.msra.mxu0 0.0
        %4872 = vmatprep.subr.mxu0 0.0
        %4873 = vmatpush1.msra.mxu0 0.0
        %4874 = vmatprep.subr.mxu0 0.0
        %4875 = vmatpush1.msra.mxu0 0.0
        %4876 = vmatprep.subr.mxu0 0.0
        %4877 = vmatpush1.msra.mxu0 0.0
        %4878 = vmatprep.subr.mxu0 0.0
        %4879 = vmatpush1.msra.mxu0 0.0
        %4880 = vmatprep.subr.mxu0 0.0
        %4881 = vmatpush1.msra.mxu0 0.0
        %4882 = vmatprep.subr.mxu0 0.0
        %4883 = vmatpush1.msra.mxu0 0.0
        %4884 = vmatprep.subr.mxu0 0.0
        %4885 = vmatpush1.msra.mxu0 0.0
        %4886 = vmatprep.subr.mxu0 0.0
        %4887 = vmatpush1.msra.mxu0 0.0
        %4888 = vmatprep.subr.mxu0 0.0
        %4889 = vmatpush1.msra.mxu0 0.0
        %4890 = vmatprep.subr.mxu0 0.0
        %4891 = vmatpush1.msra.mxu0 0.0
        %4892 = vmatprep.subr.mxu0 0.0
        %4893 = vmatpush1.msra.mxu0 0.0
        %4894 = vmatprep.subr.mxu0 0.0
        %4895 = vmatpush1.msra.mxu0 0.0
        %4896 = vmatprep.subr.mxu0 0.0
        %4897 = vmatpush1.msra.mxu0 0.0
        %4898 = vmatprep.subr.mxu0 0.0
        %4899 = vmatpush1.msra.mxu0 0.0
        %4900 = vmatprep.subr.mxu0 0.0
        %4901 = vmatpush1.msra.mxu0 0.0
        %4902 = vmatprep.subr.mxu0 0.0
        %4903 = vmatpush1.msra.mxu0 0.0
        %4904 = vmatprep.subr.mxu0 0.0
        %4905 = vmatpush1.msra.mxu0 0.0
        %4906 = vmatprep.subr.mxu0 0.0
        %4907 = vmatpush1.msra.mxu0 0.0
        %4908 = vmatprep.subr.mxu0 0.0
        %4909 = vmatpush1.msra.mxu0 0.0
        %4910 = vmatprep.subr.mxu0 0.0
        %4911 = vmatpush1.msra.mxu0 0.0
        %4912 = vmatprep.subr.mxu0 0.0
        %4913 = vmatpush1.msra.mxu0 0.0
        %4914 = vmatprep.subr.mxu0 0.0
        %4915 = vmatpush1.msra.mxu0 0.0
        %4916 = vmatprep.subr.mxu0 0.0
        %4917 = vmatpush1.msra.mxu0 0.0
        %4918 = vmatprep.mubr.f32.mxu0 0.0
        %4919 = vmatmul.mubr.f32.gmra.mrb[0].mxu0 %v4852
        %v4920 = vpop.f32.mrb[0].mxu0
        %v4921 = vadd.f32 %v4359, %v4920
        %v4922 = vpop.f32.mrb[0].mxu0
        %4923 = vdwg.mxu0
        %v4924 = vadd.f32 %v4921, %v385
        %4925 = vst.msk [vmem:[%s366] sm:$0xff] %vm571, %v4924
        %s4926 = sand.u32 %s240, 1
        %s4927 = scalar_lea.sflag [#allocation3], %s4926
        %s4928 = sand.u32 %s240, 1
        %s4929 = smul.addr %s4928, 8
        %s4930 = scalar_lea.vmem [#allocation2], %s4929
        // Predicated region
        $region57: #{tpu_custom_call.1} parent=55 // pred_check
          %p4931 = pneg %p250
        $region58: #{tpu_custom_call.1} parent=55 // pred_check_branch
          %4933 = sbr.rel (%p4931) target = $region60
        $region59: #{tpu_custom_call.1} parent=55 // pred_region
          %s4935 = ssub.s32 128, 128
          %4936 = vsyncadd %s4927, %s4935
          %s4937 = smul.addr %s23, 128
          %s4938 = scalar_lea.hbm %s9, %s4937
          %s4940 = sshll.u32 %s4930, 4
          %s4941 = int_to_ptr.vmem [resolvable:$true] %s4940
          %4943 = dma.vmem_to_hbm [thread:$0]  %s4941, 128, %s4938, %s4927
        $region60: #{tpu_custom_call.1} parent=55 // pred_fallthru
          _
      $region56: #{tpu_custom_call.1} parent=5 // pred_fallthru
        _
      %p4944 = scmp.le.s32.totalorder 2, %s18
      // Predicated region
      $region61: #{tpu_custom_call.1} parent=5 // pred_check
        %p4945 = pneg %p4944
      $region62: #{tpu_custom_call.1} parent=5 // pred_check_branch
        %4947 = sbr.rel (%p4945) target = $region64
      $region63: #{tpu_custom_call.1} parent=5 // pred_region
        %s4948 = ssub.s32 %s18, 2
        // Predicated region
        $region65: #{tpu_custom_call.1} parent=63 // pred_check
          %p4949 = pneg %p256
        $region66: #{tpu_custom_call.1} parent=63 // pred_check_branch
          %4951 = sbr.rel (%p4949) target = $region68
        $region67: #{tpu_custom_call.1} parent=63 // pred_region
          %s4952 = sand.u32 %s241, 1
          %s4953 = scalar_lea.sflag [#allocation3], %s4952
          %s4954 = sand.u32 %s241, 1
          %s4955 = smul.addr %s4954, 8
          %s4956 = scalar_lea.vmem [#allocation2], %s4955
          %4957 = dma.done %s4953, 128
        $region68: #{tpu_custom_call.1} parent=63 // pred_fallthru
          _
      $region64: #{tpu_custom_call.1} parent=5 // pred_fallthru
        _
    $region6: #{tpu_custom_call.1} parent=1 // loop_footer
      %s22 = sadd.s32 1, %s18
    $region7: #{tpu_custom_call.1} parent=1 // loop_footer_branch
      %17 = sbr.rel target = $region3
    $region8: #{tpu_custom_call.1} parent=1 // loop_exit
      _
    %4958 = vsyncpa [#allocation3], 1
    %s4959 = scalar_lea.sflag [#allocation3], 1
    %4960 = vsyncpa %s4959, 1

</llo_original>
